<compile_context>
chip_gen: v6e
topology: v6e:2x2x1
jax: 0.10.0
libtpu: 0.0.40
codegen_flags: <defaults>
</compile_context>

<pallas_src>
import jax
import jax.numpy as jnp
from jax.experimental import pallas as pl
from jax.experimental.pallas import tpu as pltpu

COLOR_CHANNELS = 1
N_CLASSES = 3          # ('benign', 'malignant', 'normal')
NB_FILTER = 4          # small for the demo
BN_EPS = 1e-5


# -----------------------------------------------------------------------------
# Fused  W @ patches  (+ BN shift)  ->  LeakyReLU   Pallas kernel
# -----------------------------------------------------------------------------
def _conv_bn_lrelu_kernel(w_ref, p_ref, shift_ref, o_ref):
    acc = jnp.dot(w_ref[...], p_ref[...], preferred_element_type=jnp.float32)
    y = acc + shift_ref[...]                 # BN shift (scale folded into w)
    y = jnp.where(y > 0, y, 0.2 * y)         # LeakyReLU(0.2)
    o_ref[...] = y.astype(o_ref.dtype)       # lane-dense (Cout, TM) store


def _pick_tile_m(m):
    """Lane tile: multiple of 128, <= 2048, >= 2 grid steps when possible."""
    if m <= 256 or m % 128 != 0:
        return m
    tm = min(2048, m // 2)
    tm = max(128, (tm // 128) * 128)
    while m % tm:
        tm //= 2
    return max(tm, 128)


def conv_bn_lrelu(wmat, patches, shift):
    """wmat: (Cout, K) bf16, patches: (K, M) bf16, shift: (Cout, 1) f32.

    Returns (Cout, M) bf16 = LeakyReLU_{0.2}(wmat @ patches + shift).
    """
    cout, k = wmat.shape
    _, m = patches.shape
    tm = _pick_tile_m(m)
    grid = (m // tm,)
    return pl.pallas_call(
        _conv_bn_lrelu_kernel,
        out_shape=jax.ShapeDtypeStruct((cout, m), jnp.bfloat16),
        grid_spec=pltpu.PrefetchScalarGridSpec(
            num_scalar_prefetch=0,
            grid=grid,
            in_specs=[
                pl.BlockSpec((cout, k), lambda i: (0, 0)),    # weight (resident)
                pl.BlockSpec((k, tm), lambda i: (0, i)),      # patch tile
                pl.BlockSpec((cout, 1), lambda i: (0, 0)),    # BN shift
            ],
            out_specs=pl.BlockSpec((cout, tm), lambda i: (0, i)),
        ),
        compiler_params=pltpu.CompilerParams(
            dimension_semantics=("parallel",)),
    )(wmat, patches, shift)


# -----------------------------------------------------------------------------
# im2col glue (plain JAX) in channel-major layout
# -----------------------------------------------------------------------------
def im2col_cmajor(x_cbhw, kh, kw, stride, pad):
    """x: (C, B, H, W) -> patches (C*kh*kw, B*oh*ow); K-order = (cin, kh, kw)."""
    x = jnp.pad(x_cbhw, ((0, 0), (0, 0), (pad, pad), (pad, pad)))
    c, b, h, w = x.shape
    oh = (h - kh) // stride + 1
    ow = (w - kw) // stride + 1
    cols = []
    for i in range(kh):
        for j in range(kw):
            cols.append(x[:, :, i:i + stride * oh:stride,
                          j:j + stride * ow:stride])      # (C, B, oh, ow)
    p = jnp.stack(cols, axis=1)                           # (C, kh*kw, B, oh, ow)
    return p.reshape(c * kh * kw, b * oh * ow), (b, oh, ow)


def fold_conv_bn(w_ocihw, gamma, beta):
    """Fold eval-mode BN (mean=0, var=1) scale into the conv weight rows."""
    cout = w_ocihw.shape[0]
    wmat = w_ocihw.reshape(cout, -1)                      # (Cout, Cin*KH*KW)
    scale = gamma / jnp.sqrt(1.0 + BN_EPS)
    wmat = (wmat * scale[:, None]).astype(jnp.bfloat16)
    shift = beta.reshape(cout, 1).astype(jnp.float32)
    return wmat, shift


# -----------------------------------------------------------------------------
# Parameter construction (deterministic, mirrors __initialize_weights)
# -----------------------------------------------------------------------------
def make_params(key, nb_filter, n_classes):
    chans = [COLOR_CHANNELS * 2,
             nb_filter, nb_filter * 2, nb_filter * 4,
             nb_filter * 8, nb_filter * 16, nb_filter * 32]
    params = {"layers": []}
    for li in range(6):
        cin, cout = chans[li], chans[li + 1]
        key, k_w, k_g = jax.random.split(key, 3)
        w = 0.02 * jax.random.normal(k_w, (cout, cin, 4, 4), jnp.float32)
        gamma = 1.0 + 0.02 * jax.random.normal(k_g, (cout,), jnp.float32)
        beta = jnp.zeros((cout,), jnp.float32)
        params["layers"].append({"w": w, "gamma": gamma, "beta": beta})
    key, k_adv, k_aux = jax.random.split(key, 3)
    params["adv_w"] = 0.02 * jax.random.normal(
        k_adv, (1, nb_filter * 32, 4, 4), jnp.float32)
    params["aux_w"] = 0.02 * jax.random.normal(
        k_aux, (n_classes, nb_filter * 32, 4, 4), jnp.float32)
    return params


# -----------------------------------------------------------------------------
# Forward pass
# -----------------------------------------------------------------------------
def discriminator_forward(params, image_nchw, mask_nchw):
    # cat along channels (PyTorch dim=1), then go channel-major for the kernels
    x = jnp.concatenate([image_nchw, mask_nchw], axis=1)          # (B, 2C, H, W)
    x = jnp.transpose(x, (1, 0, 2, 3)).astype(jnp.bfloat16)       # (C, B, H, W)

    # 6 x [Conv(4,2,1,no bias) -> BN(eval) -> LeakyReLU(0.2) -> Dropout(id)]
    for layer in params["layers"]:
        patches, (b, oh, ow) = im2col_cmajor(x, 4, 4, stride=2, pad=1)
        wmat, shift = fold_conv_bn(layer["w"], layer["gamma"], layer["beta"])
        y = conv_bn_lrelu(wmat, patches, shift)                   # (Cout, B*oh*ow)
        x = y.reshape(-1, b, oh, ow)                              # (Cout, B, oh, ow)

    # heads: Conv(4,1,0) over the final 4x4 map -> 1x1 per image.  This is a
    # (B, 2048) @ (2048, 1/3) matmul — launch-overhead dominated as a kernel,
    # so computed in plain JAX (per perf review).
    feat = x.astype(jnp.float32)                                  # (128, B, 4, 4)
    adv_logit = jnp.einsum('cbij,ocij->bo', feat, params["adv_w"])   # (B, 1)
    aux_logit = jnp.einsum('cbij,ocij->bo', feat, params["aux_w"])   # (B, 3)
    adv = jax.nn.sigmoid(adv_logit).reshape(-1)                   # .view(-1)
    aux = jax.nn.log_softmax(aux_logit, axis=-1).reshape(-1, N_CLASSES)
    return adv, aux


# -----------------------------------------------------------------------------
if __name__ == "__main__":
    key = jax.random.PRNGKey(0)
    k_param, k_img, k_msk = jax.random.split(key, 3)

    params = make_params(k_param, NB_FILTER, N_CLASSES)

    # The architecture (6 stride-2 convs + final 4x4 valid conv) requires
    # 256x256 spatial input; batch=2, 1 color channel each for image & mask.
    B = 2
    image = jax.random.normal(k_img, (B, COLOR_CHANNELS, 256, 256), jnp.float32)
    mask = jax.random.normal(k_msk, (B, COLOR_CHANNELS, 256, 256), jnp.float32)

    adv, aux = jax.jit(discriminator_forward)(params, image, mask)
    adv = jax.block_until_ready(adv)
    aux = jax.block_until_ready(aux)

    assert adv.shape == (B,), adv.shape
    assert aux.shape == (B, N_CLASSES), aux.shape
    assert bool(jnp.all((adv >= 0.0) & (adv <= 1.0)))
    assert bool(jnp.allclose(jnp.sum(jnp.exp(aux), axis=-1), 1.0, atol=1e-5))
    print("KERNEL_OK")
</pallas_src>

<mosaic_0001>
module attributes {stable_mosaic.version = 11 : i64} {
  func.func @_conv_bn_lrelu_kernel(%arg0: i32, %arg1: memref<4x32xbf16, #tpu.memory_space<vmem>>, %arg2: memref<32x2048xbf16, #tpu.memory_space<vmem>>, %arg3: memref<4x1xf32, #tpu.memory_space<vmem>>, %arg4: memref<4x2048xbf16, #tpu.memory_space<vmem>>) attributes {dimension_semantics = [#tpu.dimension_semantics<parallel>], iteration_bounds = array<i64: 16>, scalar_prefetch = 0 : i64, scratch_operands = 0 : i64, tpu.core_type = #tpu.core_type<tc>, window_params = [{pipeline_mode = #tpu.pipeline_mode<synchronous>, transform_indices = @transform_0, window_bounds = array<i64: 4, 32>}, {transform_indices = @transform_1, window_bounds = array<i64: 32, 2048>}, {pipeline_mode = #tpu.pipeline_mode<synchronous>, transform_indices = @transform_2, window_bounds = array<i64: 4, 1>}, {transform_indices = @transform_3, window_bounds = array<i64: 4, 2048>}]} {
    %c0 = arith.constant 0 : index
    %c0_0 = arith.constant 0 : index
    %0 = vector.load %arg1[%c0, %c0_0] : memref<4x32xbf16, #tpu.memory_space<vmem>>, vector<4x32xbf16>
    %c0_1 = arith.constant 0 : index
    %c0_2 = arith.constant 0 : index
    %1 = vector.load %arg2[%c0_1, %c0_2] : memref<32x2048xbf16, #tpu.memory_space<vmem>>, vector<32x2048xbf16>
    %cst = arith.constant dense<0.000000e+00> : vector<4x2048xf32>
    %2 = tpu.matmul %0, %1, %cst {dimension_numbers = #tpu.dot_dimension_numbers<[1], [0], [0], [1], [0, 0, 1, 1], [], []>} : vector<4x32xbf16>, vector<32x2048xbf16>, vector<4x2048xf32> -> vector<4x2048xf32>
    %c0_3 = arith.constant 0 : index
    %c0_4 = arith.constant 0 : index
    %3 = vector.load %arg3[%c0_3, %c0_4] : memref<4x1xf32, #tpu.memory_space<vmem>>, vector<4x1xf32>
    %4 = vector.broadcast %3 : vector<4x1xf32> to vector<4x2048xf32>
    %5 = arith.addf %2, %4 : vector<4x2048xf32>
    %cst_5 = arith.constant 0.000000e+00 : f32
    %6 = vector.broadcast %cst_5 : f32 to vector<4x2048xf32>
    %7 = arith.cmpf ogt, %5, %6 : vector<4x2048xf32>
    %cst_6 = arith.constant 2.000000e-01 : f32
    %8 = vector.broadcast %cst_6 : f32 to vector<4x2048xf32>
    %9 = arith.mulf %8, %5 : vector<4x2048xf32>
    %10 = arith.select %7, %5, %9 : vector<4x2048xi1>, vector<4x2048xf32>
    %11 = arith.truncf %10 : vector<4x2048xf32> to vector<4x2048xbf16>
    %c0_7 = arith.constant 0 : index
    %c0_8 = arith.constant 0 : index
    %12 = vector.load %arg4[%c0_7, %c0_8] : memref<4x2048xbf16, #tpu.memory_space<vmem>>, vector<4x2048xbf16>
    tpu.vector_store %arg4[%c0_7, %c0_8], %11 {strides = array<i32>} : memref<4x2048xbf16, #tpu.memory_space<vmem>>, vector<4x2048xbf16>,
    return
  }
  func.func @transform_0(%arg0: i32) -> (i32, i32) {
    %c0_i32 = arith.constant 0 : i32
    %c0_i32_0 = arith.constant 0 : i32
    %c0_i32_1 = arith.constant 0 : i32
    return %c0_i32, %c0_i32_0 : i32, i32
  }
  func.func @transform_1(%arg0: i32) -> (i32, i32) {
    %c0_i32 = arith.constant 0 : i32
    %c0_i32_0 = arith.constant 0 : i32
    return %c0_i32, %arg0 : i32, i32
  }
  func.func @transform_2(%arg0: i32) -> (i32, i32) {
    %c0_i32 = arith.constant 0 : i32
    %c0_i32_0 = arith.constant 0 : i32
    %c0_i32_1 = arith.constant 0 : i32
    return %c0_i32, %c0_i32_0 : i32, i32
  }
  func.func @transform_3(%arg0: i32) -> (i32, i32) {
    %c0_i32 = arith.constant 0 : i32
    %c0_i32_0 = arith.constant 0 : i32
    return %c0_i32, %arg0 : i32, i32
  }
}

module attributes {stable_mosaic.version = 11 : i64} {
  func.func @_conv_bn_lrelu_kernel(%arg0: i32, %arg1: memref<8x64xbf16, #tpu.memory_space<vmem>>, %arg2: memref<64x2048xbf16, #tpu.memory_space<vmem>>, %arg3: memref<8x1xf32, #tpu.memory_space<vmem>>, %arg4: memref<8x2048xbf16, #tpu.memory_space<vmem>>) attributes {dimension_semantics = [#tpu.dimension_semantics<parallel>], iteration_bounds = array<i64: 4>, scalar_prefetch = 0 : i64, scratch_operands = 0 : i64, tpu.core_type = #tpu.core_type<tc>, window_params = [{pipeline_mode = #tpu.pipeline_mode<synchronous>, transform_indices = @transform_0, window_bounds = array<i64: 8, 64>}, {transform_indices = @transform_1, window_bounds = array<i64: 64, 2048>}, {pipeline_mode = #tpu.pipeline_mode<synchronous>, transform_indices = @transform_2, window_bounds = array<i64: 8, 1>}, {transform_indices = @transform_3, window_bounds = array<i64: 8, 2048>}]} {
    %c0 = arith.constant 0 : index
    %c0_0 = arith.constant 0 : index
    %0 = vector.load %arg1[%c0, %c0_0] : memref<8x64xbf16, #tpu.memory_space<vmem>>, vector<8x64xbf16>
    %c0_1 = arith.constant 0 : index
    %c0_2 = arith.constant 0 : index
    %1 = vector.load %arg2[%c0_1, %c0_2] : memref<64x2048xbf16, #tpu.memory_space<vmem>>, vector<64x2048xbf16>
    %cst = arith.constant dense<0.000000e+00> : vector<8x2048xf32>
    %2 = tpu.matmul %0, %1, %cst {dimension_numbers = #tpu.dot_dimension_numbers<[1], [0], [0], [1], [0, 0, 1, 1], [], []>} : vector<8x64xbf16>, vector<64x2048xbf16>, vector<8x2048xf32> -> vector<8x2048xf32>
    %c0_3 = arith.constant 0 : index
    %c0_4 = arith.constant 0 : index
    %3 = vector.load %arg3[%c0_3, %c0_4] : memref<8x1xf32, #tpu.memory_space<vmem>>, vector<8x1xf32>
    %4 = vector.broadcast %3 : vector<8x1xf32> to vector<8x2048xf32>
    %5 = arith.addf %2, %4 : vector<8x2048xf32>
    %cst_5 = arith.constant 0.000000e+00 : f32
    %6 = vector.broadcast %cst_5 : f32 to vector<8x2048xf32>
    %7 = arith.cmpf ogt, %5, %6 : vector<8x2048xf32>
    %cst_6 = arith.constant 2.000000e-01 : f32
    %8 = vector.broadcast %cst_6 : f32 to vector<8x2048xf32>
    %9 = arith.mulf %8, %5 : vector<8x2048xf32>
    %10 = arith.select %7, %5, %9 : vector<8x2048xi1>, vector<8x2048xf32>
    %11 = arith.truncf %10 : vector<8x2048xf32> to vector<8x2048xbf16>
    %c0_7 = arith.constant 0 : index
    %c0_8 = arith.constant 0 : index
    %12 = vector.load %arg4[%c0_7, %c0_8] : memref<8x2048xbf16, #tpu.memory_space<vmem>>, vector<8x2048xbf16>
    tpu.vector_store %arg4[%c0_7, %c0_8], %11 {strides = array<i32>} : memref<8x2048xbf16, #tpu.memory_space<vmem>>, vector<8x2048xbf16>,
    return
  }
  func.func @transform_0(%arg0: i32) -> (i32, i32) {
    %c0_i32 = arith.constant 0 : i32
    %c0_i32_0 = arith.constant 0 : i32
    %c0_i32_1 = arith.constant 0 : i32
    return %c0_i32, %c0_i32_0 : i32, i32
  }
  func.func @transform_1(%arg0: i32) -> (i32, i32) {
    %c0_i32 = arith.constant 0 : i32
    %c0_i32_0 = arith.constant 0 : i32
    return %c0_i32, %arg0 : i32, i32
  }
  func.func @transform_2(%arg0: i32) -> (i32, i32) {
    %c0_i32 = arith.constant 0 : i32
    %c0_i32_0 = arith.constant 0 : i32
    %c0_i32_1 = arith.constant 0 : i32
    return %c0_i32, %c0_i32_0 : i32, i32
  }
  func.func @transform_3(%arg0: i32) -> (i32, i32) {
    %c0_i32 = arith.constant 0 : i32
    %c0_i32_0 = arith.constant 0 : i32
    return %c0_i32, %arg0 : i32, i32
  }
}

module attributes {stable_mosaic.version = 11 : i64} {
  func.func @_conv_bn_lrelu_kernel(%arg0: i32, %arg1: memref<16x128xbf16, #tpu.memory_space<vmem>>, %arg2: memref<128x1024xbf16, #tpu.memory_space<vmem>>, %arg3: memref<16x1xf32, #tpu.memory_space<vmem>>, %arg4: memref<16x1024xbf16, #tpu.memory_space<vmem>>) attributes {dimension_semantics = [#tpu.dimension_semantics<parallel>], iteration_bounds = array<i64: 2>, scalar_prefetch = 0 : i64, scratch_operands = 0 : i64, tpu.core_type = #tpu.core_type<tc>, window_params = [{pipeline_mode = #tpu.pipeline_mode<synchronous>, transform_indices = @transform_0, window_bounds = array<i64: 16, 128>}, {transform_indices = @transform_1, window_bounds = array<i64: 128, 1024>}, {pipeline_mode = #tpu.pipeline_mode<synchronous>, transform_indices = @transform_2, window_bounds = array<i64: 16, 1>}, {transform_indices = @transform_3, window_bounds = array<i64: 16, 1024>}]} {
    %c0 = arith.constant 0 : index
    %c0_0 = arith.constant 0 : index
    %0 = vector.load %arg1[%c0, %c0_0] : memref<16x128xbf16, #tpu.memory_space<vmem>>, vector<16x128xbf16>
    %c0_1 = arith.constant 0 : index
    %c0_2 = arith.constant 0 : index
    %1 = vector.load %arg2[%c0_1, %c0_2] : memref<128x1024xbf16, #tpu.memory_space<vmem>>, vector<128x1024xbf16>
    %cst = arith.constant dense<0.000000e+00> : vector<16x1024xf32>
    %2 = tpu.matmul %0, %1, %cst {dimension_numbers = #tpu.dot_dimension_numbers<[1], [0], [0], [1], [0, 0, 1, 1], [], []>} : vector<16x128xbf16>, vector<128x1024xbf16>, vector<16x1024xf32> -> vector<16x1024xf32>
    %c0_3 = arith.constant 0 : index
    %c0_4 = arith.constant 0 : index
    %3 = vector.load %arg3[%c0_3, %c0_4] : memref<16x1xf32, #tpu.memory_space<vmem>>, vector<16x1xf32>
    %4 = vector.broadcast %3 : vector<16x1xf32> to vector<16x1024xf32>
    %5 = arith.addf %2, %4 : vector<16x1024xf32>
    %cst_5 = arith.constant 0.000000e+00 : f32
    %6 = vector.broadcast %cst_5 : f32 to vector<16x1024xf32>
    %7 = arith.cmpf ogt, %5, %6 : vector<16x1024xf32>
    %cst_6 = arith.constant 2.000000e-01 : f32
    %8 = vector.broadcast %cst_6 : f32 to vector<16x1024xf32>
    %9 = arith.mulf %8, %5 : vector<16x1024xf32>
    %10 = arith.select %7, %5, %9 : vector<16x1024xi1>, vector<16x1024xf32>
    %11 = arith.truncf %10 : vector<16x1024xf32> to vector<16x1024xbf16>
    %c0_7 = arith.constant 0 : index
    %c0_8 = arith.constant 0 : index
    %12 = vector.load %arg4[%c0_7, %c0_8] : memref<16x1024xbf16, #tpu.memory_space<vmem>>, vector<16x1024xbf16>
    tpu.vector_store %arg4[%c0_7, %c0_8], %11 {strides = array<i32>} : memref<16x1024xbf16, #tpu.memory_space<vmem>>, vector<16x1024xbf16>,
    return
  }
  func.func @transform_0(%arg0: i32) -> (i32, i32) {
    %c0_i32 = arith.constant 0 : i32
    %c0_i32_0 = arith.constant 0 : i32
    %c0_i32_1 = arith.constant 0 : i32
    return %c0_i32, %c0_i32_0 : i32, i32
  }
  func.func @transform_1(%arg0: i32) -> (i32, i32) {
    %c0_i32 = arith.constant 0 : i32
    %c0_i32_0 = arith.constant 0 : i32
    return %c0_i32, %arg0 : i32, i32
  }
  func.func @transform_2(%arg0: i32) -> (i32, i32) {
    %c0_i32 = arith.constant 0 : i32
    %c0_i32_0 = arith.constant 0 : i32
    %c0_i32_1 = arith.constant 0 : i32
    return %c0_i32, %c0_i32_0 : i32, i32
  }
  func.func @transform_3(%arg0: i32) -> (i32, i32) {
    %c0_i32 = arith.constant 0 : i32
    %c0_i32_0 = arith.constant 0 : i32
    return %c0_i32, %arg0 : i32, i32
  }
}

module attributes {stable_mosaic.version = 11 : i64} {
  func.func @_conv_bn_lrelu_kernel(%arg0: i32, %arg1: memref<32x256xbf16, #tpu.memory_space<vmem>>, %arg2: memref<256x256xbf16, #tpu.memory_space<vmem>>, %arg3: memref<32x1xf32, #tpu.memory_space<vmem>>, %arg4: memref<32x256xbf16, #tpu.memory_space<vmem>>) attributes {dimension_semantics = [#tpu.dimension_semantics<parallel>], iteration_bounds = array<i64: 2>, scalar_prefetch = 0 : i64, scratch_operands = 0 : i64, tpu.core_type = #tpu.core_type<tc>, window_params = [{pipeline_mode = #tpu.pipeline_mode<synchronous>, transform_indices = @transform_0, window_bounds = array<i64: 32, 256>}, {transform_indices = @transform_1, window_bounds = array<i64: 256, 256>}, {pipeline_mode = #tpu.pipeline_mode<synchronous>, transform_indices = @transform_2, window_bounds = array<i64: 32, 1>}, {transform_indices = @transform_3, window_bounds = array<i64: 32, 256>}]} {
    %c0 = arith.constant 0 : index
    %c0_0 = arith.constant 0 : index
    %0 = vector.load %arg1[%c0, %c0_0] : memref<32x256xbf16, #tpu.memory_space<vmem>>, vector<32x256xbf16>
    %c0_1 = arith.constant 0 : index
    %c0_2 = arith.constant 0 : index
    %1 = vector.load %arg2[%c0_1, %c0_2] : memref<256x256xbf16, #tpu.memory_space<vmem>>, vector<256x256xbf16>
    %cst = arith.constant dense<0.000000e+00> : vector<32x256xf32>
    %2 = tpu.matmul %0, %1, %cst {dimension_numbers = #tpu.dot_dimension_numbers<[1], [0], [0], [1], [0, 0, 1, 1], [], []>} : vector<32x256xbf16>, vector<256x256xbf16>, vector<32x256xf32> -> vector<32x256xf32>
    %c0_3 = arith.constant 0 : index
    %c0_4 = arith.constant 0 : index
    %3 = vector.load %arg3[%c0_3, %c0_4] : memref<32x1xf32, #tpu.memory_space<vmem>>, vector<32x1xf32>
    %4 = vector.broadcast %3 : vector<32x1xf32> to vector<32x256xf32>
    %5 = arith.addf %2, %4 : vector<32x256xf32>
    %cst_5 = arith.constant 0.000000e+00 : f32
    %6 = vector.broadcast %cst_5 : f32 to vector<32x256xf32>
    %7 = arith.cmpf ogt, %5, %6 : vector<32x256xf32>
    %cst_6 = arith.constant 2.000000e-01 : f32
    %8 = vector.broadcast %cst_6 : f32 to vector<32x256xf32>
    %9 = arith.mulf %8, %5 : vector<32x256xf32>
    %10 = arith.select %7, %5, %9 : vector<32x256xi1>, vector<32x256xf32>
    %11 = arith.truncf %10 : vector<32x256xf32> to vector<32x256xbf16>
    %c0_7 = arith.constant 0 : index
    %c0_8 = arith.constant 0 : index
    %12 = vector.load %arg4[%c0_7, %c0_8] : memref<32x256xbf16, #tpu.memory_space<vmem>>, vector<32x256xbf16>
    tpu.vector_store %arg4[%c0_7, %c0_8], %11 {strides = array<i32>} : memref<32x256xbf16, #tpu.memory_space<vmem>>, vector<32x256xbf16>,
    return
  }
  func.func @transform_0(%arg0: i32) -> (i32, i32) {
    %c0_i32 = arith.constant 0 : i32
    %c0_i32_0 = arith.constant 0 : i32
    %c0_i32_1 = arith.constant 0 : i32
    return %c0_i32, %c0_i32_0 : i32, i32
  }
  func.func @transform_1(%arg0: i32) -> (i32, i32) {
    %c0_i32 = arith.constant 0 : i32
    %c0_i32_0 = arith.constant 0 : i32
    return %c0_i32, %arg0 : i32, i32
  }
  func.func @transform_2(%arg0: i32) -> (i32, i32) {
    %c0_i32 = arith.constant 0 : i32
    %c0_i32_0 = arith.constant 0 : i32
    %c0_i32_1 = arith.constant 0 : i32
    return %c0_i32, %c0_i32_0 : i32, i32
  }
  func.func @transform_3(%arg0: i32) -> (i32, i32) {
    %c0_i32 = arith.constant 0 : i32
    %c0_i32_0 = arith.constant 0 : i32
    return %c0_i32, %arg0 : i32, i32
  }
}

module attributes {stable_mosaic.version = 11 : i64} {
  func.func @_conv_bn_lrelu_kernel(%arg0: i32, %arg1: memref<64x512xbf16, #tpu.memory_space<vmem>>, %arg2: memref<512x128xbf16, #tpu.memory_space<vmem>>, %arg3: memref<64x1xf32, #tpu.memory_space<vmem>>, %arg4: memref<64x128xbf16, #tpu.memory_space<vmem>>) attributes {dimension_semantics = [#tpu.dimension_semantics<parallel>], iteration_bounds = array<i64: 1>, scalar_prefetch = 0 : i64, scratch_operands = 0 : i64, tpu.core_type = #tpu.core_type<tc>, window_params = [{pipeline_mode = #tpu.pipeline_mode<synchronous>, transform_indices = @transform_0, window_bounds = array<i64: 64, 512>}, {transform_indices = @transform_1, window_bounds = array<i64: 512, 128>}, {pipeline_mode = #tpu.pipeline_mode<synchronous>, transform_indices = @transform_2, window_bounds = array<i64: 64, 1>}, {transform_indices = @transform_3, window_bounds = array<i64: 64, 128>}]} {
    %c0 = arith.constant 0 : index
    %c0_0 = arith.constant 0 : index
    %0 = vector.load %arg1[%c0, %c0_0] : memref<64x512xbf16, #tpu.memory_space<vmem>>, vector<64x512xbf16>
    %c0_1 = arith.constant 0 : index
    %c0_2 = arith.constant 0 : index
    %1 = vector.load %arg2[%c0_1, %c0_2] : memref<512x128xbf16, #tpu.memory_space<vmem>>, vector<512x128xbf16>
    %cst = arith.constant dense<0.000000e+00> : vector<64x128xf32>
    %2 = tpu.matmul %0, %1, %cst {dimension_numbers = #tpu.dot_dimension_numbers<[1], [0], [0], [1], [0, 0, 1, 1], [], []>} : vector<64x512xbf16>, vector<512x128xbf16>, vector<64x128xf32> -> vector<64x128xf32>
    %c0_3 = arith.constant 0 : index
    %c0_4 = arith.constant 0 : index
    %3 = vector.load %arg3[%c0_3, %c0_4] : memref<64x1xf32, #tpu.memory_space<vmem>>, vector<64x1xf32>
    %4 = vector.broadcast %3 : vector<64x1xf32> to vector<64x128xf32>
    %5 = arith.addf %2, %4 : vector<64x128xf32>
    %cst_5 = arith.constant 0.000000e+00 : f32
    %6 = vector.broadcast %cst_5 : f32 to vector<64x128xf32>
    %7 = arith.cmpf ogt, %5, %6 : vector<64x128xf32>
    %cst_6 = arith.constant 2.000000e-01 : f32
    %8 = vector.broadcast %cst_6 : f32 to vector<64x128xf32>
    %9 = arith.mulf %8, %5 : vector<64x128xf32>
    %10 = arith.select %7, %5, %9 : vector<64x128xi1>, vector<64x128xf32>
    %11 = arith.truncf %10 : vector<64x128xf32> to vector<64x128xbf16>
    %c0_7 = arith.constant 0 : index
    %c0_8 = arith.constant 0 : index
    %12 = vector.load %arg4[%c0_7, %c0_8] : memref<64x128xbf16, #tpu.memory_space<vmem>>, vector<64x128xbf16>
    tpu.vector_store %arg4[%c0_7, %c0_8], %11 {strides = array<i32>} : memref<64x128xbf16, #tpu.memory_space<vmem>>, vector<64x128xbf16>,
    return
  }
  func.func @transform_0(%arg0: i32) -> (i32, i32) {
    %c0_i32 = arith.constant 0 : i32
    %c0_i32_0 = arith.constant 0 : i32
    %c0_i32_1 = arith.constant 0 : i32
    return %c0_i32, %c0_i32_0 : i32, i32
  }
  func.func @transform_1(%arg0: i32) -> (i32, i32) {
    %c0_i32 = arith.constant 0 : i32
    %c0_i32_0 = arith.constant 0 : i32
    return %c0_i32, %arg0 : i32, i32
  }
  func.func @transform_2(%arg0: i32) -> (i32, i32) {
    %c0_i32 = arith.constant 0 : i32
    %c0_i32_0 = arith.constant 0 : i32
    %c0_i32_1 = arith.constant 0 : i32
    return %c0_i32, %c0_i32_0 : i32, i32
  }
  func.func @transform_3(%arg0: i32) -> (i32, i32) {
    %c0_i32 = arith.constant 0 : i32
    %c0_i32_0 = arith.constant 0 : i32
    return %c0_i32, %arg0 : i32, i32
  }
}

module attributes {stable_mosaic.version = 11 : i64} {
  func.func @_conv_bn_lrelu_kernel(%arg0: i32, %arg1: memref<128x1024xbf16, #tpu.memory_space<vmem>>, %arg2: memref<1024x32xbf16, #tpu.memory_space<vmem>>, %arg3: memref<128x1xf32, #tpu.memory_space<vmem>>, %arg4: memref<128x32xbf16, #tpu.memory_space<vmem>>) attributes {dimension_semantics = [#tpu.dimension_semantics<parallel>], iteration_bounds = array<i64: 1>, scalar_prefetch = 0 : i64, scratch_operands = 0 : i64, tpu.core_type = #tpu.core_type<tc>, window_params = [{pipeline_mode = #tpu.pipeline_mode<synchronous>, transform_indices = @transform_0, window_bounds = array<i64: 128, 1024>}, {transform_indices = @transform_1, window_bounds = array<i64: 1024, 32>}, {pipeline_mode = #tpu.pipeline_mode<synchronous>, transform_indices = @transform_2, window_bounds = array<i64: 128, 1>}, {transform_indices = @transform_3, window_bounds = array<i64: 128, 32>}]} {
    %c0 = arith.constant 0 : index
    %c0_0 = arith.constant 0 : index
    %0 = vector.load %arg1[%c0, %c0_0] : memref<128x1024xbf16, #tpu.memory_space<vmem>>, vector<128x1024xbf16>
    %c0_1 = arith.constant 0 : index
    %c0_2 = arith.constant 0 : index
    %1 = vector.load %arg2[%c0_1, %c0_2] : memref<1024x32xbf16, #tpu.memory_space<vmem>>, vector<1024x32xbf16>
    %cst = arith.constant dense<0.000000e+00> : vector<128x32xf32>
    %2 = tpu.matmul %0, %1, %cst {dimension_numbers = #tpu.dot_dimension_numbers<[1], [0], [0], [1], [0, 0, 1, 1], [], []>} : vector<128x1024xbf16>, vector<1024x32xbf16>, vector<128x32xf32> -> vector<128x32xf32>
    %c0_3 = arith.constant 0 : index
    %c0_4 = arith.constant 0 : index
    %3 = vector.load %arg3[%c0_3, %c0_4] : memref<128x1xf32, #tpu.memory_space<vmem>>, vector<128x1xf32>
    %4 = vector.broadcast %3 : vector<128x1xf32> to vector<128x32xf32>
    %5 = arith.addf %2, %4 : vector<128x32xf32>
    %cst_5 = arith.constant 0.000000e+00 : f32
    %6 = vector.broadcast %cst_5 : f32 to vector<128x32xf32>
    %7 = arith.cmpf ogt, %5, %6 : vector<128x32xf32>
    %cst_6 = arith.constant 2.000000e-01 : f32
    %8 = vector.broadcast %cst_6 : f32 to vector<128x32xf32>
    %9 = arith.mulf %8, %5 : vector<128x32xf32>
    %10 = arith.select %7, %5, %9 : vector<128x32xi1>, vector<128x32xf32>
    %11 = arith.truncf %10 : vector<128x32xf32> to vector<128x32xbf16>
    %c0_7 = arith.constant 0 : index
    %c0_8 = arith.constant 0 : index
    %12 = vector.load %arg4[%c0_7, %c0_8] : memref<128x32xbf16, #tpu.memory_space<vmem>>, vector<128x32xbf16>
    tpu.vector_store %arg4[%c0_7, %c0_8], %11 {strides = array<i32>} : memref<128x32xbf16, #tpu.memory_space<vmem>>, vector<128x32xbf16>,
    return
  }
  func.func @transform_0(%arg0: i32) -> (i32, i32) {
    %c0_i32 = arith.constant 0 : i32
    %c0_i32_0 = arith.constant 0 : i32
    %c0_i32_1 = arith.constant 0 : i32
    return %c0_i32, %c0_i32_0 : i32, i32
  }
  func.func @transform_1(%arg0: i32) -> (i32, i32) {
    %c0_i32 = arith.constant 0 : i32
    %c0_i32_0 = arith.constant 0 : i32
    return %c0_i32, %arg0 : i32, i32
  }
  func.func @transform_2(%arg0: i32) -> (i32, i32) {
    %c0_i32 = arith.constant 0 : i32
    %c0_i32_0 = arith.constant 0 : i32
    %c0_i32_1 = arith.constant 0 : i32
    return %c0_i32, %c0_i32_0 : i32, i32
  }
  func.func @transform_3(%arg0: i32) -> (i32, i32) {
    %c0_i32 = arith.constant 0 : i32
    %c0_i32_0 = arith.constant 0 : i32
    return %c0_i32, %arg0 : i32, i32
  }
}

</mosaic_0001>

<llo_original>
// kernel: discriminator_forward.6
$region0: #{discriminator_forward.6}
  #allocation0 [shape = 'u32[]', space=smem, size = 0x4, offset = 0x4, fixed_abs, tag = 'smem constant byte address 0x4 - core index']
  #allocation1 [shape = 'u32[144,128]{1,0:T(1,128)}', space=vmem, size = 0x12000, scoped, tag = 'internal scratch']
  %s0 = inlined_call_operand.vmem [shape: bf16[4,32], index: 0, kind: input, shape index: {}]
  %s1 = inlined_call_operand.vmem [shape: bf16[32,32768], index: 1, kind: input, shape index: {}]
  %s2 = inlined_call_operand.vmem [shape: f32[4,1], index: 2, kind: input, shape index: {}]
  %s3 = inlined_call_operand.vmem [shape: bf16[4,32768], index: 3, kind: output, shape index: {}]
  %s4 = sld [smem:[#allocation0]]
  $region68: #{discriminator_forward.6} parent=0
    _
  %s6 = ssub.s32 1, %s4
  %s7 = scalar_select 0, %s6, %s4
  $region1: #{discriminator_forward.6} parent=0
    #allocation2 [shape = 'u8[262144]{0}', space=vmem, size = 0x40000, scoped, tag = 'input window, operand 1']
    loop: start=0, step=1, limit=18
    $region2: #{discriminator_forward.6} parent=1 // loop_pre_header
      _
    $region3: #{discriminator_forward.6} parent=1 // loop_header
      %s9 = sphi 0, %s13
      %p10 = scmp.ge.s32.totalorder %s9, 18
      %s17 = sphi 0, %s17
      %s19 = sphi 0, %s17
      %s20 = sphi 0, %s19
      %s34 = sphi 0, %s20
      %s40 = sphi 0, %s42
      %s43 = sphi 0, %s40
      %s44 = sphi 0, %s43
      %s60 = sphi 0, %s44
      %s64 = sphi 0, %s64
      %s66 = sphi 0, %s64
      %s67 = sphi 0, %s66
      %s81 = sphi 0, %s67
      %s87 = sphi 0, %s89
      %s90 = sphi 0, %s87
      %s91 = sphi 0, %s90
      %s107 = sphi 0, %s91
    $region4: #{discriminator_forward.6} parent=1 // loop_header_branch
      %12 = sbr.rel (%p10) target = $region8
    $region5: #{discriminator_forward.6} parent=1 // loop_body
      %s14 = ssub.s32 %s9, 1
      %s15 = ssub.s32 %s9, 2
      %s16 = sadd.s32 %s9, 1
      %s18 = sadd.s32 %s17, 1
      %p21 = scmp.eq.s32.totalorder %s9, 15
      %p22 = scmp.ne.s32.totalorder %s17, %s19
      %p23 = scmp.eq.s32.totalorder %s9, 0
      %p24 = por %p22, %p23
      %p25 = scmp.ne.s32.totalorder %s17, %s19
      %p26 = scmp.eq.s32.totalorder %s14, 15
      %p27 = por %p25, %p26
      %p28 = scmp.ne.s32.totalorder %s19, %s20
      %p29 = scmp.eq.s32.totalorder %s14, 0
      %p30 = por %p28, %p29
      %p31 = scmp.ne.s32.totalorder %s19, %s20
      %p32 = scmp.eq.s32.totalorder %s15, 15
      %p33 = por %p31, %p32
      %p35 = scmp.ne.s32.totalorder %s20, %s34
      %p36 = scmp.eq.s32.totalorder %s15, 0
      %p37 = por %p35, %p36
      %s38 = ssub.s32 %s9, %s16
      %p39 = scmp.eq.s32.totalorder %s38, 0
      %s41 = sadd.s32 %s40, 1
      %s42 = scalar_select %p39, %s40, %s41
      %p45 = pneg %p39
      %p46 = scmp.eq.s32.totalorder %s9, 15
      %p47 = por %p45, %p46
      %p48 = scmp.ne.s32.totalorder %s40, %s43
      %p49 = scmp.eq.s32.totalorder %s9, 0
      %p50 = por %p48, %p49
      %p51 = scmp.ne.s32.totalorder %s40, %s43
      %p52 = scmp.eq.s32.totalorder %s14, 15
      %p53 = por %p51, %p52
      %p54 = scmp.ne.s32.totalorder %s43, %s44
      %p55 = scmp.eq.s32.totalorder %s14, 0
      %p56 = por %p54, %p55
      %p57 = scmp.ne.s32.totalorder %s43, %s44
      %p58 = scmp.eq.s32.totalorder %s15, 15
      %p59 = por %p57, %p58
      %p61 = scmp.ne.s32.totalorder %s44, %s60
      %p62 = scmp.eq.s32.totalorder %s15, 0
      %p63 = por %p61, %p62
      %s65 = sadd.s32 %s64, 1
      %p68 = scmp.eq.s32.totalorder %s9, 15
      %p69 = scmp.ne.s32.totalorder %s64, %s66
      %p70 = scmp.eq.s32.totalorder %s9, 0
      %p71 = por %p69, %p70
      %p72 = scmp.ne.s32.totalorder %s64, %s66
      %p73 = scmp.eq.s32.totalorder %s14, 15
      %p74 = por %p72, %p73
      %p75 = scmp.ne.s32.totalorder %s66, %s67
      %p76 = scmp.eq.s32.totalorder %s14, 0
      %p77 = por %p75, %p76
      %p78 = scmp.ne.s32.totalorder %s66, %s67
      %p79 = scmp.eq.s32.totalorder %s15, 15
      %p80 = por %p78, %p79
      %p82 = scmp.ne.s32.totalorder %s67, %s81
      %p83 = scmp.eq.s32.totalorder %s15, 0
      %p84 = por %p82, %p83
      %s85 = ssub.s32 %s9, %s16
      %p86 = scmp.eq.s32.totalorder %s85, 0
      %s88 = sadd.s32 %s87, 1
      %s89 = scalar_select %p86, %s87, %s88
      %p92 = pneg %p86
      %p93 = scmp.eq.s32.totalorder %s9, 15
      %p94 = por %p92, %p93
      %p95 = scmp.ne.s32.totalorder %s87, %s90
      %p96 = scmp.eq.s32.totalorder %s9, 0
      %p97 = por %p95, %p96
      %p98 = scmp.ne.s32.totalorder %s87, %s90
      %p99 = scmp.eq.s32.totalorder %s14, 15
      %p100 = por %p98, %p99
      %p101 = scmp.ne.s32.totalorder %s90, %s91
      %p102 = scmp.eq.s32.totalorder %s14, 0
      %p103 = por %p101, %p102
      %p104 = scmp.ne.s32.totalorder %s90, %s91
      %p105 = scmp.eq.s32.totalorder %s15, 15
      %p106 = por %p104, %p105
      %p108 = scmp.ne.s32.totalorder %s91, %s107
      %p109 = scmp.eq.s32.totalorder %s15, 0
      %p110 = por %p108, %p109
      %p111 = scmp.le.s32.totalorder 1, %s9
      %p112 = scmp.lt.s32.totalorder %s9, 17
      %p113 = pnand %p111, %p112
      %p114 = pneg %p113
      // Predicated region
      $region9: #{discriminator_forward.6} parent=5 // pred_check
        _
      $region10: #{discriminator_forward.6} parent=5 // pred_check_branch
        %116 = sbr.rel (%p113) target = $region12
      $region11: #{discriminator_forward.6} parent=5 // pred_region
        %s117 = ssub.s32 %s9, 1
        // Predicated region
        $region13: #{discriminator_forward.6} parent=11 // pred_check
          %p118 = pneg %p30
        $region14: #{discriminator_forward.6} parent=11 // pred_check_branch
          %120 = sbr.rel (%p118) target = $region16
        $region15: #{discriminator_forward.6} parent=11 // pred_region
          _
        $region16: #{discriminator_forward.6} parent=11 // pred_fallthru
          _
        // Predicated region
        $region17: #{discriminator_forward.6} parent=11 // pred_check
          %p121 = pneg %p77
        $region18: #{discriminator_forward.6} parent=11 // pred_check_branch
          %123 = sbr.rel (%p121) target = $region20
        $region19: #{discriminator_forward.6} parent=11 // pred_region
          _
        $region20: #{discriminator_forward.6} parent=11 // pred_fallthru
          _
      $region12: #{discriminator_forward.6} parent=5 // pred_fallthru
        _
      %p124 = scmp.lt.s32.totalorder %s9, 16
      // Predicated region
      $region21: #{discriminator_forward.6} parent=5 // pred_check
        %p125 = pneg %p124
      $region22: #{discriminator_forward.6} parent=5 // pred_check_branch
        %127 = sbr.rel (%p125) target = $region24
      $region23: #{discriminator_forward.6} parent=5 // pred_region
        // Predicated region
        $region25: #{discriminator_forward.6} parent=23 // pred_check
          %p128 = pneg %p50
        $region26: #{discriminator_forward.6} parent=23 // pred_check_branch
          %130 = sbr.rel (%p128) target = $region28
        $region27: #{discriminator_forward.6} parent=23 // pred_region
          %s131 = sand.u32 %s40, 1
          %s132 = sand.u32 %s40, 1
          %s133 = smul.addr %s132, 256
          %s134 = scalar_lea.vmem [#allocation2], %s133
          %s135 = smul.u32 16, %s9
          %s136 = smul.addr %s135, 4
          %s137 = scalar_lea.vmem %s1, %s136
          // Predicated region
          $region29: #{discriminator_forward.6} parent=27 // pred_check
            _
          $region30: #{discriminator_forward.6} parent=27 // pred_check_branch
            %139 = sbr.rel (0) target = $region32
          $region31: #{discriminator_forward.6} parent=27 // pred_region
            // Predicated region
            $region33: #{discriminator_forward.6} parent=31 // pred_check
              _
            $region34: #{discriminator_forward.6} parent=31 // pred_check_branch
              %141 = sbr.rel (0) target = $region36
            $region35: #{discriminator_forward.6} parent=31 // pred_region
              loop: start=0, step=1, limit=1
              $region37: #{discriminator_forward.6} parent=35 // loop_pre_header
                _
              $region38: #{discriminator_forward.6} parent=35 // loop_header
                %s143 = sphi 0, %s147
                %p144 = scmp.ge.s32.totalorder %s143, 1
                %s148 = sphi %s137, %s137
                %s149 = sphi %s134, %s134
              $region39: #{discriminator_forward.6} parent=35 // loop_header_branch
                %146 = sbr.rel (%p144) target = $region43
              $region40: #{discriminator_forward.6} parent=35 // loop_body
                %v150 = vld [vmem:[%s148] sm:$0xff]
                %151 = vst [vmem:[%s149] sm:$0xff] %v150
                %v152 = vld [vmem:[%s148 + $0x8] sm:$0xff]
                %153 = vst [vmem:[%s149 + $0x8] sm:$0xff] %v152
                %v154 = vld [vmem:[%s148 + $0x10] sm:$0xff]
                %155 = vst [vmem:[%s149 + $0x10] sm:$0xff] %v154
                %v156 = vld [vmem:[%s148 + $0x18] sm:$0xff]
                %157 = vst [vmem:[%s149 + $0x18] sm:$0xff] %v156
                %v158 = vld [vmem:[%s148 + $0x20] sm:$0xff]
                %159 = vst [vmem:[%s149 + $0x20] sm:$0xff] %v158
                %v160 = vld [vmem:[%s148 + $0x28] sm:$0xff]
                %161 = vst [vmem:[%s149 + $0x28] sm:$0xff] %v160
                %v162 = vld [vmem:[%s148 + $0x30] sm:$0xff]
                %163 = vst [vmem:[%s149 + $0x30] sm:$0xff] %v162
                %v164 = vld [vmem:[%s148 + $0x38] sm:$0xff]
                %165 = vst [vmem:[%s149 + $0x38] sm:$0xff] %v164
                %v166 = vld [vmem:[%s148 + $0x400] sm:$0xff]
                %167 = vst [vmem:[%s149 + $0x40] sm:$0xff] %v166
                %v168 = vld [vmem:[%s148 + $0x408] sm:$0xff]
                %169 = vst [vmem:[%s149 + $0x48] sm:$0xff] %v168
                %v170 = vld [vmem:[%s148 + $0x410] sm:$0xff]
                %171 = vst [vmem:[%s149 + $0x50] sm:$0xff] %v170
                %v172 = vld [vmem:[%s148 + $0x418] sm:$0xff]
                %173 = vst [vmem:[%s149 + $0x58] sm:$0xff] %v172
                %v174 = vld [vmem:[%s148 + $0x420] sm:$0xff]
                %175 = vst [vmem:[%s149 + $0x60] sm:$0xff] %v174
                %v176 = vld [vmem:[%s148 + $0x428] sm:$0xff]
                %177 = vst [vmem:[%s149 + $0x68] sm:$0xff] %v176
                %v178 = vld [vmem:[%s148 + $0x430] sm:$0xff]
                %179 = vst [vmem:[%s149 + $0x70] sm:$0xff] %v178
                %v180 = vld [vmem:[%s148 + $0x438] sm:$0xff]
                %181 = vst [vmem:[%s149 + $0x78] sm:$0xff] %v180
                %v182 = vld [vmem:[%s148 + $0x800] sm:$0xff]
                %183 = vst [vmem:[%s149 + $0x80] sm:$0xff] %v182
                %v184 = vld [vmem:[%s148 + $0x808] sm:$0xff]
                %185 = vst [vmem:[%s149 + $0x88] sm:$0xff] %v184
                %v186 = vld [vmem:[%s148 + $0x810] sm:$0xff]
                %187 = vst [vmem:[%s149 + $0x90] sm:$0xff] %v186
                %v188 = vld [vmem:[%s148 + $0x818] sm:$0xff]
                %189 = vst [vmem:[%s149 + $0x98] sm:$0xff] %v188
                %v190 = vld [vmem:[%s148 + $0x820] sm:$0xff]
                %191 = vst [vmem:[%s149 + $0xa0] sm:$0xff] %v190
                %v192 = vld [vmem:[%s148 + $0x828] sm:$0xff]
                %193 = vst [vmem:[%s149 + $0xa8] sm:$0xff] %v192
                %v194 = vld [vmem:[%s148 + $0x830] sm:$0xff]
                %195 = vst [vmem:[%s149 + $0xb0] sm:$0xff] %v194
                %v196 = vld [vmem:[%s148 + $0x838] sm:$0xff]
                %197 = vst [vmem:[%s149 + $0xb8] sm:$0xff] %v196
                %v198 = vld [vmem:[%s148 + $0xc00] sm:$0xff]
                %199 = vst [vmem:[%s149 + $0xc0] sm:$0xff] %v198
                %v200 = vld [vmem:[%s148 + $0xc08] sm:$0xff]
                %201 = vst [vmem:[%s149 + $0xc8] sm:$0xff] %v200
                %v202 = vld [vmem:[%s148 + $0xc10] sm:$0xff]
                %203 = vst [vmem:[%s149 + $0xd0] sm:$0xff] %v202
                %v204 = vld [vmem:[%s148 + $0xc18] sm:$0xff]
                %205 = vst [vmem:[%s149 + $0xd8] sm:$0xff] %v204
                %v206 = vld [vmem:[%s148 + $0xc20] sm:$0xff]
                %207 = vst [vmem:[%s149 + $0xe0] sm:$0xff] %v206
                %v208 = vld [vmem:[%s148 + $0xc28] sm:$0xff]
                %209 = vst [vmem:[%s149 + $0xe8] sm:$0xff] %v208
                %v210 = vld [vmem:[%s148 + $0xc30] sm:$0xff]
                %211 = vst [vmem:[%s149 + $0xf0] sm:$0xff] %v210
                %v212 = vld [vmem:[%s148 + $0xc38] sm:$0xff]
                %213 = vst [vmem:[%s149 + $0xf8] sm:$0xff] %v212
              $region41: #{discriminator_forward.6} parent=35 // loop_footer
                %s147 = sadd.s32 1, %s143
              $region42: #{discriminator_forward.6} parent=35 // loop_footer_branch
                %142 = sbr.rel target = $region38
              $region43: #{discriminator_forward.6} parent=35 // loop_exit
                _
            $region36: #{discriminator_forward.6} parent=31 // pred_fallthru
              _
            // Predicated region
            $region44: #{discriminator_forward.6} parent=31 // pred_check
              _
            $region45: #{discriminator_forward.6} parent=31 // pred_check_branch
              %215 = sbr.rel target = $region47
            $region46: #{discriminator_forward.6} parent=31 // pred_region
              _
            $region47: #{discriminator_forward.6} parent=31 // pred_fallthru
              _
          $region32: #{discriminator_forward.6} parent=27 // pred_fallthru
            _
          %216 = vnop
        $region28: #{discriminator_forward.6} parent=23 // pred_fallthru
          _
      $region24: #{discriminator_forward.6} parent=5 // pred_fallthru
        _
      %p217 = scmp.le.s32.totalorder 1, %s9
      %p218 = scmp.lt.s32.totalorder %s9, 17
      %p219 = pnand %p217, %p218
      %p220 = pneg %p219
      // Predicated region
      $region48: #{discriminator_forward.6} parent=5 // pred_check
        _
      $region49: #{discriminator_forward.6} parent=5 // pred_check_branch
        %222 = sbr.rel (%p219) target = $region51
      $region50: #{discriminator_forward.6} parent=5 // pred_region
        %s223 = ssub.s32 %s9, 1
        %s224 = sand.u32 %s43, 1
        %s225 = sand.u32 %s43, 1
        %s226 = smul.addr %s225, 256
        %s227 = scalar_lea.vmem [#allocation2], %s226
        // Predicated region
        $region52: #{discriminator_forward.6} parent=50 // pred_check
          %p228 = pneg %p56
        $region53: #{discriminator_forward.6} parent=50 // pred_check_branch
          %230 = sbr.rel (%p228) target = $region55
        $region54: #{discriminator_forward.6} parent=50 // pred_region
          _
        $region55: #{discriminator_forward.6} parent=50 // pred_fallthru
          _
        %p231 = pneg %p30
        %p232 = pneg %p27
        %s233 = sand.u32 %s43, 1
        %s234 = sand.u32 %s43, 1
        %s235 = smul.addr %s234, 256
        %s236 = scalar_lea.vmem [#allocation2], %s235
        %p237 = pneg %p56
        %p238 = pneg %p53
        %p239 = pneg %p77
        %p240 = pneg %p74
        %p241 = pneg %p103
        %p242 = pneg %p100
        %s243 = smul.u32 16, %s14
        %p244 = scmp.lt.s32.totalorder %s243, 255
        %s245 = scalar_select %p244, %s243, 255
        %s246 = smul.addr %s245, 2
        %s247 = scalar_lea.vmem %s3, %s246
        %s248 = smul.u32 16, %s14
        %s249 = smul.u32 16, %s14
        %p250 = scmp.lt.s32.totalorder %s249, 255
        %s251 = scalar_select %p250, %s249, 255
        %s252 = smul.addr %s251, 2
        %s253 = scalar_lea.vmem %s3, %s252
        %s254 = smul.u32 16, %s14
        %v256 = vld [vmem:[%s0] sm:$0x3]
        %v257 = vld [vmem:[%s227] sm:$0xff]
        %v258 = vld [vmem:[%s227 + $0x8] sm:$0xff]
        %v259 = vld [vmem:[%s227 + $0x10] sm:$0xff]
        %v260 = vld [vmem:[%s227 + $0x18] sm:$0xff]
        %v261 = vld [vmem:[%s227 + $0x20] sm:$0xff]
        %v262 = vld [vmem:[%s227 + $0x28] sm:$0xff]
        %v263 = vld [vmem:[%s227 + $0x30] sm:$0xff]
        %v264 = vld [vmem:[%s227 + $0x38] sm:$0xff]
        %v265 = vld [vmem:[%s227 + $0x40] sm:$0xff]
        %v266 = vld [vmem:[%s227 + $0x48] sm:$0xff]
        %v267 = vld [vmem:[%s227 + $0x50] sm:$0xff]
        %v268 = vld [vmem:[%s227 + $0x58] sm:$0xff]
        %v269 = vld [vmem:[%s227 + $0x60] sm:$0xff]
        %v270 = vld [vmem:[%s227 + $0x68] sm:$0xff]
        %v271 = vld [vmem:[%s227 + $0x70] sm:$0xff]
        %v272 = vld [vmem:[%s227 + $0x78] sm:$0xff]
        %v273 = vld [vmem:[%s227 + $0x80] sm:$0xff]
        %v274 = vld [vmem:[%s227 + $0x88] sm:$0xff]
        %v275 = vld [vmem:[%s227 + $0x90] sm:$0xff]
        %v276 = vld [vmem:[%s227 + $0x98] sm:$0xff]
        %v277 = vld [vmem:[%s227 + $0xa0] sm:$0xff]
        %v278 = vld [vmem:[%s227 + $0xa8] sm:$0xff]
        %v279 = vld [vmem:[%s227 + $0xb0] sm:$0xff]
        %v280 = vld [vmem:[%s227 + $0xb8] sm:$0xff]
        %v281 = vld [vmem:[%s227 + $0xc0] sm:$0xff]
        %v282 = vld [vmem:[%s227 + $0xc8] sm:$0xff]
        %v283 = vld [vmem:[%s227 + $0xd0] sm:$0xff]
        %v284 = vld [vmem:[%s227 + $0xd8] sm:$0xff]
        %v285 = vld [vmem:[%s227 + $0xe0] sm:$0xff]
        %v286 = vld [vmem:[%s227 + $0xe8] sm:$0xff]
        %v287 = vld [vmem:[%s227 + $0xf0] sm:$0xff]
        %v288 = vld [vmem:[%s227 + $0xf8] sm:$0xff]
        %v289 = vld [vmem:[%s2] sm:$0xf]
        %291 = vset.pattern.permute.xlu0 0
        %292 = vperm.xlu0 %291, %v289
        %v293 = vpop.permute.xlu0 %292
        %v327 = vunpack.c.l.b16 %v257
        %v328 = vunpack.c.h.b16 %v257
        %v329 = vunpack.c.l.b16 %v258
        %v330 = vunpack.c.h.b16 %v258
        %v331 = vunpack.c.l.b16 %v259
        %v332 = vunpack.c.h.b16 %v259
        %v333 = vunpack.c.l.b16 %v260
        %v334 = vunpack.c.h.b16 %v260
        %v335 = vunpack.c.l.b16 %v261
        %v336 = vunpack.c.h.b16 %v261
        %v337 = vunpack.c.l.b16 %v262
        %v338 = vunpack.c.h.b16 %v262
        %v339 = vunpack.c.l.b16 %v263
        %v340 = vunpack.c.h.b16 %v263
        %v341 = vunpack.c.l.b16 %v264
        %v342 = vunpack.c.h.b16 %v264
        %v343 = vunpack.c.l.b16 %v265
        %v344 = vunpack.c.h.b16 %v265
        %v345 = vunpack.c.l.b16 %v266
        %v346 = vunpack.c.h.b16 %v266
        %v347 = vunpack.c.l.b16 %v267
        %v348 = vunpack.c.h.b16 %v267
        %v349 = vunpack.c.l.b16 %v268
        %v350 = vunpack.c.h.b16 %v268
        %v351 = vunpack.c.l.b16 %v269
        %v352 = vunpack.c.h.b16 %v269
        %v353 = vunpack.c.l.b16 %v270
        %v354 = vunpack.c.h.b16 %v270
        %v355 = vunpack.c.l.b16 %v271
        %v356 = vunpack.c.h.b16 %v271
        %v357 = vunpack.c.l.b16 %v272
        %v358 = vunpack.c.h.b16 %v272
        %v359 = vunpack.c.l.b16 %v273
        %v360 = vunpack.c.h.b16 %v273
        %v361 = vunpack.c.l.b16 %v274
        %v362 = vunpack.c.h.b16 %v274
        %v363 = vunpack.c.l.b16 %v275
        %v364 = vunpack.c.h.b16 %v275
        %v365 = vunpack.c.l.b16 %v276
        %v366 = vunpack.c.h.b16 %v276
        %v367 = vunpack.c.l.b16 %v277
        %v368 = vunpack.c.h.b16 %v277
        %v369 = vunpack.c.l.b16 %v278
        %v370 = vunpack.c.h.b16 %v278
        %v371 = vunpack.c.l.b16 %v279
        %v372 = vunpack.c.h.b16 %v279
        %v373 = vunpack.c.l.b16 %v280
        %v374 = vunpack.c.h.b16 %v280
        %v375 = vunpack.c.l.b16 %v281
        %v376 = vunpack.c.h.b16 %v281
        %v377 = vunpack.c.l.b16 %v282
        %v378 = vunpack.c.h.b16 %v282
        %v379 = vunpack.c.l.b16 %v283
        %v380 = vunpack.c.h.b16 %v283
        %v381 = vunpack.c.l.b16 %v284
        %v382 = vunpack.c.h.b16 %v284
        %v383 = vunpack.c.l.b16 %v285
        %v384 = vunpack.c.h.b16 %v285
        %v385 = vunpack.c.l.b16 %v286
        %v386 = vunpack.c.h.b16 %v286
        %v387 = vunpack.c.l.b16 %v287
        %v388 = vunpack.c.h.b16 %v287
        %v389 = vunpack.c.l.b16 %v288
        %v390 = vunpack.c.h.b16 %v288
        %v391 = vpack.c.b16 %v343, %v327
        %v392 = vpack.c.b16 %v344, %v328
        %v393 = vpack.c.b16 %v345, %v329
        %v394 = vpack.c.b16 %v346, %v330
        %v395 = vpack.c.b16 %v347, %v331
        %v396 = vpack.c.b16 %v348, %v332
        %v397 = vpack.c.b16 %v349, %v333
        %v398 = vpack.c.b16 %v350, %v334
        %v399 = vpack.c.b16 %v351, %v335
        %v400 = vpack.c.b16 %v352, %v336
        %v401 = vpack.c.b16 %v353, %v337
        %v402 = vpack.c.b16 %v354, %v338
        %v403 = vpack.c.b16 %v355, %v339
        %v404 = vpack.c.b16 %v356, %v340
        %v405 = vpack.c.b16 %v357, %v341
        %v406 = vpack.c.b16 %v358, %v342
        %v407 = vpack.c.b16 %v375, %v359
        %v408 = vpack.c.b16 %v376, %v360
        %v409 = vpack.c.b16 %v377, %v361
        %v410 = vpack.c.b16 %v378, %v362
        %v411 = vpack.c.b16 %v379, %v363
        %v412 = vpack.c.b16 %v380, %v364
        %v413 = vpack.c.b16 %v381, %v365
        %v414 = vpack.c.b16 %v382, %v366
        %v415 = vpack.c.b16 %v383, %v367
        %v416 = vpack.c.b16 %v384, %v368
        %v417 = vpack.c.b16 %v385, %v369
        %v418 = vpack.c.b16 %v386, %v370
        %v419 = vpack.c.b16 %v387, %v371
        %v420 = vpack.c.b16 %v388, %v372
        %v421 = vpack.c.b16 %v389, %v373
        %v422 = vpack.c.b16 %v390, %v374
        %vm455 = vcmask 261120
        %v457 = vsel %vm455, %v256, 0
        %459 = vmatprep.subr.bf16.mxu0 0
        %460 = vmatpush1.bf16.msra.mxu0 0
        %461 = vmatprep.subr.bf16.mxu0 0
        %462 = vmatpush1.bf16.msra.mxu0 0
        %463 = vmatprep.subr.bf16.mxu0 0
        %464 = vmatpush1.bf16.msra.mxu0 0
        %465 = vmatprep.subr.bf16.mxu0 0
        %466 = vmatpush1.bf16.msra.mxu0 0
        %467 = vmatprep.subr.bf16.mxu0 0
        %468 = vmatpush1.bf16.msra.mxu0 0
        %469 = vmatprep.subr.bf16.mxu0 0
        %470 = vmatpush1.bf16.msra.mxu0 0
        %471 = vmatprep.subr.bf16.mxu0 %v408
        %472 = vmatpush1.bf16.msra.mxu0 %v407
        %473 = vmatprep.subr.bf16.mxu0 %v392
        %474 = vmatpush1.bf16.msra.mxu0 %v391
        %475 = vmatprep.subr.bf16.mxu0 0
        %476 = vmatpush2.bf16.msra.mxu0 0
        %477 = vmatprep.subr.bf16.mxu0 0
        %478 = vmatpush2.bf16.msra.mxu0 0
        %479 = vmatprep.subr.bf16.mxu0 0
        %480 = vmatpush2.bf16.msra.mxu0 0
        %481 = vmatprep.subr.bf16.mxu0 0
        %482 = vmatpush2.bf16.msra.mxu0 0
        %483 = vmatprep.subr.bf16.mxu0 0
        %484 = vmatpush2.bf16.msra.mxu0 0
        %485 = vmatprep.subr.bf16.mxu0 0
        %486 = vmatpush2.bf16.msra.mxu0 0
        %487 = vmatprep.subr.bf16.mxu0 0
        %488 = vmatpush2.bf16.msra.mxu0 0
        %489 = vmatprep.subr.bf16.mxu0 0
        %490 = vmatpush2.bf16.msra.mxu0 0
        %491 = vmatprep.mubr.bf16.mxu0 0
        %492 = vmatmul.mubr.bf16.gmra.mxu0 %v457
        %v493 = vpop.f32.mrf.mxu0
        %v494 = vadd.f32 %v293, %v493
        %v495 = vpop.f32.mrf.mxu0
        %v496 = vadd.f32 %v293, %v495
        %v497 = vpop.f32.mrf.mxu0
        %v498 = vpop.f32.mrf.mxu0
        %499 = vdwg.mxu0
        %500 = vmatprep.subr.bf16.mxu0 0
        %501 = vmatpush1.bf16.msra.mxu0 0
        %502 = vmatprep.subr.bf16.mxu0 0
        %503 = vmatpush1.bf16.msra.mxu0 0
        %504 = vmatprep.subr.bf16.mxu0 0
        %505 = vmatpush1.bf16.msra.mxu0 0
        %506 = vmatprep.subr.bf16.mxu0 0
        %507 = vmatpush1.bf16.msra.mxu0 0
        %508 = vmatprep.subr.bf16.mxu0 0
        %509 = vmatpush1.bf16.msra.mxu0 0
        %510 = vmatprep.subr.bf16.mxu0 0
        %511 = vmatpush1.bf16.msra.mxu0 0
        %512 = vmatprep.subr.bf16.mxu0 %v410
        %513 = vmatpush1.bf16.msra.mxu0 %v409
        %514 = vmatprep.subr.bf16.mxu0 %v394
        %515 = vmatpush1.bf16.msra.mxu0 %v393
        %516 = vmatprep.subr.bf16.mxu0 0
        %517 = vmatpush2.bf16.msra.mxu0 0
        %518 = vmatprep.subr.bf16.mxu0 0
        %519 = vmatpush2.bf16.msra.mxu0 0
        %520 = vmatprep.subr.bf16.mxu0 0
        %521 = vmatpush2.bf16.msra.mxu0 0
        %522 = vmatprep.subr.bf16.mxu0 0
        %523 = vmatpush2.bf16.msra.mxu0 0
        %524 = vmatprep.subr.bf16.mxu0 0
        %525 = vmatpush2.bf16.msra.mxu0 0
        %526 = vmatprep.subr.bf16.mxu0 0
        %527 = vmatpush2.bf16.msra.mxu0 0
        %528 = vmatprep.subr.bf16.mxu0 0
        %529 = vmatpush2.bf16.msra.mxu0 0
        %530 = vmatprep.subr.bf16.mxu0 0
        %531 = vmatpush2.bf16.msra.mxu0 0
        %532 = vmatprep.mubr.bf16.mxu0 0
        %533 = vmatmul.mubr.bf16.gmra.mxu0 %v457
        %v534 = vpop.f32.mrf.mxu0
        %v535 = vadd.f32 %v293, %v534
        %v536 = vpop.f32.mrf.mxu0
        %v537 = vadd.f32 %v293, %v536
        %v538 = vpop.f32.mrf.mxu0
        %v539 = vpop.f32.mrf.mxu0
        %540 = vdwg.mxu0
        %541 = vmatprep.subr.bf16.mxu0 0
        %542 = vmatpush1.bf16.msra.mxu0 0
        %543 = vmatprep.subr.bf16.mxu0 0
        %544 = vmatpush1.bf16.msra.mxu0 0
        %545 = vmatprep.subr.bf16.mxu0 0
        %546 = vmatpush1.bf16.msra.mxu0 0
        %547 = vmatprep.subr.bf16.mxu0 0
        %548 = vmatpush1.bf16.msra.mxu0 0
        %549 = vmatprep.subr.bf16.mxu0 0
        %550 = vmatpush1.bf16.msra.mxu0 0
        %551 = vmatprep.subr.bf16.mxu0 0
        %552 = vmatpush1.bf16.msra.mxu0 0
        %553 = vmatprep.subr.bf16.mxu0 %v412
        %554 = vmatpush1.bf16.msra.mxu0 %v411
        %555 = vmatprep.subr.bf16.mxu0 %v396
        %556 = vmatpush1.bf16.msra.mxu0 %v395
        %557 = vmatprep.subr.bf16.mxu0 0
        %558 = vmatpush2.bf16.msra.mxu0 0
        %559 = vmatprep.subr.bf16.mxu0 0
        %560 = vmatpush2.bf16.msra.mxu0 0
        %561 = vmatprep.subr.bf16.mxu0 0
        %562 = vmatpush2.bf16.msra.mxu0 0
        %563 = vmatprep.subr.bf16.mxu0 0
        %564 = vmatpush2.bf16.msra.mxu0 0
        %565 = vmatprep.subr.bf16.mxu0 0
        %566 = vmatpush2.bf16.msra.mxu0 0
        %567 = vmatprep.subr.bf16.mxu0 0
        %568 = vmatpush2.bf16.msra.mxu0 0
        %569 = vmatprep.subr.bf16.mxu0 0
        %570 = vmatpush2.bf16.msra.mxu0 0
        %571 = vmatprep.subr.bf16.mxu0 0
        %572 = vmatpush2.bf16.msra.mxu0 0
        %573 = vmatprep.mubr.bf16.mxu0 0
        %574 = vmatmul.mubr.bf16.gmra.mxu0 %v457
        %v575 = vpop.f32.mrf.mxu0
        %v576 = vadd.f32 %v293, %v575
        %v577 = vpop.f32.mrf.mxu0
        %v578 = vadd.f32 %v293, %v577
        %v579 = vpop.f32.mrf.mxu0
        %v580 = vpop.f32.mrf.mxu0
        %581 = vdwg.mxu0
        %582 = vmatprep.subr.bf16.mxu0 0
        %583 = vmatpush1.bf16.msra.mxu0 0
        %584 = vmatprep.subr.bf16.mxu0 0
        %585 = vmatpush1.bf16.msra.mxu0 0
        %586 = vmatprep.subr.bf16.mxu0 0
        %587 = vmatpush1.bf16.msra.mxu0 0
        %588 = vmatprep.subr.bf16.mxu0 0
        %589 = vmatpush1.bf16.msra.mxu0 0
        %590 = vmatprep.subr.bf16.mxu0 0
        %591 = vmatpush1.bf16.msra.mxu0 0
        %592 = vmatprep.subr.bf16.mxu0 0
        %593 = vmatpush1.bf16.msra.mxu0 0
        %594 = vmatprep.subr.bf16.mxu0 %v414
        %595 = vmatpush1.bf16.msra.mxu0 %v413
        %596 = vmatprep.subr.bf16.mxu0 %v398
        %597 = vmatpush1.bf16.msra.mxu0 %v397
        %598 = vmatprep.subr.bf16.mxu0 0
        %599 = vmatpush2.bf16.msra.mxu0 0
        %600 = vmatprep.subr.bf16.mxu0 0
        %601 = vmatpush2.bf16.msra.mxu0 0
        %602 = vmatprep.subr.bf16.mxu0 0
        %603 = vmatpush2.bf16.msra.mxu0 0
        %604 = vmatprep.subr.bf16.mxu0 0
        %605 = vmatpush2.bf16.msra.mxu0 0
        %606 = vmatprep.subr.bf16.mxu0 0
        %607 = vmatpush2.bf16.msra.mxu0 0
        %608 = vmatprep.subr.bf16.mxu0 0
        %609 = vmatpush2.bf16.msra.mxu0 0
        %610 = vmatprep.subr.bf16.mxu0 0
        %611 = vmatpush2.bf16.msra.mxu0 0
        %612 = vmatprep.subr.bf16.mxu0 0
        %613 = vmatpush2.bf16.msra.mxu0 0
        %614 = vmatprep.mubr.bf16.mxu0 0
        %615 = vmatmul.mubr.bf16.gmra.mxu0 %v457
        %v616 = vpop.f32.mrf.mxu0
        %v617 = vadd.f32 %v293, %v616
        %v618 = vpop.f32.mrf.mxu0
        %v619 = vadd.f32 %v293, %v618
        %v620 = vpop.f32.mrf.mxu0
        %v621 = vpop.f32.mrf.mxu0
        %622 = vdwg.mxu0
        %623 = vmatprep.subr.bf16.mxu0 0
        %624 = vmatpush1.bf16.msra.mxu0 0
        %625 = vmatprep.subr.bf16.mxu0 0
        %626 = vmatpush1.bf16.msra.mxu0 0
        %627 = vmatprep.subr.bf16.mxu0 0
        %628 = vmatpush1.bf16.msra.mxu0 0
        %629 = vmatprep.subr.bf16.mxu0 0
        %630 = vmatpush1.bf16.msra.mxu0 0
        %631 = vmatprep.subr.bf16.mxu0 0
        %632 = vmatpush1.bf16.msra.mxu0 0
        %633 = vmatprep.subr.bf16.mxu0 0
        %634 = vmatpush1.bf16.msra.mxu0 0
        %635 = vmatprep.subr.bf16.mxu0 %v416
        %636 = vmatpush1.bf16.msra.mxu0 %v415
        %637 = vmatprep.subr.bf16.mxu0 %v400
        %638 = vmatpush1.bf16.msra.mxu0 %v399
        %639 = vmatprep.subr.bf16.mxu0 0
        %640 = vmatpush2.bf16.msra.mxu0 0
        %641 = vmatprep.subr.bf16.mxu0 0
        %642 = vmatpush2.bf16.msra.mxu0 0
        %643 = vmatprep.subr.bf16.mxu0 0
        %644 = vmatpush2.bf16.msra.mxu0 0
        %645 = vmatprep.subr.bf16.mxu0 0
        %646 = vmatpush2.bf16.msra.mxu0 0
        %647 = vmatprep.subr.bf16.mxu0 0
        %648 = vmatpush2.bf16.msra.mxu0 0
        %649 = vmatprep.subr.bf16.mxu0 0
        %650 = vmatpush2.bf16.msra.mxu0 0
        %651 = vmatprep.subr.bf16.mxu0 0
        %652 = vmatpush2.bf16.msra.mxu0 0
        %653 = vmatprep.subr.bf16.mxu0 0
        %654 = vmatpush2.bf16.msra.mxu0 0
        %655 = vmatprep.mubr.bf16.mxu0 0
        %656 = vmatmul.mubr.bf16.gmra.mxu0 %v457
        %v657 = vpop.f32.mrf.mxu0
        %v658 = vadd.f32 %v293, %v657
        %v659 = vpop.f32.mrf.mxu0
        %v660 = vadd.f32 %v293, %v659
        %v661 = vpop.f32.mrf.mxu0
        %v662 = vpop.f32.mrf.mxu0
        %663 = vdwg.mxu0
        %664 = vmatprep.subr.bf16.mxu0 0
        %665 = vmatpush1.bf16.msra.mxu0 0
        %666 = vmatprep.subr.bf16.mxu0 0
        %667 = vmatpush1.bf16.msra.mxu0 0
        %668 = vmatprep.subr.bf16.mxu0 0
        %669 = vmatpush1.bf16.msra.mxu0 0
        %670 = vmatprep.subr.bf16.mxu0 0
        %671 = vmatpush1.bf16.msra.mxu0 0
        %672 = vmatprep.subr.bf16.mxu0 0
        %673 = vmatpush1.bf16.msra.mxu0 0
        %674 = vmatprep.subr.bf16.mxu0 0
        %675 = vmatpush1.bf16.msra.mxu0 0
        %676 = vmatprep.subr.bf16.mxu0 %v418
        %677 = vmatpush1.bf16.msra.mxu0 %v417
        %678 = vmatprep.subr.bf16.mxu0 %v402
        %679 = vmatpush1.bf16.msra.mxu0 %v401
        %680 = vmatprep.subr.bf16.mxu0 0
        %681 = vmatpush2.bf16.msra.mxu0 0
        %682 = vmatprep.subr.bf16.mxu0 0
        %683 = vmatpush2.bf16.msra.mxu0 0
        %684 = vmatprep.subr.bf16.mxu0 0
        %685 = vmatpush2.bf16.msra.mxu0 0
        %686 = vmatprep.subr.bf16.mxu0 0
        %687 = vmatpush2.bf16.msra.mxu0 0
        %688 = vmatprep.subr.bf16.mxu0 0
        %689 = vmatpush2.bf16.msra.mxu0 0
        %690 = vmatprep.subr.bf16.mxu0 0
        %691 = vmatpush2.bf16.msra.mxu0 0
        %692 = vmatprep.subr.bf16.mxu0 0
        %693 = vmatpush2.bf16.msra.mxu0 0
        %694 = vmatprep.subr.bf16.mxu0 0
        %695 = vmatpush2.bf16.msra.mxu0 0
        %696 = vmatprep.mubr.bf16.mxu0 0
        %697 = vmatmul.mubr.bf16.gmra.mxu0 %v457
        %v698 = vpop.f32.mrf.mxu0
        %v699 = vadd.f32 %v293, %v698
        %v700 = vpop.f32.mrf.mxu0
        %v701 = vadd.f32 %v293, %v700
        %v702 = vpop.f32.mrf.mxu0
        %v703 = vpop.f32.mrf.mxu0
        %704 = vdwg.mxu0
        %705 = vmatprep.subr.bf16.mxu0 0
        %706 = vmatpush1.bf16.msra.mxu0 0
        %707 = vmatprep.subr.bf16.mxu0 0
        %708 = vmatpush1.bf16.msra.mxu0 0
        %709 = vmatprep.subr.bf16.mxu0 0
        %710 = vmatpush1.bf16.msra.mxu0 0
        %711 = vmatprep.subr.bf16.mxu0 0
        %712 = vmatpush1.bf16.msra.mxu0 0
        %713 = vmatprep.subr.bf16.mxu0 0
        %714 = vmatpush1.bf16.msra.mxu0 0
        %715 = vmatprep.subr.bf16.mxu0 0
        %716 = vmatpush1.bf16.msra.mxu0 0
        %717 = vmatprep.subr.bf16.mxu0 %v420
        %718 = vmatpush1.bf16.msra.mxu0 %v419
        %719 = vmatprep.subr.bf16.mxu0 %v404
        %720 = vmatpush1.bf16.msra.mxu0 %v403
        %721 = vmatprep.subr.bf16.mxu0 0
        %722 = vmatpush2.bf16.msra.mxu0 0
        %723 = vmatprep.subr.bf16.mxu0 0
        %724 = vmatpush2.bf16.msra.mxu0 0
        %725 = vmatprep.subr.bf16.mxu0 0
        %726 = vmatpush2.bf16.msra.mxu0 0
        %727 = vmatprep.subr.bf16.mxu0 0
        %728 = vmatpush2.bf16.msra.mxu0 0
        %729 = vmatprep.subr.bf16.mxu0 0
        %730 = vmatpush2.bf16.msra.mxu0 0
        %731 = vmatprep.subr.bf16.mxu0 0
        %732 = vmatpush2.bf16.msra.mxu0 0
        %733 = vmatprep.subr.bf16.mxu0 0
        %734 = vmatpush2.bf16.msra.mxu0 0
        %735 = vmatprep.subr.bf16.mxu0 0
        %736 = vmatpush2.bf16.msra.mxu0 0
        %737 = vmatprep.mubr.bf16.mxu0 0
        %738 = vmatmul.mubr.bf16.gmra.mxu0 %v457
        %v739 = vpop.f32.mrf.mxu0
        %v740 = vadd.f32 %v293, %v739
        %v741 = vpop.f32.mrf.mxu0
        %v742 = vadd.f32 %v293, %v741
        %v743 = vpop.f32.mrf.mxu0
        %v744 = vpop.f32.mrf.mxu0
        %745 = vdwg.mxu0
        %746 = vmatprep.subr.bf16.mxu0 0
        %747 = vmatpush1.bf16.msra.mxu0 0
        %748 = vmatprep.subr.bf16.mxu0 0
        %749 = vmatpush1.bf16.msra.mxu0 0
        %750 = vmatprep.subr.bf16.mxu0 0
        %751 = vmatpush1.bf16.msra.mxu0 0
        %752 = vmatprep.subr.bf16.mxu0 0
        %753 = vmatpush1.bf16.msra.mxu0 0
        %754 = vmatprep.subr.bf16.mxu0 0
        %755 = vmatpush1.bf16.msra.mxu0 0
        %756 = vmatprep.subr.bf16.mxu0 0
        %757 = vmatpush1.bf16.msra.mxu0 0
        %758 = vmatprep.subr.bf16.mxu0 %v422
        %759 = vmatpush1.bf16.msra.mxu0 %v421
        %760 = vmatprep.subr.bf16.mxu0 %v406
        %761 = vmatpush1.bf16.msra.mxu0 %v405
        %762 = vmatprep.subr.bf16.mxu0 0
        %763 = vmatpush2.bf16.msra.mxu0 0
        %764 = vmatprep.subr.bf16.mxu0 0
        %765 = vmatpush2.bf16.msra.mxu0 0
        %766 = vmatprep.subr.bf16.mxu0 0
        %767 = vmatpush2.bf16.msra.mxu0 0
        %768 = vmatprep.subr.bf16.mxu0 0
        %769 = vmatpush2.bf16.msra.mxu0 0
        %770 = vmatprep.subr.bf16.mxu0 0
        %771 = vmatpush2.bf16.msra.mxu0 0
        %772 = vmatprep.subr.bf16.mxu0 0
        %773 = vmatpush2.bf16.msra.mxu0 0
        %774 = vmatprep.subr.bf16.mxu0 0
        %775 = vmatpush2.bf16.msra.mxu0 0
        %776 = vmatprep.subr.bf16.mxu0 0
        %777 = vmatpush2.bf16.msra.mxu0 0
        %778 = vmatprep.mubr.bf16.mxu0 0
        %779 = vmatmul.mubr.bf16.gmra.mxu0 %v457
        %v780 = vpop.f32.mrf.mxu0
        %v781 = vadd.f32 %v293, %v780
        %v782 = vpop.f32.mrf.mxu0
        %v783 = vadd.f32 %v293, %v782
        %v784 = vpop.f32.mrf.mxu0
        %v785 = vpop.f32.mrf.mxu0
        %786 = vdwg.mxu0
        %vm787 = vcmp.gt.f32.partialorder %v494, 0.0
        %vm788 = vcmp.gt.f32.partialorder %v496, 0.0
        %vm789 = vcmp.gt.f32.partialorder %v535, 0.0
        %vm790 = vcmp.gt.f32.partialorder %v537, 0.0
        %vm791 = vcmp.gt.f32.partialorder %v576, 0.0
        %vm792 = vcmp.gt.f32.partialorder %v578, 0.0
        %vm793 = vcmp.gt.f32.partialorder %v617, 0.0
        %vm794 = vcmp.gt.f32.partialorder %v619, 0.0
        %vm795 = vcmp.gt.f32.partialorder %v658, 0.0
        %vm796 = vcmp.gt.f32.partialorder %v660, 0.0
        %vm797 = vcmp.gt.f32.partialorder %v699, 0.0
        %vm798 = vcmp.gt.f32.partialorder %v701, 0.0
        %vm799 = vcmp.gt.f32.partialorder %v740, 0.0
        %vm800 = vcmp.gt.f32.partialorder %v742, 0.0
        %vm801 = vcmp.gt.f32.partialorder %v781, 0.0
        %vm802 = vcmp.gt.f32.partialorder %v783, 0.0
        %v803 = vmul.f32 %v494, 0.2
        %v804 = vmul.f32 %v496, 0.2
        %v805 = vmul.f32 %v535, 0.2
        %v806 = vmul.f32 %v537, 0.2
        %v807 = vmul.f32 %v576, 0.2
        %v808 = vmul.f32 %v578, 0.2
        %v809 = vmul.f32 %v617, 0.2
        %v810 = vmul.f32 %v619, 0.2
        %v811 = vmul.f32 %v658, 0.2
        %v812 = vmul.f32 %v660, 0.2
        %v813 = vmul.f32 %v699, 0.2
        %v814 = vmul.f32 %v701, 0.2
        %v815 = vmul.f32 %v740, 0.2
        %v816 = vmul.f32 %v742, 0.2
        %v817 = vmul.f32 %v781, 0.2
        %v818 = vmul.f32 %v783, 0.2
        %v819 = vsel %vm787, %v494, %v803
        %v820 = vsel %vm788, %v496, %v804
        %v821 = vsel %vm789, %v535, %v805
        %v822 = vsel %vm790, %v537, %v806
        %v823 = vsel %vm791, %v576, %v807
        %v824 = vsel %vm792, %v578, %v808
        %v825 = vsel %vm793, %v617, %v809
        %v826 = vsel %vm794, %v619, %v810
        %v827 = vsel %vm795, %v658, %v811
        %v828 = vsel %vm796, %v660, %v812
        %v829 = vsel %vm797, %v699, %v813
        %v830 = vsel %vm798, %v701, %v814
        %v831 = vsel %vm799, %v740, %v815
        %v832 = vsel %vm800, %v742, %v816
        %v833 = vsel %vm801, %v781, %v817
        %v834 = vsel %vm802, %v783, %v818
        %v835 = vpack.c.bf16 %v819, %v819
        %v836 = vpack.c.bf16 %v820, %v820
        %v837 = vpack.c.bf16 %v821, %v821
        %v838 = vpack.c.bf16 %v822, %v822
        %v839 = vpack.c.bf16 %v823, %v823
        %v840 = vpack.c.bf16 %v824, %v824
        %v841 = vpack.c.bf16 %v825, %v825
        %v842 = vpack.c.bf16 %v826, %v826
        %v843 = vpack.c.bf16 %v827, %v827
        %v844 = vpack.c.bf16 %v828, %v828
        %v845 = vpack.c.bf16 %v829, %v829
        %v846 = vpack.c.bf16 %v830, %v830
        %v847 = vpack.c.bf16 %v831, %v831
        %v848 = vpack.c.bf16 %v832, %v832
        %v849 = vpack.c.bf16 %v833, %v833
        %v850 = vpack.c.bf16 %v834, %v834
        %v867 = vcombine.low %v835, %v836
        %v868 = vcombine.low %v837, %v838
        %v870 = vunpack.c.l.s4 1983009808
        %v871 = vunpack.c.0.s8 %v870
        %v872 = vlaneseq
        %v873 = vshrl.u32 %v872, 7
        %v874 = vsub.s32 %v871, %v873
        %v875 = vrot.slane %v867, %v874
        %v877 = vunpack.c.l.s4 1983009808
        %v878 = vunpack.c.0.s8 %v877
        %v879 = vlaneseq
        %v880 = vshrl.u32 %v879, 7
        %v881 = vsub.s32 %v878, %v880
        %v882 = vrot.slane %v868, %v881
        %v883 = vcombine.low %v875, %v882
        %v884 = vcombine.low %v839, %v840
        %v885 = vcombine.low %v841, %v842
        %v887 = vunpack.c.l.s4 1983009808
        %v888 = vunpack.c.0.s8 %v887
        %v889 = vlaneseq
        %v890 = vshrl.u32 %v889, 7
        %v891 = vsub.s32 %v888, %v890
        %v892 = vrot.slane %v884, %v891
        %v894 = vunpack.c.l.s4 1983009808
        %v895 = vunpack.c.0.s8 %v894
        %v896 = vlaneseq
        %v897 = vshrl.u32 %v896, 7
        %v898 = vsub.s32 %v895, %v897
        %v899 = vrot.slane %v885, %v898
        %v900 = vcombine.low %v892, %v899
        %v901 = vcombine.low %v843, %v844
        %v902 = vcombine.low %v845, %v846
        %v904 = vunpack.c.l.s4 1983009808
        %v905 = vunpack.c.0.s8 %v904
        %v906 = vlaneseq
        %v907 = vshrl.u32 %v906, 7
        %v908 = vsub.s32 %v905, %v907
        %v909 = vrot.slane %v901, %v908
        %v911 = vunpack.c.l.s4 1983009808
        %v912 = vunpack.c.0.s8 %v911
        %v913 = vlaneseq
        %v914 = vshrl.u32 %v913, 7
        %v915 = vsub.s32 %v912, %v914
        %v916 = vrot.slane %v902, %v915
        %v917 = vcombine.low %v909, %v916
        %v918 = vcombine.low %v847, %v848
        %v919 = vcombine.low %v849, %v850
        %v921 = vunpack.c.l.s4 1983009808
        %v922 = vunpack.c.0.s8 %v921
        %v923 = vlaneseq
        %v924 = vshrl.u32 %v923, 7
        %v925 = vsub.s32 %v922, %v924
        %v926 = vrot.slane %v918, %v925
        %v928 = vunpack.c.l.s4 1983009808
        %v929 = vunpack.c.0.s8 %v928
        %v930 = vlaneseq
        %v931 = vshrl.u32 %v930, 7
        %v932 = vsub.s32 %v929, %v931
        %v933 = vrot.slane %v919, %v932
        %v934 = vcombine.low %v926, %v933
        %939 = vst [vmem:[%s253] sm:$0xff] %v883
        %940 = vst [vmem:[%s253 + $0x8] sm:$0xff] %v900
        %941 = vst [vmem:[%s253 + $0x10] sm:$0xff] %v917
        %942 = vst [vmem:[%s253 + $0x18] sm:$0xff] %v934
        %s943 = smul.u32 16, %s14
        %p944 = scmp.lt.s32.totalorder %s943, 255
        %s945 = scalar_select %p944, %s943, 255
        %s946 = smul.addr %s945, 2
        %s947 = scalar_lea.vmem %s3, %s946
        // Predicated region
        $region56: #{discriminator_forward.6} parent=50 // pred_check
          %p948 = pneg %p100
        $region57: #{discriminator_forward.6} parent=50 // pred_check_branch
          %950 = sbr.rel (%p948) target = $region59
        $region58: #{discriminator_forward.6} parent=50 // pred_region
          %s951 = smul.u32 16, %s14
        $region59: #{discriminator_forward.6} parent=50 // pred_fallthru
          _
      $region51: #{discriminator_forward.6} parent=5 // pred_fallthru
        _
      %p952 = scmp.le.s32.totalorder 2, %s9
      // Predicated region
      $region60: #{discriminator_forward.6} parent=5 // pred_check
        %p953 = pneg %p952
      $region61: #{discriminator_forward.6} parent=5 // pred_check_branch
        %955 = sbr.rel (%p953) target = $region63
      $region62: #{discriminator_forward.6} parent=5 // pred_region
        %s956 = ssub.s32 %s9, 2
        // Predicated region
        $region64: #{discriminator_forward.6} parent=62 // pred_check
          %p957 = pneg %p106
        $region65: #{discriminator_forward.6} parent=62 // pred_check_branch
          %959 = sbr.rel (%p957) target = $region67
        $region66: #{discriminator_forward.6} parent=62 // pred_region
          %s960 = smul.u32 16, %s15
          %p961 = scmp.lt.s32.totalorder %s960, 255
          %s962 = scalar_select %p961, %s960, 255
          %s963 = smul.addr %s962, 2
          %s964 = scalar_lea.vmem %s3, %s963
        $region67: #{discriminator_forward.6} parent=62 // pred_fallthru
          _
      $region63: #{discriminator_forward.6} parent=5 // pred_fallthru
        _
    $region6: #{discriminator_forward.6} parent=1 // loop_footer
      %s13 = sadd.s32 1, %s9
    $region7: #{discriminator_forward.6} parent=1 // loop_footer_branch
      %8 = sbr.rel target = $region3
    $region8: #{discriminator_forward.6} parent=1 // loop_exit
      _

// kernel: discriminator_forward.7
$region0: #{discriminator_forward.7}
  #allocation0 [shape = 'u32[]', space=smem, size = 0x4, offset = 0x4, fixed_abs, tag = 'smem constant byte address 0x4 - core index']
  #allocation1 [shape = 'u32[144,128]{1,0:T(1,128)}', space=vmem, size = 0x12000, scoped, tag = 'internal scratch']
  %s0 = inlined_call_operand.vmem [shape: bf16[8,64], index: 0, kind: input, shape index: {}]
  %s1 = inlined_call_operand.vmem [shape: bf16[64,8192], index: 1, kind: input, shape index: {}]
  %s2 = inlined_call_operand.vmem [shape: f32[8,1], index: 2, kind: input, shape index: {}]
  %s3 = inlined_call_operand.vmem [shape: bf16[8,8192], index: 3, kind: output, shape index: {}]
  %s4 = sld [smem:[#allocation0]]
  $region68: #{discriminator_forward.7} parent=0
    _
  %s6 = ssub.s32 1, %s4
  %s7 = scalar_select 0, %s6, %s4
  $region1: #{discriminator_forward.7} parent=0
    #allocation2 [shape = 'u8[524288]{0}', space=vmem, size = 0x80000, scoped, tag = 'input window, operand 1']
    loop: start=0, step=1, limit=6
    $region2: #{discriminator_forward.7} parent=1 // loop_pre_header
      _
    $region3: #{discriminator_forward.7} parent=1 // loop_header
      %s9 = sphi 0, %s13
      %p10 = scmp.ge.s32.totalorder %s9, 6
      %s17 = sphi 0, %s17
      %s19 = sphi 0, %s17
      %s20 = sphi 0, %s19
      %s34 = sphi 0, %s20
      %s40 = sphi 0, %s42
      %s43 = sphi 0, %s40
      %s44 = sphi 0, %s43
      %s60 = sphi 0, %s44
      %s64 = sphi 0, %s64
      %s66 = sphi 0, %s64
      %s67 = sphi 0, %s66
      %s81 = sphi 0, %s67
      %s87 = sphi 0, %s89
      %s90 = sphi 0, %s87
      %s91 = sphi 0, %s90
      %s107 = sphi 0, %s91
    $region4: #{discriminator_forward.7} parent=1 // loop_header_branch
      %12 = sbr.rel (%p10) target = $region8
    $region5: #{discriminator_forward.7} parent=1 // loop_body
      %s14 = ssub.s32 %s9, 1
      %s15 = ssub.s32 %s9, 2
      %s16 = sadd.s32 %s9, 1
      %s18 = sadd.s32 %s17, 1
      %p21 = scmp.eq.s32.totalorder %s9, 3
      %p22 = scmp.ne.s32.totalorder %s17, %s19
      %p23 = scmp.eq.s32.totalorder %s9, 0
      %p24 = por %p22, %p23
      %p25 = scmp.ne.s32.totalorder %s17, %s19
      %p26 = scmp.eq.s32.totalorder %s14, 3
      %p27 = por %p25, %p26
      %p28 = scmp.ne.s32.totalorder %s19, %s20
      %p29 = scmp.eq.s32.totalorder %s14, 0
      %p30 = por %p28, %p29
      %p31 = scmp.ne.s32.totalorder %s19, %s20
      %p32 = scmp.eq.s32.totalorder %s15, 3
      %p33 = por %p31, %p32
      %p35 = scmp.ne.s32.totalorder %s20, %s34
      %p36 = scmp.eq.s32.totalorder %s15, 0
      %p37 = por %p35, %p36
      %s38 = ssub.s32 %s9, %s16
      %p39 = scmp.eq.s32.totalorder %s38, 0
      %s41 = sadd.s32 %s40, 1
      %s42 = scalar_select %p39, %s40, %s41
      %p45 = pneg %p39
      %p46 = scmp.eq.s32.totalorder %s9, 3
      %p47 = por %p45, %p46
      %p48 = scmp.ne.s32.totalorder %s40, %s43
      %p49 = scmp.eq.s32.totalorder %s9, 0
      %p50 = por %p48, %p49
      %p51 = scmp.ne.s32.totalorder %s40, %s43
      %p52 = scmp.eq.s32.totalorder %s14, 3
      %p53 = por %p51, %p52
      %p54 = scmp.ne.s32.totalorder %s43, %s44
      %p55 = scmp.eq.s32.totalorder %s14, 0
      %p56 = por %p54, %p55
      %p57 = scmp.ne.s32.totalorder %s43, %s44
      %p58 = scmp.eq.s32.totalorder %s15, 3
      %p59 = por %p57, %p58
      %p61 = scmp.ne.s32.totalorder %s44, %s60
      %p62 = scmp.eq.s32.totalorder %s15, 0
      %p63 = por %p61, %p62
      %s65 = sadd.s32 %s64, 1
      %p68 = scmp.eq.s32.totalorder %s9, 3
      %p69 = scmp.ne.s32.totalorder %s64, %s66
      %p70 = scmp.eq.s32.totalorder %s9, 0
      %p71 = por %p69, %p70
      %p72 = scmp.ne.s32.totalorder %s64, %s66
      %p73 = scmp.eq.s32.totalorder %s14, 3
      %p74 = por %p72, %p73
      %p75 = scmp.ne.s32.totalorder %s66, %s67
      %p76 = scmp.eq.s32.totalorder %s14, 0
      %p77 = por %p75, %p76
      %p78 = scmp.ne.s32.totalorder %s66, %s67
      %p79 = scmp.eq.s32.totalorder %s15, 3
      %p80 = por %p78, %p79
      %p82 = scmp.ne.s32.totalorder %s67, %s81
      %p83 = scmp.eq.s32.totalorder %s15, 0
      %p84 = por %p82, %p83
      %s85 = ssub.s32 %s9, %s16
      %p86 = scmp.eq.s32.totalorder %s85, 0
      %s88 = sadd.s32 %s87, 1
      %s89 = scalar_select %p86, %s87, %s88
      %p92 = pneg %p86
      %p93 = scmp.eq.s32.totalorder %s9, 3
      %p94 = por %p92, %p93
      %p95 = scmp.ne.s32.totalorder %s87, %s90
      %p96 = scmp.eq.s32.totalorder %s9, 0
      %p97 = por %p95, %p96
      %p98 = scmp.ne.s32.totalorder %s87, %s90
      %p99 = scmp.eq.s32.totalorder %s14, 3
      %p100 = por %p98, %p99
      %p101 = scmp.ne.s32.totalorder %s90, %s91
      %p102 = scmp.eq.s32.totalorder %s14, 0
      %p103 = por %p101, %p102
      %p104 = scmp.ne.s32.totalorder %s90, %s91
      %p105 = scmp.eq.s32.totalorder %s15, 3
      %p106 = por %p104, %p105
      %p108 = scmp.ne.s32.totalorder %s91, %s107
      %p109 = scmp.eq.s32.totalorder %s15, 0
      %p110 = por %p108, %p109
      %p111 = scmp.le.s32.totalorder 1, %s9
      %p112 = scmp.lt.s32.totalorder %s9, 5
      %p113 = pnand %p111, %p112
      %p114 = pneg %p113
      // Predicated region
      $region9: #{discriminator_forward.7} parent=5 // pred_check
        _
      $region10: #{discriminator_forward.7} parent=5 // pred_check_branch
        %116 = sbr.rel (%p113) target = $region12
      $region11: #{discriminator_forward.7} parent=5 // pred_region
        %s117 = ssub.s32 %s9, 1
        // Predicated region
        $region13: #{discriminator_forward.7} parent=11 // pred_check
          %p118 = pneg %p30
        $region14: #{discriminator_forward.7} parent=11 // pred_check_branch
          %120 = sbr.rel (%p118) target = $region16
        $region15: #{discriminator_forward.7} parent=11 // pred_region
          _
        $region16: #{discriminator_forward.7} parent=11 // pred_fallthru
          _
        // Predicated region
        $region17: #{discriminator_forward.7} parent=11 // pred_check
          %p121 = pneg %p77
        $region18: #{discriminator_forward.7} parent=11 // pred_check_branch
          %123 = sbr.rel (%p121) target = $region20
        $region19: #{discriminator_forward.7} parent=11 // pred_region
          _
        $region20: #{discriminator_forward.7} parent=11 // pred_fallthru
          _
      $region12: #{discriminator_forward.7} parent=5 // pred_fallthru
        _
      %p124 = scmp.lt.s32.totalorder %s9, 4
      // Predicated region
      $region21: #{discriminator_forward.7} parent=5 // pred_check
        %p125 = pneg %p124
      $region22: #{discriminator_forward.7} parent=5 // pred_check_branch
        %127 = sbr.rel (%p125) target = $region24
      $region23: #{discriminator_forward.7} parent=5 // pred_region
        // Predicated region
        $region25: #{discriminator_forward.7} parent=23 // pred_check
          %p128 = pneg %p50
        $region26: #{discriminator_forward.7} parent=23 // pred_check_branch
          %130 = sbr.rel (%p128) target = $region28
        $region27: #{discriminator_forward.7} parent=23 // pred_region
          %s131 = sand.u32 %s40, 1
          %s132 = sand.u32 %s40, 1
          %s133 = smul.addr %s132, 512
          %s134 = scalar_lea.vmem [#allocation2], %s133
          %s135 = smul.u32 16, %s9
          %s136 = smul.addr %s135, 4
          %s137 = scalar_lea.vmem %s1, %s136
          // Predicated region
          $region29: #{discriminator_forward.7} parent=27 // pred_check
            _
          $region30: #{discriminator_forward.7} parent=27 // pred_check_branch
            %139 = sbr.rel (0) target = $region32
          $region31: #{discriminator_forward.7} parent=27 // pred_region
            // Predicated region
            $region33: #{discriminator_forward.7} parent=31 // pred_check
              _
            $region34: #{discriminator_forward.7} parent=31 // pred_check_branch
              %141 = sbr.rel (0) target = $region36
            $region35: #{discriminator_forward.7} parent=31 // pred_region
              loop: start=0, step=1, limit=1
              $region37: #{discriminator_forward.7} parent=35 // loop_pre_header
                _
              $region38: #{discriminator_forward.7} parent=35 // loop_header
                %s143 = sphi 0, %s147
                %p144 = scmp.ge.s32.totalorder %s143, 1
                %s148 = sphi %s137, %s137
                %s149 = sphi %s134, %s134
              $region39: #{discriminator_forward.7} parent=35 // loop_header_branch
                %146 = sbr.rel (%p144) target = $region43
              $region40: #{discriminator_forward.7} parent=35 // loop_body
                %v150 = vld [vmem:[%s148] sm:$0xff]
                %151 = vst [vmem:[%s149] sm:$0xff] %v150
                %v152 = vld [vmem:[%s148 + $0x8] sm:$0xff]
                %153 = vst [vmem:[%s149 + $0x8] sm:$0xff] %v152
                %v154 = vld [vmem:[%s148 + $0x10] sm:$0xff]
                %155 = vst [vmem:[%s149 + $0x10] sm:$0xff] %v154
                %v156 = vld [vmem:[%s148 + $0x18] sm:$0xff]
                %157 = vst [vmem:[%s149 + $0x18] sm:$0xff] %v156
                %v158 = vld [vmem:[%s148 + $0x20] sm:$0xff]
                %159 = vst [vmem:[%s149 + $0x20] sm:$0xff] %v158
                %v160 = vld [vmem:[%s148 + $0x28] sm:$0xff]
                %161 = vst [vmem:[%s149 + $0x28] sm:$0xff] %v160
                %v162 = vld [vmem:[%s148 + $0x30] sm:$0xff]
                %163 = vst [vmem:[%s149 + $0x30] sm:$0xff] %v162
                %v164 = vld [vmem:[%s148 + $0x38] sm:$0xff]
                %165 = vst [vmem:[%s149 + $0x38] sm:$0xff] %v164
                %v166 = vld [vmem:[%s148 + $0x100] sm:$0xff]
                %167 = vst [vmem:[%s149 + $0x40] sm:$0xff] %v166
                %v168 = vld [vmem:[%s148 + $0x108] sm:$0xff]
                %169 = vst [vmem:[%s149 + $0x48] sm:$0xff] %v168
                %v170 = vld [vmem:[%s148 + $0x110] sm:$0xff]
                %171 = vst [vmem:[%s149 + $0x50] sm:$0xff] %v170
                %v172 = vld [vmem:[%s148 + $0x118] sm:$0xff]
                %173 = vst [vmem:[%s149 + $0x58] sm:$0xff] %v172
                %v174 = vld [vmem:[%s148 + $0x120] sm:$0xff]
                %175 = vst [vmem:[%s149 + $0x60] sm:$0xff] %v174
                %v176 = vld [vmem:[%s148 + $0x128] sm:$0xff]
                %177 = vst [vmem:[%s149 + $0x68] sm:$0xff] %v176
                %v178 = vld [vmem:[%s148 + $0x130] sm:$0xff]
                %179 = vst [vmem:[%s149 + $0x70] sm:$0xff] %v178
                %v180 = vld [vmem:[%s148 + $0x138] sm:$0xff]
                %181 = vst [vmem:[%s149 + $0x78] sm:$0xff] %v180
                %v182 = vld [vmem:[%s148 + $0x200] sm:$0xff]
                %183 = vst [vmem:[%s149 + $0x80] sm:$0xff] %v182
                %v184 = vld [vmem:[%s148 + $0x208] sm:$0xff]
                %185 = vst [vmem:[%s149 + $0x88] sm:$0xff] %v184
                %v186 = vld [vmem:[%s148 + $0x210] sm:$0xff]
                %187 = vst [vmem:[%s149 + $0x90] sm:$0xff] %v186
                %v188 = vld [vmem:[%s148 + $0x218] sm:$0xff]
                %189 = vst [vmem:[%s149 + $0x98] sm:$0xff] %v188
                %v190 = vld [vmem:[%s148 + $0x220] sm:$0xff]
                %191 = vst [vmem:[%s149 + $0xa0] sm:$0xff] %v190
                %v192 = vld [vmem:[%s148 + $0x228] sm:$0xff]
                %193 = vst [vmem:[%s149 + $0xa8] sm:$0xff] %v192
                %v194 = vld [vmem:[%s148 + $0x230] sm:$0xff]
                %195 = vst [vmem:[%s149 + $0xb0] sm:$0xff] %v194
                %v196 = vld [vmem:[%s148 + $0x238] sm:$0xff]
                %197 = vst [vmem:[%s149 + $0xb8] sm:$0xff] %v196
                %v198 = vld [vmem:[%s148 + $0x300] sm:$0xff]
                %199 = vst [vmem:[%s149 + $0xc0] sm:$0xff] %v198
                %v200 = vld [vmem:[%s148 + $0x308] sm:$0xff]
                %201 = vst [vmem:[%s149 + $0xc8] sm:$0xff] %v200
                %v202 = vld [vmem:[%s148 + $0x310] sm:$0xff]
                %203 = vst [vmem:[%s149 + $0xd0] sm:$0xff] %v202
                %v204 = vld [vmem:[%s148 + $0x318] sm:$0xff]
                %205 = vst [vmem:[%s149 + $0xd8] sm:$0xff] %v204
                %v206 = vld [vmem:[%s148 + $0x320] sm:$0xff]
                %207 = vst [vmem:[%s149 + $0xe0] sm:$0xff] %v206
                %v208 = vld [vmem:[%s148 + $0x328] sm:$0xff]
                %209 = vst [vmem:[%s149 + $0xe8] sm:$0xff] %v208
                %v210 = vld [vmem:[%s148 + $0x330] sm:$0xff]
                %211 = vst [vmem:[%s149 + $0xf0] sm:$0xff] %v210
                %v212 = vld [vmem:[%s148 + $0x338] sm:$0xff]
                %213 = vst [vmem:[%s149 + $0xf8] sm:$0xff] %v212
                %v214 = vld [vmem:[%s148 + $0x400] sm:$0xff]
                %215 = vst [vmem:[%s149 + $0x100] sm:$0xff] %v214
                %v216 = vld [vmem:[%s148 + $0x408] sm:$0xff]
                %217 = vst [vmem:[%s149 + $0x108] sm:$0xff] %v216
                %v218 = vld [vmem:[%s148 + $0x410] sm:$0xff]
                %219 = vst [vmem:[%s149 + $0x110] sm:$0xff] %v218
                %v220 = vld [vmem:[%s148 + $0x418] sm:$0xff]
                %221 = vst [vmem:[%s149 + $0x118] sm:$0xff] %v220
                %v222 = vld [vmem:[%s148 + $0x420] sm:$0xff]
                %223 = vst [vmem:[%s149 + $0x120] sm:$0xff] %v222
                %v224 = vld [vmem:[%s148 + $0x428] sm:$0xff]
                %225 = vst [vmem:[%s149 + $0x128] sm:$0xff] %v224
                %v226 = vld [vmem:[%s148 + $0x430] sm:$0xff]
                %227 = vst [vmem:[%s149 + $0x130] sm:$0xff] %v226
                %v228 = vld [vmem:[%s148 + $0x438] sm:$0xff]
                %229 = vst [vmem:[%s149 + $0x138] sm:$0xff] %v228
                %v230 = vld [vmem:[%s148 + $0x500] sm:$0xff]
                %231 = vst [vmem:[%s149 + $0x140] sm:$0xff] %v230
                %v232 = vld [vmem:[%s148 + $0x508] sm:$0xff]
                %233 = vst [vmem:[%s149 + $0x148] sm:$0xff] %v232
                %v234 = vld [vmem:[%s148 + $0x510] sm:$0xff]
                %235 = vst [vmem:[%s149 + $0x150] sm:$0xff] %v234
                %v236 = vld [vmem:[%s148 + $0x518] sm:$0xff]
                %237 = vst [vmem:[%s149 + $0x158] sm:$0xff] %v236
                %v238 = vld [vmem:[%s148 + $0x520] sm:$0xff]
                %239 = vst [vmem:[%s149 + $0x160] sm:$0xff] %v238
                %v240 = vld [vmem:[%s148 + $0x528] sm:$0xff]
                %241 = vst [vmem:[%s149 + $0x168] sm:$0xff] %v240
                %v242 = vld [vmem:[%s148 + $0x530] sm:$0xff]
                %243 = vst [vmem:[%s149 + $0x170] sm:$0xff] %v242
                %v244 = vld [vmem:[%s148 + $0x538] sm:$0xff]
                %245 = vst [vmem:[%s149 + $0x178] sm:$0xff] %v244
                %v246 = vld [vmem:[%s148 + $0x600] sm:$0xff]
                %247 = vst [vmem:[%s149 + $0x180] sm:$0xff] %v246
                %v248 = vld [vmem:[%s148 + $0x608] sm:$0xff]
                %249 = vst [vmem:[%s149 + $0x188] sm:$0xff] %v248
                %v250 = vld [vmem:[%s148 + $0x610] sm:$0xff]
                %251 = vst [vmem:[%s149 + $0x190] sm:$0xff] %v250
                %v252 = vld [vmem:[%s148 + $0x618] sm:$0xff]
                %253 = vst [vmem:[%s149 + $0x198] sm:$0xff] %v252
                %v254 = vld [vmem:[%s148 + $0x620] sm:$0xff]
                %255 = vst [vmem:[%s149 + $0x1a0] sm:$0xff] %v254
                %v256 = vld [vmem:[%s148 + $0x628] sm:$0xff]
                %257 = vst [vmem:[%s149 + $0x1a8] sm:$0xff] %v256
                %v258 = vld [vmem:[%s148 + $0x630] sm:$0xff]
                %259 = vst [vmem:[%s149 + $0x1b0] sm:$0xff] %v258
                %v260 = vld [vmem:[%s148 + $0x638] sm:$0xff]
                %261 = vst [vmem:[%s149 + $0x1b8] sm:$0xff] %v260
                %v262 = vld [vmem:[%s148 + $0x700] sm:$0xff]
                %263 = vst [vmem:[%s149 + $0x1c0] sm:$0xff] %v262
                %v264 = vld [vmem:[%s148 + $0x708] sm:$0xff]
                %265 = vst [vmem:[%s149 + $0x1c8] sm:$0xff] %v264
                %v266 = vld [vmem:[%s148 + $0x710] sm:$0xff]
                %267 = vst [vmem:[%s149 + $0x1d0] sm:$0xff] %v266
                %v268 = vld [vmem:[%s148 + $0x718] sm:$0xff]
                %269 = vst [vmem:[%s149 + $0x1d8] sm:$0xff] %v268
                %v270 = vld [vmem:[%s148 + $0x720] sm:$0xff]
                %271 = vst [vmem:[%s149 + $0x1e0] sm:$0xff] %v270
                %v272 = vld [vmem:[%s148 + $0x728] sm:$0xff]
                %273 = vst [vmem:[%s149 + $0x1e8] sm:$0xff] %v272
                %v274 = vld [vmem:[%s148 + $0x730] sm:$0xff]
                %275 = vst [vmem:[%s149 + $0x1f0] sm:$0xff] %v274
                %v276 = vld [vmem:[%s148 + $0x738] sm:$0xff]
                %277 = vst [vmem:[%s149 + $0x1f8] sm:$0xff] %v276
              $region41: #{discriminator_forward.7} parent=35 // loop_footer
                %s147 = sadd.s32 1, %s143
              $region42: #{discriminator_forward.7} parent=35 // loop_footer_branch
                %142 = sbr.rel target = $region38
              $region43: #{discriminator_forward.7} parent=35 // loop_exit
                _
            $region36: #{discriminator_forward.7} parent=31 // pred_fallthru
              _
            // Predicated region
            $region44: #{discriminator_forward.7} parent=31 // pred_check
              _
            $region45: #{discriminator_forward.7} parent=31 // pred_check_branch
              %279 = sbr.rel target = $region47
            $region46: #{discriminator_forward.7} parent=31 // pred_region
              _
            $region47: #{discriminator_forward.7} parent=31 // pred_fallthru
              _
          $region32: #{discriminator_forward.7} parent=27 // pred_fallthru
            _
          %280 = vnop
        $region28: #{discriminator_forward.7} parent=23 // pred_fallthru
          _
      $region24: #{discriminator_forward.7} parent=5 // pred_fallthru
        _
      %p281 = scmp.le.s32.totalorder 1, %s9
      %p282 = scmp.lt.s32.totalorder %s9, 5
      %p283 = pnand %p281, %p282
      %p284 = pneg %p283
      // Predicated region
      $region48: #{discriminator_forward.7} parent=5 // pred_check
        _
      $region49: #{discriminator_forward.7} parent=5 // pred_check_branch
        %286 = sbr.rel (%p283) target = $region51
      $region50: #{discriminator_forward.7} parent=5 // pred_region
        %s287 = ssub.s32 %s9, 1
        %s288 = sand.u32 %s43, 1
        %s289 = sand.u32 %s43, 1
        %s290 = smul.addr %s289, 512
        %s291 = scalar_lea.vmem [#allocation2], %s290
        // Predicated region
        $region52: #{discriminator_forward.7} parent=50 // pred_check
          %p292 = pneg %p56
        $region53: #{discriminator_forward.7} parent=50 // pred_check_branch
          %294 = sbr.rel (%p292) target = $region55
        $region54: #{discriminator_forward.7} parent=50 // pred_region
          _
        $region55: #{discriminator_forward.7} parent=50 // pred_fallthru
          _
        %p295 = pneg %p30
        %p296 = pneg %p27
        %s297 = sand.u32 %s43, 1
        %s298 = sand.u32 %s43, 1
        %s299 = smul.addr %s298, 512
        %s300 = scalar_lea.vmem [#allocation2], %s299
        %p301 = pneg %p56
        %p302 = pneg %p53
        %p303 = pneg %p77
        %p304 = pneg %p74
        %p305 = pneg %p103
        %p306 = pneg %p100
        %s307 = smul.u32 16, %s14
        %p308 = scmp.lt.s32.totalorder %s307, 63
        %s309 = scalar_select %p308, %s307, 63
        %s310 = smul.addr %s309, 4
        %s311 = scalar_lea.vmem %s3, %s310
        %s312 = smul.u32 16, %s14
        %s313 = smul.u32 16, %s14
        %p314 = scmp.lt.s32.totalorder %s313, 63
        %s315 = scalar_select %p314, %s313, 63
        %s316 = smul.addr %s315, 4
        %s317 = scalar_lea.vmem %s3, %s316
        %s318 = smul.u32 16, %s14
        %v320 = vld [vmem:[%s0] sm:$0xf]
        %v321 = vld [vmem:[%s291] sm:$0xff]
        %v322 = vld [vmem:[%s291 + $0x8] sm:$0xff]
        %v323 = vld [vmem:[%s291 + $0x10] sm:$0xff]
        %v324 = vld [vmem:[%s291 + $0x18] sm:$0xff]
        %v325 = vld [vmem:[%s291 + $0x20] sm:$0xff]
        %v326 = vld [vmem:[%s291 + $0x28] sm:$0xff]
        %v327 = vld [vmem:[%s291 + $0x30] sm:$0xff]
        %v328 = vld [vmem:[%s291 + $0x38] sm:$0xff]
        %v329 = vld [vmem:[%s291 + $0x40] sm:$0xff]
        %v330 = vld [vmem:[%s291 + $0x48] sm:$0xff]
        %v331 = vld [vmem:[%s291 + $0x50] sm:$0xff]
        %v332 = vld [vmem:[%s291 + $0x58] sm:$0xff]
        %v333 = vld [vmem:[%s291 + $0x60] sm:$0xff]
        %v334 = vld [vmem:[%s291 + $0x68] sm:$0xff]
        %v335 = vld [vmem:[%s291 + $0x70] sm:$0xff]
        %v336 = vld [vmem:[%s291 + $0x78] sm:$0xff]
        %v337 = vld [vmem:[%s291 + $0x80] sm:$0xff]
        %v338 = vld [vmem:[%s291 + $0x88] sm:$0xff]
        %v339 = vld [vmem:[%s291 + $0x90] sm:$0xff]
        %v340 = vld [vmem:[%s291 + $0x98] sm:$0xff]
        %v341 = vld [vmem:[%s291 + $0xa0] sm:$0xff]
        %v342 = vld [vmem:[%s291 + $0xa8] sm:$0xff]
        %v343 = vld [vmem:[%s291 + $0xb0] sm:$0xff]
        %v344 = vld [vmem:[%s291 + $0xb8] sm:$0xff]
        %v345 = vld [vmem:[%s291 + $0xc0] sm:$0xff]
        %v346 = vld [vmem:[%s291 + $0xc8] sm:$0xff]
        %v347 = vld [vmem:[%s291 + $0xd0] sm:$0xff]
        %v348 = vld [vmem:[%s291 + $0xd8] sm:$0xff]
        %v349 = vld [vmem:[%s291 + $0xe0] sm:$0xff]
        %v350 = vld [vmem:[%s291 + $0xe8] sm:$0xff]
        %v351 = vld [vmem:[%s291 + $0xf0] sm:$0xff]
        %v352 = vld [vmem:[%s291 + $0xf8] sm:$0xff]
        %v353 = vld [vmem:[%s291 + $0x100] sm:$0xff]
        %v354 = vld [vmem:[%s291 + $0x108] sm:$0xff]
        %v355 = vld [vmem:[%s291 + $0x110] sm:$0xff]
        %v356 = vld [vmem:[%s291 + $0x118] sm:$0xff]
        %v357 = vld [vmem:[%s291 + $0x120] sm:$0xff]
        %v358 = vld [vmem:[%s291 + $0x128] sm:$0xff]
        %v359 = vld [vmem:[%s291 + $0x130] sm:$0xff]
        %v360 = vld [vmem:[%s291 + $0x138] sm:$0xff]
        %v361 = vld [vmem:[%s291 + $0x140] sm:$0xff]
        %v362 = vld [vmem:[%s291 + $0x148] sm:$0xff]
        %v363 = vld [vmem:[%s291 + $0x150] sm:$0xff]
        %v364 = vld [vmem:[%s291 + $0x158] sm:$0xff]
        %v365 = vld [vmem:[%s291 + $0x160] sm:$0xff]
        %v366 = vld [vmem:[%s291 + $0x168] sm:$0xff]
        %v367 = vld [vmem:[%s291 + $0x170] sm:$0xff]
        %v368 = vld [vmem:[%s291 + $0x178] sm:$0xff]
        %v369 = vld [vmem:[%s291 + $0x180] sm:$0xff]
        %v370 = vld [vmem:[%s291 + $0x188] sm:$0xff]
        %v371 = vld [vmem:[%s291 + $0x190] sm:$0xff]
        %v372 = vld [vmem:[%s291 + $0x198] sm:$0xff]
        %v373 = vld [vmem:[%s291 + $0x1a0] sm:$0xff]
        %v374 = vld [vmem:[%s291 + $0x1a8] sm:$0xff]
        %v375 = vld [vmem:[%s291 + $0x1b0] sm:$0xff]
        %v376 = vld [vmem:[%s291 + $0x1b8] sm:$0xff]
        %v377 = vld [vmem:[%s291 + $0x1c0] sm:$0xff]
        %v378 = vld [vmem:[%s291 + $0x1c8] sm:$0xff]
        %v379 = vld [vmem:[%s291 + $0x1d0] sm:$0xff]
        %v380 = vld [vmem:[%s291 + $0x1d8] sm:$0xff]
        %v381 = vld [vmem:[%s291 + $0x1e0] sm:$0xff]
        %v382 = vld [vmem:[%s291 + $0x1e8] sm:$0xff]
        %v383 = vld [vmem:[%s291 + $0x1f0] sm:$0xff]
        %v384 = vld [vmem:[%s291 + $0x1f8] sm:$0xff]
        %v385 = vld [vmem:[%s2] sm:$0xff]
        %387 = vset.pattern.permute.xlu0 0
        %388 = vperm.xlu0 %387, %v385
        %v389 = vpop.permute.xlu0 %388
        %v455 = vunpack.c.l.b16 %v321
        %v456 = vunpack.c.h.b16 %v321
        %v457 = vunpack.c.l.b16 %v322
        %v458 = vunpack.c.h.b16 %v322
        %v459 = vunpack.c.l.b16 %v323
        %v460 = vunpack.c.h.b16 %v323
        %v461 = vunpack.c.l.b16 %v324
        %v462 = vunpack.c.h.b16 %v324
        %v463 = vunpack.c.l.b16 %v325
        %v464 = vunpack.c.h.b16 %v325
        %v465 = vunpack.c.l.b16 %v326
        %v466 = vunpack.c.h.b16 %v326
        %v467 = vunpack.c.l.b16 %v327
        %v468 = vunpack.c.h.b16 %v327
        %v469 = vunpack.c.l.b16 %v328
        %v470 = vunpack.c.h.b16 %v328
        %v471 = vunpack.c.l.b16 %v329
        %v472 = vunpack.c.h.b16 %v329
        %v473 = vunpack.c.l.b16 %v330
        %v474 = vunpack.c.h.b16 %v330
        %v475 = vunpack.c.l.b16 %v331
        %v476 = vunpack.c.h.b16 %v331
        %v477 = vunpack.c.l.b16 %v332
        %v478 = vunpack.c.h.b16 %v332
        %v479 = vunpack.c.l.b16 %v333
        %v480 = vunpack.c.h.b16 %v333
        %v481 = vunpack.c.l.b16 %v334
        %v482 = vunpack.c.h.b16 %v334
        %v483 = vunpack.c.l.b16 %v335
        %v484 = vunpack.c.h.b16 %v335
        %v485 = vunpack.c.l.b16 %v336
        %v486 = vunpack.c.h.b16 %v336
        %v487 = vunpack.c.l.b16 %v337
        %v488 = vunpack.c.h.b16 %v337
        %v489 = vunpack.c.l.b16 %v338
        %v490 = vunpack.c.h.b16 %v338
        %v491 = vunpack.c.l.b16 %v339
        %v492 = vunpack.c.h.b16 %v339
        %v493 = vunpack.c.l.b16 %v340
        %v494 = vunpack.c.h.b16 %v340
        %v495 = vunpack.c.l.b16 %v341
        %v496 = vunpack.c.h.b16 %v341
        %v497 = vunpack.c.l.b16 %v342
        %v498 = vunpack.c.h.b16 %v342
        %v499 = vunpack.c.l.b16 %v343
        %v500 = vunpack.c.h.b16 %v343
        %v501 = vunpack.c.l.b16 %v344
        %v502 = vunpack.c.h.b16 %v344
        %v503 = vunpack.c.l.b16 %v345
        %v504 = vunpack.c.h.b16 %v345
        %v505 = vunpack.c.l.b16 %v346
        %v506 = vunpack.c.h.b16 %v346
        %v507 = vunpack.c.l.b16 %v347
        %v508 = vunpack.c.h.b16 %v347
        %v509 = vunpack.c.l.b16 %v348
        %v510 = vunpack.c.h.b16 %v348
        %v511 = vunpack.c.l.b16 %v349
        %v512 = vunpack.c.h.b16 %v349
        %v513 = vunpack.c.l.b16 %v350
        %v514 = vunpack.c.h.b16 %v350
        %v515 = vunpack.c.l.b16 %v351
        %v516 = vunpack.c.h.b16 %v351
        %v517 = vunpack.c.l.b16 %v352
        %v518 = vunpack.c.h.b16 %v352
        %v519 = vunpack.c.l.b16 %v353
        %v520 = vunpack.c.h.b16 %v353
        %v521 = vunpack.c.l.b16 %v354
        %v522 = vunpack.c.h.b16 %v354
        %v523 = vunpack.c.l.b16 %v355
        %v524 = vunpack.c.h.b16 %v355
        %v525 = vunpack.c.l.b16 %v356
        %v526 = vunpack.c.h.b16 %v356
        %v527 = vunpack.c.l.b16 %v357
        %v528 = vunpack.c.h.b16 %v357
        %v529 = vunpack.c.l.b16 %v358
        %v530 = vunpack.c.h.b16 %v358
        %v531 = vunpack.c.l.b16 %v359
        %v532 = vunpack.c.h.b16 %v359
        %v533 = vunpack.c.l.b16 %v360
        %v534 = vunpack.c.h.b16 %v360
        %v535 = vunpack.c.l.b16 %v361
        %v536 = vunpack.c.h.b16 %v361
        %v537 = vunpack.c.l.b16 %v362
        %v538 = vunpack.c.h.b16 %v362
        %v539 = vunpack.c.l.b16 %v363
        %v540 = vunpack.c.h.b16 %v363
        %v541 = vunpack.c.l.b16 %v364
        %v542 = vunpack.c.h.b16 %v364
        %v543 = vunpack.c.l.b16 %v365
        %v544 = vunpack.c.h.b16 %v365
        %v545 = vunpack.c.l.b16 %v366
        %v546 = vunpack.c.h.b16 %v366
        %v547 = vunpack.c.l.b16 %v367
        %v548 = vunpack.c.h.b16 %v367
        %v549 = vunpack.c.l.b16 %v368
        %v550 = vunpack.c.h.b16 %v368
        %v551 = vunpack.c.l.b16 %v369
        %v552 = vunpack.c.h.b16 %v369
        %v553 = vunpack.c.l.b16 %v370
        %v554 = vunpack.c.h.b16 %v370
        %v555 = vunpack.c.l.b16 %v371
        %v556 = vunpack.c.h.b16 %v371
        %v557 = vunpack.c.l.b16 %v372
        %v558 = vunpack.c.h.b16 %v372
        %v559 = vunpack.c.l.b16 %v373
        %v560 = vunpack.c.h.b16 %v373
        %v561 = vunpack.c.l.b16 %v374
        %v562 = vunpack.c.h.b16 %v374
        %v563 = vunpack.c.l.b16 %v375
        %v564 = vunpack.c.h.b16 %v375
        %v565 = vunpack.c.l.b16 %v376
        %v566 = vunpack.c.h.b16 %v376
        %v567 = vunpack.c.l.b16 %v377
        %v568 = vunpack.c.h.b16 %v377
        %v569 = vunpack.c.l.b16 %v378
        %v570 = vunpack.c.h.b16 %v378
        %v571 = vunpack.c.l.b16 %v379
        %v572 = vunpack.c.h.b16 %v379
        %v573 = vunpack.c.l.b16 %v380
        %v574 = vunpack.c.h.b16 %v380
        %v575 = vunpack.c.l.b16 %v381
        %v576 = vunpack.c.h.b16 %v381
        %v577 = vunpack.c.l.b16 %v382
        %v578 = vunpack.c.h.b16 %v382
        %v579 = vunpack.c.l.b16 %v383
        %v580 = vunpack.c.h.b16 %v383
        %v581 = vunpack.c.l.b16 %v384
        %v582 = vunpack.c.h.b16 %v384
        %v583 = vpack.c.b16 %v471, %v455
        %v584 = vpack.c.b16 %v472, %v456
        %v585 = vpack.c.b16 %v473, %v457
        %v586 = vpack.c.b16 %v474, %v458
        %v587 = vpack.c.b16 %v475, %v459
        %v588 = vpack.c.b16 %v476, %v460
        %v589 = vpack.c.b16 %v477, %v461
        %v590 = vpack.c.b16 %v478, %v462
        %v591 = vpack.c.b16 %v479, %v463
        %v592 = vpack.c.b16 %v480, %v464
        %v593 = vpack.c.b16 %v481, %v465
        %v594 = vpack.c.b16 %v482, %v466
        %v595 = vpack.c.b16 %v483, %v467
        %v596 = vpack.c.b16 %v484, %v468
        %v597 = vpack.c.b16 %v485, %v469
        %v598 = vpack.c.b16 %v486, %v470
        %v599 = vpack.c.b16 %v503, %v487
        %v600 = vpack.c.b16 %v504, %v488
        %v601 = vpack.c.b16 %v505, %v489
        %v602 = vpack.c.b16 %v506, %v490
        %v603 = vpack.c.b16 %v507, %v491
        %v604 = vpack.c.b16 %v508, %v492
        %v605 = vpack.c.b16 %v509, %v493
        %v606 = vpack.c.b16 %v510, %v494
        %v607 = vpack.c.b16 %v511, %v495
        %v608 = vpack.c.b16 %v512, %v496
        %v609 = vpack.c.b16 %v513, %v497
        %v610 = vpack.c.b16 %v514, %v498
        %v611 = vpack.c.b16 %v515, %v499
        %v612 = vpack.c.b16 %v516, %v500
        %v613 = vpack.c.b16 %v517, %v501
        %v614 = vpack.c.b16 %v518, %v502
        %v615 = vpack.c.b16 %v535, %v519
        %v616 = vpack.c.b16 %v536, %v520
        %v617 = vpack.c.b16 %v537, %v521
        %v618 = vpack.c.b16 %v538, %v522
        %v619 = vpack.c.b16 %v539, %v523
        %v620 = vpack.c.b16 %v540, %v524
        %v621 = vpack.c.b16 %v541, %v525
        %v622 = vpack.c.b16 %v542, %v526
        %v623 = vpack.c.b16 %v543, %v527
        %v624 = vpack.c.b16 %v544, %v528
        %v625 = vpack.c.b16 %v545, %v529
        %v626 = vpack.c.b16 %v546, %v530
        %v627 = vpack.c.b16 %v547, %v531
        %v628 = vpack.c.b16 %v548, %v532
        %v629 = vpack.c.b16 %v549, %v533
        %v630 = vpack.c.b16 %v550, %v534
        %v631 = vpack.c.b16 %v567, %v551
        %v632 = vpack.c.b16 %v568, %v552
        %v633 = vpack.c.b16 %v569, %v553
        %v634 = vpack.c.b16 %v570, %v554
        %v635 = vpack.c.b16 %v571, %v555
        %v636 = vpack.c.b16 %v572, %v556
        %v637 = vpack.c.b16 %v573, %v557
        %v638 = vpack.c.b16 %v574, %v558
        %v639 = vpack.c.b16 %v575, %v559
        %v640 = vpack.c.b16 %v576, %v560
        %v641 = vpack.c.b16 %v577, %v561
        %v642 = vpack.c.b16 %v578, %v562
        %v643 = vpack.c.b16 %v579, %v563
        %v644 = vpack.c.b16 %v580, %v564
        %v645 = vpack.c.b16 %v581, %v565
        %v646 = vpack.c.b16 %v582, %v566
        %vm711 = vcmask 523264
        %v713 = vsel %vm711, %v320, 0
        %715 = vmatprep.subr.bf16.mxu0 0
        %716 = vmatpush1.bf16.msra.mxu0 0
        %717 = vmatprep.subr.bf16.mxu0 0
        %718 = vmatpush1.bf16.msra.mxu0 0
        %719 = vmatprep.subr.bf16.mxu0 0
        %720 = vmatpush1.bf16.msra.mxu0 0
        %721 = vmatprep.subr.bf16.mxu0 0
        %722 = vmatpush1.bf16.msra.mxu0 0
        %723 = vmatprep.subr.bf16.mxu0 %v632
        %724 = vmatpush1.bf16.msra.mxu0 %v631
        %725 = vmatprep.subr.bf16.mxu0 %v616
        %726 = vmatpush1.bf16.msra.mxu0 %v615
        %727 = vmatprep.subr.bf16.mxu0 %v600
        %728 = vmatpush1.bf16.msra.mxu0 %v599
        %729 = vmatprep.subr.bf16.mxu0 %v584
        %730 = vmatpush1.bf16.msra.mxu0 %v583
        %731 = vmatprep.subr.bf16.mxu0 0
        %732 = vmatpush2.bf16.msra.mxu0 0
        %733 = vmatprep.subr.bf16.mxu0 0
        %734 = vmatpush2.bf16.msra.mxu0 0
        %735 = vmatprep.subr.bf16.mxu0 0
        %736 = vmatpush2.bf16.msra.mxu0 0
        %737 = vmatprep.subr.bf16.mxu0 0
        %738 = vmatpush2.bf16.msra.mxu0 0
        %739 = vmatprep.subr.bf16.mxu0 0
        %740 = vmatpush2.bf16.msra.mxu0 0
        %741 = vmatprep.subr.bf16.mxu0 0
        %742 = vmatpush2.bf16.msra.mxu0 0
        %743 = vmatprep.subr.bf16.mxu0 0
        %744 = vmatpush2.bf16.msra.mxu0 0
        %745 = vmatprep.subr.bf16.mxu0 0
        %746 = vmatpush2.bf16.msra.mxu0 0
        %747 = vmatprep.mubr.bf16.mxu0 0
        %748 = vmatmul.mubr.bf16.gmra.mxu0 %v713
        %v749 = vpop.f32.mrf.mxu0
        %v750 = vadd.f32 %v389, %v749
        %v751 = vpop.f32.mrf.mxu0
        %v752 = vadd.f32 %v389, %v751
        %v753 = vpop.f32.mrf.mxu0
        %v754 = vpop.f32.mrf.mxu0
        %755 = vdwg.mxu0
        %756 = vmatprep.subr.bf16.mxu0 0
        %757 = vmatpush1.bf16.msra.mxu0 0
        %758 = vmatprep.subr.bf16.mxu0 0
        %759 = vmatpush1.bf16.msra.mxu0 0
        %760 = vmatprep.subr.bf16.mxu0 0
        %761 = vmatpush1.bf16.msra.mxu0 0
        %762 = vmatprep.subr.bf16.mxu0 0
        %763 = vmatpush1.bf16.msra.mxu0 0
        %764 = vmatprep.subr.bf16.mxu0 %v634
        %765 = vmatpush1.bf16.msra.mxu0 %v633
        %766 = vmatprep.subr.bf16.mxu0 %v618
        %767 = vmatpush1.bf16.msra.mxu0 %v617
        %768 = vmatprep.subr.bf16.mxu0 %v602
        %769 = vmatpush1.bf16.msra.mxu0 %v601
        %770 = vmatprep.subr.bf16.mxu0 %v586
        %771 = vmatpush1.bf16.msra.mxu0 %v585
        %772 = vmatprep.subr.bf16.mxu0 0
        %773 = vmatpush2.bf16.msra.mxu0 0
        %774 = vmatprep.subr.bf16.mxu0 0
        %775 = vmatpush2.bf16.msra.mxu0 0
        %776 = vmatprep.subr.bf16.mxu0 0
        %777 = vmatpush2.bf16.msra.mxu0 0
        %778 = vmatprep.subr.bf16.mxu0 0
        %779 = vmatpush2.bf16.msra.mxu0 0
        %780 = vmatprep.subr.bf16.mxu0 0
        %781 = vmatpush2.bf16.msra.mxu0 0
        %782 = vmatprep.subr.bf16.mxu0 0
        %783 = vmatpush2.bf16.msra.mxu0 0
        %784 = vmatprep.subr.bf16.mxu0 0
        %785 = vmatpush2.bf16.msra.mxu0 0
        %786 = vmatprep.subr.bf16.mxu0 0
        %787 = vmatpush2.bf16.msra.mxu0 0
        %788 = vmatprep.mubr.bf16.mxu0 0
        %789 = vmatmul.mubr.bf16.gmra.mxu0 %v713
        %v790 = vpop.f32.mrf.mxu0
        %v791 = vadd.f32 %v389, %v790
        %v792 = vpop.f32.mrf.mxu0
        %v793 = vadd.f32 %v389, %v792
        %v794 = vpop.f32.mrf.mxu0
        %v795 = vpop.f32.mrf.mxu0
        %796 = vdwg.mxu0
        %797 = vmatprep.subr.bf16.mxu0 0
        %798 = vmatpush1.bf16.msra.mxu0 0
        %799 = vmatprep.subr.bf16.mxu0 0
        %800 = vmatpush1.bf16.msra.mxu0 0
        %801 = vmatprep.subr.bf16.mxu0 0
        %802 = vmatpush1.bf16.msra.mxu0 0
        %803 = vmatprep.subr.bf16.mxu0 0
        %804 = vmatpush1.bf16.msra.mxu0 0
        %805 = vmatprep.subr.bf16.mxu0 %v636
        %806 = vmatpush1.bf16.msra.mxu0 %v635
        %807 = vmatprep.subr.bf16.mxu0 %v620
        %808 = vmatpush1.bf16.msra.mxu0 %v619
        %809 = vmatprep.subr.bf16.mxu0 %v604
        %810 = vmatpush1.bf16.msra.mxu0 %v603
        %811 = vmatprep.subr.bf16.mxu0 %v588
        %812 = vmatpush1.bf16.msra.mxu0 %v587
        %813 = vmatprep.subr.bf16.mxu0 0
        %814 = vmatpush2.bf16.msra.mxu0 0
        %815 = vmatprep.subr.bf16.mxu0 0
        %816 = vmatpush2.bf16.msra.mxu0 0
        %817 = vmatprep.subr.bf16.mxu0 0
        %818 = vmatpush2.bf16.msra.mxu0 0
        %819 = vmatprep.subr.bf16.mxu0 0
        %820 = vmatpush2.bf16.msra.mxu0 0
        %821 = vmatprep.subr.bf16.mxu0 0
        %822 = vmatpush2.bf16.msra.mxu0 0
        %823 = vmatprep.subr.bf16.mxu0 0
        %824 = vmatpush2.bf16.msra.mxu0 0
        %825 = vmatprep.subr.bf16.mxu0 0
        %826 = vmatpush2.bf16.msra.mxu0 0
        %827 = vmatprep.subr.bf16.mxu0 0
        %828 = vmatpush2.bf16.msra.mxu0 0
        %829 = vmatprep.mubr.bf16.mxu0 0
        %830 = vmatmul.mubr.bf16.gmra.mxu0 %v713
        %v831 = vpop.f32.mrf.mxu0
        %v832 = vadd.f32 %v389, %v831
        %v833 = vpop.f32.mrf.mxu0
        %v834 = vadd.f32 %v389, %v833
        %v835 = vpop.f32.mrf.mxu0
        %v836 = vpop.f32.mrf.mxu0
        %837 = vdwg.mxu0
        %838 = vmatprep.subr.bf16.mxu0 0
        %839 = vmatpush1.bf16.msra.mxu0 0
        %840 = vmatprep.subr.bf16.mxu0 0
        %841 = vmatpush1.bf16.msra.mxu0 0
        %842 = vmatprep.subr.bf16.mxu0 0
        %843 = vmatpush1.bf16.msra.mxu0 0
        %844 = vmatprep.subr.bf16.mxu0 0
        %845 = vmatpush1.bf16.msra.mxu0 0
        %846 = vmatprep.subr.bf16.mxu0 %v638
        %847 = vmatpush1.bf16.msra.mxu0 %v637
        %848 = vmatprep.subr.bf16.mxu0 %v622
        %849 = vmatpush1.bf16.msra.mxu0 %v621
        %850 = vmatprep.subr.bf16.mxu0 %v606
        %851 = vmatpush1.bf16.msra.mxu0 %v605
        %852 = vmatprep.subr.bf16.mxu0 %v590
        %853 = vmatpush1.bf16.msra.mxu0 %v589
        %854 = vmatprep.subr.bf16.mxu0 0
        %855 = vmatpush2.bf16.msra.mxu0 0
        %856 = vmatprep.subr.bf16.mxu0 0
        %857 = vmatpush2.bf16.msra.mxu0 0
        %858 = vmatprep.subr.bf16.mxu0 0
        %859 = vmatpush2.bf16.msra.mxu0 0
        %860 = vmatprep.subr.bf16.mxu0 0
        %861 = vmatpush2.bf16.msra.mxu0 0
        %862 = vmatprep.subr.bf16.mxu0 0
        %863 = vmatpush2.bf16.msra.mxu0 0
        %864 = vmatprep.subr.bf16.mxu0 0
        %865 = vmatpush2.bf16.msra.mxu0 0
        %866 = vmatprep.subr.bf16.mxu0 0
        %867 = vmatpush2.bf16.msra.mxu0 0
        %868 = vmatprep.subr.bf16.mxu0 0
        %869 = vmatpush2.bf16.msra.mxu0 0
        %870 = vmatprep.mubr.bf16.mxu0 0
        %871 = vmatmul.mubr.bf16.gmra.mxu0 %v713
        %v872 = vpop.f32.mrf.mxu0
        %v873 = vadd.f32 %v389, %v872
        %v874 = vpop.f32.mrf.mxu0
        %v875 = vadd.f32 %v389, %v874
        %v876 = vpop.f32.mrf.mxu0
        %v877 = vpop.f32.mrf.mxu0
        %878 = vdwg.mxu0
        %879 = vmatprep.subr.bf16.mxu0 0
        %880 = vmatpush1.bf16.msra.mxu0 0
        %881 = vmatprep.subr.bf16.mxu0 0
        %882 = vmatpush1.bf16.msra.mxu0 0
        %883 = vmatprep.subr.bf16.mxu0 0
        %884 = vmatpush1.bf16.msra.mxu0 0
        %885 = vmatprep.subr.bf16.mxu0 0
        %886 = vmatpush1.bf16.msra.mxu0 0
        %887 = vmatprep.subr.bf16.mxu0 %v640
        %888 = vmatpush1.bf16.msra.mxu0 %v639
        %889 = vmatprep.subr.bf16.mxu0 %v624
        %890 = vmatpush1.bf16.msra.mxu0 %v623
        %891 = vmatprep.subr.bf16.mxu0 %v608
        %892 = vmatpush1.bf16.msra.mxu0 %v607
        %893 = vmatprep.subr.bf16.mxu0 %v592
        %894 = vmatpush1.bf16.msra.mxu0 %v591
        %895 = vmatprep.subr.bf16.mxu0 0
        %896 = vmatpush2.bf16.msra.mxu0 0
        %897 = vmatprep.subr.bf16.mxu0 0
        %898 = vmatpush2.bf16.msra.mxu0 0
        %899 = vmatprep.subr.bf16.mxu0 0
        %900 = vmatpush2.bf16.msra.mxu0 0
        %901 = vmatprep.subr.bf16.mxu0 0
        %902 = vmatpush2.bf16.msra.mxu0 0
        %903 = vmatprep.subr.bf16.mxu0 0
        %904 = vmatpush2.bf16.msra.mxu0 0
        %905 = vmatprep.subr.bf16.mxu0 0
        %906 = vmatpush2.bf16.msra.mxu0 0
        %907 = vmatprep.subr.bf16.mxu0 0
        %908 = vmatpush2.bf16.msra.mxu0 0
        %909 = vmatprep.subr.bf16.mxu0 0
        %910 = vmatpush2.bf16.msra.mxu0 0
        %911 = vmatprep.mubr.bf16.mxu0 0
        %912 = vmatmul.mubr.bf16.gmra.mxu0 %v713
        %v913 = vpop.f32.mrf.mxu0
        %v914 = vadd.f32 %v389, %v913
        %v915 = vpop.f32.mrf.mxu0
        %v916 = vadd.f32 %v389, %v915
        %v917 = vpop.f32.mrf.mxu0
        %v918 = vpop.f32.mrf.mxu0
        %919 = vdwg.mxu0
        %920 = vmatprep.subr.bf16.mxu0 0
        %921 = vmatpush1.bf16.msra.mxu0 0
        %922 = vmatprep.subr.bf16.mxu0 0
        %923 = vmatpush1.bf16.msra.mxu0 0
        %924 = vmatprep.subr.bf16.mxu0 0
        %925 = vmatpush1.bf16.msra.mxu0 0
        %926 = vmatprep.subr.bf16.mxu0 0
        %927 = vmatpush1.bf16.msra.mxu0 0
        %928 = vmatprep.subr.bf16.mxu0 %v642
        %929 = vmatpush1.bf16.msra.mxu0 %v641
        %930 = vmatprep.subr.bf16.mxu0 %v626
        %931 = vmatpush1.bf16.msra.mxu0 %v625
        %932 = vmatprep.subr.bf16.mxu0 %v610
        %933 = vmatpush1.bf16.msra.mxu0 %v609
        %934 = vmatprep.subr.bf16.mxu0 %v594
        %935 = vmatpush1.bf16.msra.mxu0 %v593
        %936 = vmatprep.subr.bf16.mxu0 0
        %937 = vmatpush2.bf16.msra.mxu0 0
        %938 = vmatprep.subr.bf16.mxu0 0
        %939 = vmatpush2.bf16.msra.mxu0 0
        %940 = vmatprep.subr.bf16.mxu0 0
        %941 = vmatpush2.bf16.msra.mxu0 0
        %942 = vmatprep.subr.bf16.mxu0 0
        %943 = vmatpush2.bf16.msra.mxu0 0
        %944 = vmatprep.subr.bf16.mxu0 0
        %945 = vmatpush2.bf16.msra.mxu0 0
        %946 = vmatprep.subr.bf16.mxu0 0
        %947 = vmatpush2.bf16.msra.mxu0 0
        %948 = vmatprep.subr.bf16.mxu0 0
        %949 = vmatpush2.bf16.msra.mxu0 0
        %950 = vmatprep.subr.bf16.mxu0 0
        %951 = vmatpush2.bf16.msra.mxu0 0
        %952 = vmatprep.mubr.bf16.mxu0 0
        %953 = vmatmul.mubr.bf16.gmra.mxu0 %v713
        %v954 = vpop.f32.mrf.mxu0
        %v955 = vadd.f32 %v389, %v954
        %v956 = vpop.f32.mrf.mxu0
        %v957 = vadd.f32 %v389, %v956
        %v958 = vpop.f32.mrf.mxu0
        %v959 = vpop.f32.mrf.mxu0
        %960 = vdwg.mxu0
        %961 = vmatprep.subr.bf16.mxu0 0
        %962 = vmatpush1.bf16.msra.mxu0 0
        %963 = vmatprep.subr.bf16.mxu0 0
        %964 = vmatpush1.bf16.msra.mxu0 0
        %965 = vmatprep.subr.bf16.mxu0 0
        %966 = vmatpush1.bf16.msra.mxu0 0
        %967 = vmatprep.subr.bf16.mxu0 0
        %968 = vmatpush1.bf16.msra.mxu0 0
        %969 = vmatprep.subr.bf16.mxu0 %v644
        %970 = vmatpush1.bf16.msra.mxu0 %v643
        %971 = vmatprep.subr.bf16.mxu0 %v628
        %972 = vmatpush1.bf16.msra.mxu0 %v627
        %973 = vmatprep.subr.bf16.mxu0 %v612
        %974 = vmatpush1.bf16.msra.mxu0 %v611
        %975 = vmatprep.subr.bf16.mxu0 %v596
        %976 = vmatpush1.bf16.msra.mxu0 %v595
        %977 = vmatprep.subr.bf16.mxu0 0
        %978 = vmatpush2.bf16.msra.mxu0 0
        %979 = vmatprep.subr.bf16.mxu0 0
        %980 = vmatpush2.bf16.msra.mxu0 0
        %981 = vmatprep.subr.bf16.mxu0 0
        %982 = vmatpush2.bf16.msra.mxu0 0
        %983 = vmatprep.subr.bf16.mxu0 0
        %984 = vmatpush2.bf16.msra.mxu0 0
        %985 = vmatprep.subr.bf16.mxu0 0
        %986 = vmatpush2.bf16.msra.mxu0 0
        %987 = vmatprep.subr.bf16.mxu0 0
        %988 = vmatpush2.bf16.msra.mxu0 0
        %989 = vmatprep.subr.bf16.mxu0 0
        %990 = vmatpush2.bf16.msra.mxu0 0
        %991 = vmatprep.subr.bf16.mxu0 0
        %992 = vmatpush2.bf16.msra.mxu0 0
        %993 = vmatprep.mubr.bf16.mxu0 0
        %994 = vmatmul.mubr.bf16.gmra.mxu0 %v713
        %v995 = vpop.f32.mrf.mxu0
        %v996 = vadd.f32 %v389, %v995
        %v997 = vpop.f32.mrf.mxu0
        %v998 = vadd.f32 %v389, %v997
        %v999 = vpop.f32.mrf.mxu0
        %v1000 = vpop.f32.mrf.mxu0
        %1001 = vdwg.mxu0
        %1002 = vmatprep.subr.bf16.mxu0 0
        %1003 = vmatpush1.bf16.msra.mxu0 0
        %1004 = vmatprep.subr.bf16.mxu0 0
        %1005 = vmatpush1.bf16.msra.mxu0 0
        %1006 = vmatprep.subr.bf16.mxu0 0
        %1007 = vmatpush1.bf16.msra.mxu0 0
        %1008 = vmatprep.subr.bf16.mxu0 0
        %1009 = vmatpush1.bf16.msra.mxu0 0
        %1010 = vmatprep.subr.bf16.mxu0 %v646
        %1011 = vmatpush1.bf16.msra.mxu0 %v645
        %1012 = vmatprep.subr.bf16.mxu0 %v630
        %1013 = vmatpush1.bf16.msra.mxu0 %v629
        %1014 = vmatprep.subr.bf16.mxu0 %v614
        %1015 = vmatpush1.bf16.msra.mxu0 %v613
        %1016 = vmatprep.subr.bf16.mxu0 %v598
        %1017 = vmatpush1.bf16.msra.mxu0 %v597
        %1018 = vmatprep.subr.bf16.mxu0 0
        %1019 = vmatpush2.bf16.msra.mxu0 0
        %1020 = vmatprep.subr.bf16.mxu0 0
        %1021 = vmatpush2.bf16.msra.mxu0 0
        %1022 = vmatprep.subr.bf16.mxu0 0
        %1023 = vmatpush2.bf16.msra.mxu0 0
        %1024 = vmatprep.subr.bf16.mxu0 0
        %1025 = vmatpush2.bf16.msra.mxu0 0
        %1026 = vmatprep.subr.bf16.mxu0 0
        %1027 = vmatpush2.bf16.msra.mxu0 0
        %1028 = vmatprep.subr.bf16.mxu0 0
        %1029 = vmatpush2.bf16.msra.mxu0 0
        %1030 = vmatprep.subr.bf16.mxu0 0
        %1031 = vmatpush2.bf16.msra.mxu0 0
        %1032 = vmatprep.subr.bf16.mxu0 0
        %1033 = vmatpush2.bf16.msra.mxu0 0
        %1034 = vmatprep.mubr.bf16.mxu0 0
        %1035 = vmatmul.mubr.bf16.gmra.mxu0 %v713
        %v1036 = vpop.f32.mrf.mxu0
        %v1037 = vadd.f32 %v389, %v1036
        %v1038 = vpop.f32.mrf.mxu0
        %v1039 = vadd.f32 %v389, %v1038
        %v1040 = vpop.f32.mrf.mxu0
        %v1041 = vpop.f32.mrf.mxu0
        %1042 = vdwg.mxu0
        %vm1043 = vcmp.gt.f32.partialorder %v750, 0.0
        %vm1044 = vcmp.gt.f32.partialorder %v752, 0.0
        %vm1045 = vcmp.gt.f32.partialorder %v791, 0.0
        %vm1046 = vcmp.gt.f32.partialorder %v793, 0.0
        %vm1047 = vcmp.gt.f32.partialorder %v832, 0.0
        %vm1048 = vcmp.gt.f32.partialorder %v834, 0.0
        %vm1049 = vcmp.gt.f32.partialorder %v873, 0.0
        %vm1050 = vcmp.gt.f32.partialorder %v875, 0.0
        %vm1051 = vcmp.gt.f32.partialorder %v914, 0.0
        %vm1052 = vcmp.gt.f32.partialorder %v916, 0.0
        %vm1053 = vcmp.gt.f32.partialorder %v955, 0.0
        %vm1054 = vcmp.gt.f32.partialorder %v957, 0.0
        %vm1055 = vcmp.gt.f32.partialorder %v996, 0.0
        %vm1056 = vcmp.gt.f32.partialorder %v998, 0.0
        %vm1057 = vcmp.gt.f32.partialorder %v1037, 0.0
        %vm1058 = vcmp.gt.f32.partialorder %v1039, 0.0
        %v1059 = vmul.f32 %v750, 0.2
        %v1060 = vmul.f32 %v752, 0.2
        %v1061 = vmul.f32 %v791, 0.2
        %v1062 = vmul.f32 %v793, 0.2
        %v1063 = vmul.f32 %v832, 0.2
        %v1064 = vmul.f32 %v834, 0.2
        %v1065 = vmul.f32 %v873, 0.2
        %v1066 = vmul.f32 %v875, 0.2
        %v1067 = vmul.f32 %v914, 0.2
        %v1068 = vmul.f32 %v916, 0.2
        %v1069 = vmul.f32 %v955, 0.2
        %v1070 = vmul.f32 %v957, 0.2
        %v1071 = vmul.f32 %v996, 0.2
        %v1072 = vmul.f32 %v998, 0.2
        %v1073 = vmul.f32 %v1037, 0.2
        %v1074 = vmul.f32 %v1039, 0.2
        %v1075 = vsel %vm1043, %v750, %v1059
        %v1076 = vsel %vm1044, %v752, %v1060
        %v1077 = vsel %vm1045, %v791, %v1061
        %v1078 = vsel %vm1046, %v793, %v1062
        %v1079 = vsel %vm1047, %v832, %v1063
        %v1080 = vsel %vm1048, %v834, %v1064
        %v1081 = vsel %vm1049, %v873, %v1065
        %v1082 = vsel %vm1050, %v875, %v1066
        %v1083 = vsel %vm1051, %v914, %v1067
        %v1084 = vsel %vm1052, %v916, %v1068
        %v1085 = vsel %vm1053, %v955, %v1069
        %v1086 = vsel %vm1054, %v957, %v1070
        %v1087 = vsel %vm1055, %v996, %v1071
        %v1088 = vsel %vm1056, %v998, %v1072
        %v1089 = vsel %vm1057, %v1037, %v1073
        %v1090 = vsel %vm1058, %v1039, %v1074
        %v1091 = vpack.c.bf16 %v1075, %v1075
        %v1092 = vpack.c.bf16 %v1076, %v1076
        %v1093 = vpack.c.bf16 %v1077, %v1077
        %v1094 = vpack.c.bf16 %v1078, %v1078
        %v1095 = vpack.c.bf16 %v1079, %v1079
        %v1096 = vpack.c.bf16 %v1080, %v1080
        %v1097 = vpack.c.bf16 %v1081, %v1081
        %v1098 = vpack.c.bf16 %v1082, %v1082
        %v1099 = vpack.c.bf16 %v1083, %v1083
        %v1100 = vpack.c.bf16 %v1084, %v1084
        %v1101 = vpack.c.bf16 %v1085, %v1085
        %v1102 = vpack.c.bf16 %v1086, %v1086
        %v1103 = vpack.c.bf16 %v1087, %v1087
        %v1104 = vpack.c.bf16 %v1088, %v1088
        %v1105 = vpack.c.bf16 %v1089, %v1089
        %v1106 = vpack.c.bf16 %v1090, %v1090
        %v1123 = vunpack.c.l.b16 %v1091
        %v1124 = vunpack.c.l.b16 %v1092
        %v1125 = vunpack.c.l.b16 %v1093
        %v1126 = vunpack.c.l.b16 %v1094
        %v1127 = vunpack.c.l.b16 %v1095
        %v1128 = vunpack.c.l.b16 %v1096
        %v1129 = vunpack.c.l.b16 %v1097
        %v1130 = vunpack.c.l.b16 %v1098
        %v1131 = vunpack.c.l.b16 %v1099
        %v1132 = vunpack.c.l.b16 %v1100
        %v1133 = vunpack.c.l.b16 %v1101
        %v1134 = vunpack.c.l.b16 %v1102
        %v1135 = vunpack.c.l.b16 %v1103
        %v1136 = vunpack.c.l.b16 %v1104
        %v1137 = vunpack.c.l.b16 %v1105
        %v1138 = vunpack.c.l.b16 %v1106
        %v1139 = vpack.c.b16 %v1124, %v1123
        %v1140 = vpack.c.b16 %v1126, %v1125
        %v1141 = vpack.c.b16 %v1128, %v1127
        %v1142 = vpack.c.b16 %v1130, %v1129
        %v1143 = vpack.c.b16 %v1132, %v1131
        %v1144 = vpack.c.b16 %v1134, %v1133
        %v1145 = vpack.c.b16 %v1136, %v1135
        %v1146 = vpack.c.b16 %v1138, %v1137
        %1155 = vst [vmem:[%s317] sm:$0xff] %v1139
        %1156 = vst [vmem:[%s317 + $0x8] sm:$0xff] %v1140
        %1157 = vst [vmem:[%s317 + $0x10] sm:$0xff] %v1141
        %1158 = vst [vmem:[%s317 + $0x18] sm:$0xff] %v1142
        %1159 = vst [vmem:[%s317 + $0x20] sm:$0xff] %v1143
        %1160 = vst [vmem:[%s317 + $0x28] sm:$0xff] %v1144
        %1161 = vst [vmem:[%s317 + $0x30] sm:$0xff] %v1145
        %1162 = vst [vmem:[%s317 + $0x38] sm:$0xff] %v1146
        %s1163 = smul.u32 16, %s14
        %p1164 = scmp.lt.s32.totalorder %s1163, 63
        %s1165 = scalar_select %p1164, %s1163, 63
        %s1166 = smul.addr %s1165, 4
        %s1167 = scalar_lea.vmem %s3, %s1166
        // Predicated region
        $region56: #{discriminator_forward.7} parent=50 // pred_check
          %p1168 = pneg %p100
        $region57: #{discriminator_forward.7} parent=50 // pred_check_branch
          %1170 = sbr.rel (%p1168) target = $region59
        $region58: #{discriminator_forward.7} parent=50 // pred_region
          %s1171 = smul.u32 16, %s14
        $region59: #{discriminator_forward.7} parent=50 // pred_fallthru
          _
      $region51: #{discriminator_forward.7} parent=5 // pred_fallthru
        _
      %p1172 = scmp.le.s32.totalorder 2, %s9
      // Predicated region
      $region60: #{discriminator_forward.7} parent=5 // pred_check
        %p1173 = pneg %p1172
      $region61: #{discriminator_forward.7} parent=5 // pred_check_branch
        %1175 = sbr.rel (%p1173) target = $region63
      $region62: #{discriminator_forward.7} parent=5 // pred_region
        %s1176 = ssub.s32 %s9, 2
        // Predicated region
        $region64: #{discriminator_forward.7} parent=62 // pred_check
          %p1177 = pneg %p106
        $region65: #{discriminator_forward.7} parent=62 // pred_check_branch
          %1179 = sbr.rel (%p1177) target = $region67
        $region66: #{discriminator_forward.7} parent=62 // pred_region
          %s1180 = smul.u32 16, %s15
          %p1181 = scmp.lt.s32.totalorder %s1180, 63
          %s1182 = scalar_select %p1181, %s1180, 63
          %s1183 = smul.addr %s1182, 4
          %s1184 = scalar_lea.vmem %s3, %s1183
        $region67: #{discriminator_forward.7} parent=62 // pred_fallthru
          _
      $region63: #{discriminator_forward.7} parent=5 // pred_fallthru
        _
    $region6: #{discriminator_forward.7} parent=1 // loop_footer
      %s13 = sadd.s32 1, %s9
    $region7: #{discriminator_forward.7} parent=1 // loop_footer_branch
      %8 = sbr.rel target = $region3
    $region8: #{discriminator_forward.7} parent=1 // loop_exit
      _

// kernel: discriminator_forward.8
$region0: #{discriminator_forward.8}
  #allocation0 [shape = 'u32[]', space=smem, size = 0x4, offset = 0x4, fixed_abs, tag = 'smem constant byte address 0x4 - core index']
  #allocation1 [shape = 'u32[144,128]{1,0:T(1,128)}', space=vmem, size = 0x12000, scoped, tag = 'internal scratch']
  %s0 = inlined_call_operand.vmem [shape: bf16[16,128], index: 0, kind: input, shape index: {}]
  %s1 = inlined_call_operand.vmem [shape: bf16[128,2048], index: 1, kind: input, shape index: {}]
  %s2 = inlined_call_operand.vmem [shape: f32[16,1], index: 2, kind: input, shape index: {}]
  %s3 = inlined_call_operand.vmem [shape: bf16[16,2048], index: 3, kind: output, shape index: {}]
  %s4 = sld [smem:[#allocation0]]
  $region87: #{discriminator_forward.8} parent=0
    _
  %s6 = ssub.s32 1, %s4
  %s7 = scalar_select 0, %s6, %s4
  $region1: #{discriminator_forward.8} parent=0
    #allocation2 [shape = 'u8[524288]{0}', space=vmem, size = 0x80000, scoped, tag = 'input window, operand 1']
    #allocation3 [shape = 'u8[65536]{0}', space=vmem, size = 0x10000, scoped, tag = 'output window, operand 0']
    loop: start=0, step=1, limit=4
    $region2: #{discriminator_forward.8} parent=1 // loop_pre_header
      _
    $region3: #{discriminator_forward.8} parent=1 // loop_header
      %s9 = sphi 0, %s13
      %p10 = scmp.ge.s32.totalorder %s9, 4
      %s17 = sphi 0, %s17
      %s19 = sphi 0, %s17
      %s20 = sphi 0, %s19
      %s34 = sphi 0, %s20
      %s40 = sphi 0, %s42
      %s43 = sphi 0, %s40
      %s44 = sphi 0, %s43
      %s60 = sphi 0, %s44
      %s64 = sphi 0, %s64
      %s66 = sphi 0, %s64
      %s67 = sphi 0, %s66
      %s81 = sphi 0, %s67
      %s87 = sphi 0, %s89
      %s90 = sphi 0, %s87
      %s91 = sphi 0, %s90
      %s107 = sphi 0, %s91
    $region4: #{discriminator_forward.8} parent=1 // loop_header_branch
      %12 = sbr.rel (%p10) target = $region8
    $region5: #{discriminator_forward.8} parent=1 // loop_body
      %s14 = ssub.s32 %s9, 1
      %s15 = ssub.s32 %s9, 2
      %s16 = sadd.s32 %s9, 1
      %s18 = sadd.s32 %s17, 1
      %p21 = scmp.eq.s32.totalorder %s9, 1
      %p22 = scmp.ne.s32.totalorder %s17, %s19
      %p23 = scmp.eq.s32.totalorder %s9, 0
      %p24 = por %p22, %p23
      %p25 = scmp.ne.s32.totalorder %s17, %s19
      %p26 = scmp.eq.s32.totalorder %s14, 1
      %p27 = por %p25, %p26
      %p28 = scmp.ne.s32.totalorder %s19, %s20
      %p29 = scmp.eq.s32.totalorder %s14, 0
      %p30 = por %p28, %p29
      %p31 = scmp.ne.s32.totalorder %s19, %s20
      %p32 = scmp.eq.s32.totalorder %s15, 1
      %p33 = por %p31, %p32
      %p35 = scmp.ne.s32.totalorder %s20, %s34
      %p36 = scmp.eq.s32.totalorder %s15, 0
      %p37 = por %p35, %p36
      %s38 = ssub.s32 %s9, %s16
      %p39 = scmp.eq.s32.totalorder %s38, 0
      %s41 = sadd.s32 %s40, 1
      %s42 = scalar_select %p39, %s40, %s41
      %p45 = pneg %p39
      %p46 = scmp.eq.s32.totalorder %s9, 1
      %p47 = por %p45, %p46
      %p48 = scmp.ne.s32.totalorder %s40, %s43
      %p49 = scmp.eq.s32.totalorder %s9, 0
      %p50 = por %p48, %p49
      %p51 = scmp.ne.s32.totalorder %s40, %s43
      %p52 = scmp.eq.s32.totalorder %s14, 1
      %p53 = por %p51, %p52
      %p54 = scmp.ne.s32.totalorder %s43, %s44
      %p55 = scmp.eq.s32.totalorder %s14, 0
      %p56 = por %p54, %p55
      %p57 = scmp.ne.s32.totalorder %s43, %s44
      %p58 = scmp.eq.s32.totalorder %s15, 1
      %p59 = por %p57, %p58
      %p61 = scmp.ne.s32.totalorder %s44, %s60
      %p62 = scmp.eq.s32.totalorder %s15, 0
      %p63 = por %p61, %p62
      %s65 = sadd.s32 %s64, 1
      %p68 = scmp.eq.s32.totalorder %s9, 1
      %p69 = scmp.ne.s32.totalorder %s64, %s66
      %p70 = scmp.eq.s32.totalorder %s9, 0
      %p71 = por %p69, %p70
      %p72 = scmp.ne.s32.totalorder %s64, %s66
      %p73 = scmp.eq.s32.totalorder %s14, 1
      %p74 = por %p72, %p73
      %p75 = scmp.ne.s32.totalorder %s66, %s67
      %p76 = scmp.eq.s32.totalorder %s14, 0
      %p77 = por %p75, %p76
      %p78 = scmp.ne.s32.totalorder %s66, %s67
      %p79 = scmp.eq.s32.totalorder %s15, 1
      %p80 = por %p78, %p79
      %p82 = scmp.ne.s32.totalorder %s67, %s81
      %p83 = scmp.eq.s32.totalorder %s15, 0
      %p84 = por %p82, %p83
      %s85 = ssub.s32 %s9, %s16
      %p86 = scmp.eq.s32.totalorder %s85, 0
      %s88 = sadd.s32 %s87, 1
      %s89 = scalar_select %p86, %s87, %s88
      %p92 = pneg %p86
      %p93 = scmp.eq.s32.totalorder %s9, 1
      %p94 = por %p92, %p93
      %p95 = scmp.ne.s32.totalorder %s87, %s90
      %p96 = scmp.eq.s32.totalorder %s9, 0
      %p97 = por %p95, %p96
      %p98 = scmp.ne.s32.totalorder %s87, %s90
      %p99 = scmp.eq.s32.totalorder %s14, 1
      %p100 = por %p98, %p99
      %p101 = scmp.ne.s32.totalorder %s90, %s91
      %p102 = scmp.eq.s32.totalorder %s14, 0
      %p103 = por %p101, %p102
      %p104 = scmp.ne.s32.totalorder %s90, %s91
      %p105 = scmp.eq.s32.totalorder %s15, 1
      %p106 = por %p104, %p105
      %p108 = scmp.ne.s32.totalorder %s91, %s107
      %p109 = scmp.eq.s32.totalorder %s15, 0
      %p110 = por %p108, %p109
      %p111 = scmp.le.s32.totalorder 1, %s9
      %p112 = scmp.lt.s32.totalorder %s9, 3
      %p113 = pnand %p111, %p112
      %p114 = pneg %p113
      // Predicated region
      $region9: #{discriminator_forward.8} parent=5 // pred_check
        _
      $region10: #{discriminator_forward.8} parent=5 // pred_check_branch
        %116 = sbr.rel (%p113) target = $region12
      $region11: #{discriminator_forward.8} parent=5 // pred_region
        %s117 = ssub.s32 %s9, 1
        // Predicated region
        $region13: #{discriminator_forward.8} parent=11 // pred_check
          %p118 = pneg %p30
        $region14: #{discriminator_forward.8} parent=11 // pred_check_branch
          %120 = sbr.rel (%p118) target = $region16
        $region15: #{discriminator_forward.8} parent=11 // pred_region
          _
        $region16: #{discriminator_forward.8} parent=11 // pred_fallthru
          _
        // Predicated region
        $region17: #{discriminator_forward.8} parent=11 // pred_check
          %p121 = pneg %p77
        $region18: #{discriminator_forward.8} parent=11 // pred_check_branch
          %123 = sbr.rel (%p121) target = $region20
        $region19: #{discriminator_forward.8} parent=11 // pred_region
          _
        $region20: #{discriminator_forward.8} parent=11 // pred_fallthru
          _
      $region12: #{discriminator_forward.8} parent=5 // pred_fallthru
        _
      %p124 = scmp.lt.s32.totalorder %s9, 2
      // Predicated region
      $region21: #{discriminator_forward.8} parent=5 // pred_check
        %p125 = pneg %p124
      $region22: #{discriminator_forward.8} parent=5 // pred_check_branch
        %127 = sbr.rel (%p125) target = $region24
      $region23: #{discriminator_forward.8} parent=5 // pred_region
        // Predicated region
        $region25: #{discriminator_forward.8} parent=23 // pred_check
          %p128 = pneg %p50
        $region26: #{discriminator_forward.8} parent=23 // pred_check_branch
          %130 = sbr.rel (%p128) target = $region28
        $region27: #{discriminator_forward.8} parent=23 // pred_region
          %s131 = sand.u32 %s40, 1
          %s132 = sand.u32 %s40, 1
          %s133 = smul.addr %s132, 512
          %s134 = scalar_lea.vmem [#allocation2], %s133
          %s135 = smul.u32 8, %s9
          %s136 = smul.addr %s135, 4
          %s137 = scalar_lea.vmem %s1, %s136
          // Predicated region
          $region29: #{discriminator_forward.8} parent=27 // pred_check
            _
          $region30: #{discriminator_forward.8} parent=27 // pred_check_branch
            %139 = sbr.rel (0) target = $region32
          $region31: #{discriminator_forward.8} parent=27 // pred_region
            // Predicated region
            $region33: #{discriminator_forward.8} parent=31 // pred_check
              _
            $region34: #{discriminator_forward.8} parent=31 // pred_check_branch
              %141 = sbr.rel (0) target = $region36
            $region35: #{discriminator_forward.8} parent=31 // pred_region
              loop: start=0, step=1, limit=1
              $region37: #{discriminator_forward.8} parent=35 // loop_pre_header
                _
              $region38: #{discriminator_forward.8} parent=35 // loop_header
                %s143 = sphi 0, %s147
                %p144 = scmp.ge.s32.totalorder %s143, 1
                %s148 = sphi %s137, %s137
                %s149 = sphi %s134, %s134
              $region39: #{discriminator_forward.8} parent=35 // loop_header_branch
                %146 = sbr.rel (%p144) target = $region43
              $region40: #{discriminator_forward.8} parent=35 // loop_body
                %v150 = vld [vmem:[%s148] sm:$0xff]
                %151 = vst [vmem:[%s149] sm:$0xff] %v150
                %v152 = vld [vmem:[%s148 + $0x8] sm:$0xff]
                %153 = vst [vmem:[%s149 + $0x8] sm:$0xff] %v152
                %v154 = vld [vmem:[%s148 + $0x10] sm:$0xff]
                %155 = vst [vmem:[%s149 + $0x10] sm:$0xff] %v154
                %v156 = vld [vmem:[%s148 + $0x18] sm:$0xff]
                %157 = vst [vmem:[%s149 + $0x18] sm:$0xff] %v156
                %v158 = vld [vmem:[%s148 + $0x40] sm:$0xff]
                %159 = vst [vmem:[%s149 + $0x20] sm:$0xff] %v158
                %v160 = vld [vmem:[%s148 + $0x48] sm:$0xff]
                %161 = vst [vmem:[%s149 + $0x28] sm:$0xff] %v160
                %v162 = vld [vmem:[%s148 + $0x50] sm:$0xff]
                %163 = vst [vmem:[%s149 + $0x30] sm:$0xff] %v162
                %v164 = vld [vmem:[%s148 + $0x58] sm:$0xff]
                %165 = vst [vmem:[%s149 + $0x38] sm:$0xff] %v164
                %v166 = vld [vmem:[%s148 + $0x80] sm:$0xff]
                %167 = vst [vmem:[%s149 + $0x40] sm:$0xff] %v166
                %v168 = vld [vmem:[%s148 + $0x88] sm:$0xff]
                %169 = vst [vmem:[%s149 + $0x48] sm:$0xff] %v168
                %v170 = vld [vmem:[%s148 + $0x90] sm:$0xff]
                %171 = vst [vmem:[%s149 + $0x50] sm:$0xff] %v170
                %v172 = vld [vmem:[%s148 + $0x98] sm:$0xff]
                %173 = vst [vmem:[%s149 + $0x58] sm:$0xff] %v172
                %v174 = vld [vmem:[%s148 + $0xc0] sm:$0xff]
                %175 = vst [vmem:[%s149 + $0x60] sm:$0xff] %v174
                %v176 = vld [vmem:[%s148 + $0xc8] sm:$0xff]
                %177 = vst [vmem:[%s149 + $0x68] sm:$0xff] %v176
                %v178 = vld [vmem:[%s148 + $0xd0] sm:$0xff]
                %179 = vst [vmem:[%s149 + $0x70] sm:$0xff] %v178
                %v180 = vld [vmem:[%s148 + $0xd8] sm:$0xff]
                %181 = vst [vmem:[%s149 + $0x78] sm:$0xff] %v180
                %v182 = vld [vmem:[%s148 + $0x100] sm:$0xff]
                %183 = vst [vmem:[%s149 + $0x80] sm:$0xff] %v182
                %v184 = vld [vmem:[%s148 + $0x108] sm:$0xff]
                %185 = vst [vmem:[%s149 + $0x88] sm:$0xff] %v184
                %v186 = vld [vmem:[%s148 + $0x110] sm:$0xff]
                %187 = vst [vmem:[%s149 + $0x90] sm:$0xff] %v186
                %v188 = vld [vmem:[%s148 + $0x118] sm:$0xff]
                %189 = vst [vmem:[%s149 + $0x98] sm:$0xff] %v188
                %v190 = vld [vmem:[%s148 + $0x140] sm:$0xff]
                %191 = vst [vmem:[%s149 + $0xa0] sm:$0xff] %v190
                %v192 = vld [vmem:[%s148 + $0x148] sm:$0xff]
                %193 = vst [vmem:[%s149 + $0xa8] sm:$0xff] %v192
                %v194 = vld [vmem:[%s148 + $0x150] sm:$0xff]
                %195 = vst [vmem:[%s149 + $0xb0] sm:$0xff] %v194
                %v196 = vld [vmem:[%s148 + $0x158] sm:$0xff]
                %197 = vst [vmem:[%s149 + $0xb8] sm:$0xff] %v196
                %v198 = vld [vmem:[%s148 + $0x180] sm:$0xff]
                %199 = vst [vmem:[%s149 + $0xc0] sm:$0xff] %v198
                %v200 = vld [vmem:[%s148 + $0x188] sm:$0xff]
                %201 = vst [vmem:[%s149 + $0xc8] sm:$0xff] %v200
                %v202 = vld [vmem:[%s148 + $0x190] sm:$0xff]
                %203 = vst [vmem:[%s149 + $0xd0] sm:$0xff] %v202
                %v204 = vld [vmem:[%s148 + $0x198] sm:$0xff]
                %205 = vst [vmem:[%s149 + $0xd8] sm:$0xff] %v204
                %v206 = vld [vmem:[%s148 + $0x1c0] sm:$0xff]
                %207 = vst [vmem:[%s149 + $0xe0] sm:$0xff] %v206
                %v208 = vld [vmem:[%s148 + $0x1c8] sm:$0xff]
                %209 = vst [vmem:[%s149 + $0xe8] sm:$0xff] %v208
                %v210 = vld [vmem:[%s148 + $0x1d0] sm:$0xff]
                %211 = vst [vmem:[%s149 + $0xf0] sm:$0xff] %v210
                %v212 = vld [vmem:[%s148 + $0x1d8] sm:$0xff]
                %213 = vst [vmem:[%s149 + $0xf8] sm:$0xff] %v212
                %v214 = vld [vmem:[%s148 + $0x200] sm:$0xff]
                %215 = vst [vmem:[%s149 + $0x100] sm:$0xff] %v214
                %v216 = vld [vmem:[%s148 + $0x208] sm:$0xff]
                %217 = vst [vmem:[%s149 + $0x108] sm:$0xff] %v216
                %v218 = vld [vmem:[%s148 + $0x210] sm:$0xff]
                %219 = vst [vmem:[%s149 + $0x110] sm:$0xff] %v218
                %v220 = vld [vmem:[%s148 + $0x218] sm:$0xff]
                %221 = vst [vmem:[%s149 + $0x118] sm:$0xff] %v220
                %v222 = vld [vmem:[%s148 + $0x240] sm:$0xff]
                %223 = vst [vmem:[%s149 + $0x120] sm:$0xff] %v222
                %v224 = vld [vmem:[%s148 + $0x248] sm:$0xff]
                %225 = vst [vmem:[%s149 + $0x128] sm:$0xff] %v224
                %v226 = vld [vmem:[%s148 + $0x250] sm:$0xff]
                %227 = vst [vmem:[%s149 + $0x130] sm:$0xff] %v226
                %v228 = vld [vmem:[%s148 + $0x258] sm:$0xff]
                %229 = vst [vmem:[%s149 + $0x138] sm:$0xff] %v228
                %v230 = vld [vmem:[%s148 + $0x280] sm:$0xff]
                %231 = vst [vmem:[%s149 + $0x140] sm:$0xff] %v230
                %v232 = vld [vmem:[%s148 + $0x288] sm:$0xff]
                %233 = vst [vmem:[%s149 + $0x148] sm:$0xff] %v232
                %v234 = vld [vmem:[%s148 + $0x290] sm:$0xff]
                %235 = vst [vmem:[%s149 + $0x150] sm:$0xff] %v234
                %v236 = vld [vmem:[%s148 + $0x298] sm:$0xff]
                %237 = vst [vmem:[%s149 + $0x158] sm:$0xff] %v236
                %v238 = vld [vmem:[%s148 + $0x2c0] sm:$0xff]
                %239 = vst [vmem:[%s149 + $0x160] sm:$0xff] %v238
                %v240 = vld [vmem:[%s148 + $0x2c8] sm:$0xff]
                %241 = vst [vmem:[%s149 + $0x168] sm:$0xff] %v240
                %v242 = vld [vmem:[%s148 + $0x2d0] sm:$0xff]
                %243 = vst [vmem:[%s149 + $0x170] sm:$0xff] %v242
                %v244 = vld [vmem:[%s148 + $0x2d8] sm:$0xff]
                %245 = vst [vmem:[%s149 + $0x178] sm:$0xff] %v244
                %v246 = vld [vmem:[%s148 + $0x300] sm:$0xff]
                %247 = vst [vmem:[%s149 + $0x180] sm:$0xff] %v246
                %v248 = vld [vmem:[%s148 + $0x308] sm:$0xff]
                %249 = vst [vmem:[%s149 + $0x188] sm:$0xff] %v248
                %v250 = vld [vmem:[%s148 + $0x310] sm:$0xff]
                %251 = vst [vmem:[%s149 + $0x190] sm:$0xff] %v250
                %v252 = vld [vmem:[%s148 + $0x318] sm:$0xff]
                %253 = vst [vmem:[%s149 + $0x198] sm:$0xff] %v252
                %v254 = vld [vmem:[%s148 + $0x340] sm:$0xff]
                %255 = vst [vmem:[%s149 + $0x1a0] sm:$0xff] %v254
                %v256 = vld [vmem:[%s148 + $0x348] sm:$0xff]
                %257 = vst [vmem:[%s149 + $0x1a8] sm:$0xff] %v256
                %v258 = vld [vmem:[%s148 + $0x350] sm:$0xff]
                %259 = vst [vmem:[%s149 + $0x1b0] sm:$0xff] %v258
                %v260 = vld [vmem:[%s148 + $0x358] sm:$0xff]
                %261 = vst [vmem:[%s149 + $0x1b8] sm:$0xff] %v260
                %v262 = vld [vmem:[%s148 + $0x380] sm:$0xff]
                %263 = vst [vmem:[%s149 + $0x1c0] sm:$0xff] %v262
                %v264 = vld [vmem:[%s148 + $0x388] sm:$0xff]
                %265 = vst [vmem:[%s149 + $0x1c8] sm:$0xff] %v264
                %v266 = vld [vmem:[%s148 + $0x390] sm:$0xff]
                %267 = vst [vmem:[%s149 + $0x1d0] sm:$0xff] %v266
                %v268 = vld [vmem:[%s148 + $0x398] sm:$0xff]
                %269 = vst [vmem:[%s149 + $0x1d8] sm:$0xff] %v268
                %v270 = vld [vmem:[%s148 + $0x3c0] sm:$0xff]
                %271 = vst [vmem:[%s149 + $0x1e0] sm:$0xff] %v270
                %v272 = vld [vmem:[%s148 + $0x3c8] sm:$0xff]
                %273 = vst [vmem:[%s149 + $0x1e8] sm:$0xff] %v272
                %v274 = vld [vmem:[%s148 + $0x3d0] sm:$0xff]
                %275 = vst [vmem:[%s149 + $0x1f0] sm:$0xff] %v274
                %v276 = vld [vmem:[%s148 + $0x3d8] sm:$0xff]
                %277 = vst [vmem:[%s149 + $0x1f8] sm:$0xff] %v276
              $region41: #{discriminator_forward.8} parent=35 // loop_footer
                %s147 = sadd.s32 1, %s143
              $region42: #{discriminator_forward.8} parent=35 // loop_footer_branch
                %142 = sbr.rel target = $region38
              $region43: #{discriminator_forward.8} parent=35 // loop_exit
                _
            $region36: #{discriminator_forward.8} parent=31 // pred_fallthru
              _
            // Predicated region
            $region44: #{discriminator_forward.8} parent=31 // pred_check
              _
            $region45: #{discriminator_forward.8} parent=31 // pred_check_branch
              %279 = sbr.rel target = $region47
            $region46: #{discriminator_forward.8} parent=31 // pred_region
              _
            $region47: #{discriminator_forward.8} parent=31 // pred_fallthru
              _
          $region32: #{discriminator_forward.8} parent=27 // pred_fallthru
            _
          %280 = vnop
        $region28: #{discriminator_forward.8} parent=23 // pred_fallthru
          _
      $region24: #{discriminator_forward.8} parent=5 // pred_fallthru
        _
      %p281 = scmp.le.s32.totalorder 1, %s9
      %p282 = scmp.lt.s32.totalorder %s9, 3
      %p283 = pnand %p281, %p282
      %p284 = pneg %p283
      // Predicated region
      $region48: #{discriminator_forward.8} parent=5 // pred_check
        _
      $region49: #{discriminator_forward.8} parent=5 // pred_check_branch
        %286 = sbr.rel (%p283) target = $region51
      $region50: #{discriminator_forward.8} parent=5 // pred_region
        %s287 = ssub.s32 %s9, 1
        %s288 = sand.u32 %s43, 1
        %s289 = sand.u32 %s43, 1
        %s290 = smul.addr %s289, 512
        %s291 = scalar_lea.vmem [#allocation2], %s290
        // Predicated region
        $region52: #{discriminator_forward.8} parent=50 // pred_check
          %p292 = pneg %p56
        $region53: #{discriminator_forward.8} parent=50 // pred_check_branch
          %294 = sbr.rel (%p292) target = $region55
        $region54: #{discriminator_forward.8} parent=50 // pred_region
          _
        $region55: #{discriminator_forward.8} parent=50 // pred_fallthru
          _
        %p295 = pneg %p30
        %p296 = pneg %p27
        %s297 = sand.u32 %s43, 1
        %s298 = sand.u32 %s43, 1
        %s299 = smul.addr %s298, 512
        %s300 = scalar_lea.vmem [#allocation2], %s299
        %p301 = pneg %p56
        %p302 = pneg %p53
        %p303 = pneg %p77
        %p304 = pneg %p74
        %p305 = pneg %p103
        %p306 = pneg %p100
        %s307 = sand.u32 %s90, 1
        %s308 = sand.u32 %s90, 1
        %s309 = smul.addr %s308, 64
        %s310 = scalar_lea.vmem [#allocation3], %s309
        %s311 = smul.u32 8, %s14
        %s312 = smul.u32 8, %s14
        %v314 = vld [vmem:[%s0] sm:$0xf]
        %v315 = vld [vmem:[%s0 + $0x4] sm:$0xf]
        %v316 = vld [vmem:[%s291] sm:$0xff]
        %v317 = vld [vmem:[%s291 + $0x8] sm:$0xff]
        %v318 = vld [vmem:[%s291 + $0x10] sm:$0xff]
        %v319 = vld [vmem:[%s291 + $0x18] sm:$0xff]
        %v320 = vld [vmem:[%s291 + $0x20] sm:$0xff]
        %v321 = vld [vmem:[%s291 + $0x28] sm:$0xff]
        %v322 = vld [vmem:[%s291 + $0x30] sm:$0xff]
        %v323 = vld [vmem:[%s291 + $0x38] sm:$0xff]
        %v324 = vld [vmem:[%s291 + $0x40] sm:$0xff]
        %v325 = vld [vmem:[%s291 + $0x48] sm:$0xff]
        %v326 = vld [vmem:[%s291 + $0x50] sm:$0xff]
        %v327 = vld [vmem:[%s291 + $0x58] sm:$0xff]
        %v328 = vld [vmem:[%s291 + $0x60] sm:$0xff]
        %v329 = vld [vmem:[%s291 + $0x68] sm:$0xff]
        %v330 = vld [vmem:[%s291 + $0x70] sm:$0xff]
        %v331 = vld [vmem:[%s291 + $0x78] sm:$0xff]
        %v332 = vld [vmem:[%s291 + $0x80] sm:$0xff]
        %v333 = vld [vmem:[%s291 + $0x88] sm:$0xff]
        %v334 = vld [vmem:[%s291 + $0x90] sm:$0xff]
        %v335 = vld [vmem:[%s291 + $0x98] sm:$0xff]
        %v336 = vld [vmem:[%s291 + $0xa0] sm:$0xff]
        %v337 = vld [vmem:[%s291 + $0xa8] sm:$0xff]
        %v338 = vld [vmem:[%s291 + $0xb0] sm:$0xff]
        %v339 = vld [vmem:[%s291 + $0xb8] sm:$0xff]
        %v340 = vld [vmem:[%s291 + $0xc0] sm:$0xff]
        %v341 = vld [vmem:[%s291 + $0xc8] sm:$0xff]
        %v342 = vld [vmem:[%s291 + $0xd0] sm:$0xff]
        %v343 = vld [vmem:[%s291 + $0xd8] sm:$0xff]
        %v344 = vld [vmem:[%s291 + $0xe0] sm:$0xff]
        %v345 = vld [vmem:[%s291 + $0xe8] sm:$0xff]
        %v346 = vld [vmem:[%s291 + $0xf0] sm:$0xff]
        %v347 = vld [vmem:[%s291 + $0xf8] sm:$0xff]
        %v348 = vld [vmem:[%s291 + $0x100] sm:$0xff]
        %v349 = vld [vmem:[%s291 + $0x108] sm:$0xff]
        %v350 = vld [vmem:[%s291 + $0x110] sm:$0xff]
        %v351 = vld [vmem:[%s291 + $0x118] sm:$0xff]
        %v352 = vld [vmem:[%s291 + $0x120] sm:$0xff]
        %v353 = vld [vmem:[%s291 + $0x128] sm:$0xff]
        %v354 = vld [vmem:[%s291 + $0x130] sm:$0xff]
        %v355 = vld [vmem:[%s291 + $0x138] sm:$0xff]
        %v356 = vld [vmem:[%s291 + $0x140] sm:$0xff]
        %v357 = vld [vmem:[%s291 + $0x148] sm:$0xff]
        %v358 = vld [vmem:[%s291 + $0x150] sm:$0xff]
        %v359 = vld [vmem:[%s291 + $0x158] sm:$0xff]
        %v360 = vld [vmem:[%s291 + $0x160] sm:$0xff]
        %v361 = vld [vmem:[%s291 + $0x168] sm:$0xff]
        %v362 = vld [vmem:[%s291 + $0x170] sm:$0xff]
        %v363 = vld [vmem:[%s291 + $0x178] sm:$0xff]
        %v364 = vld [vmem:[%s291 + $0x180] sm:$0xff]
        %v365 = vld [vmem:[%s291 + $0x188] sm:$0xff]
        %v366 = vld [vmem:[%s291 + $0x190] sm:$0xff]
        %v367 = vld [vmem:[%s291 + $0x198] sm:$0xff]
        %v368 = vld [vmem:[%s291 + $0x1a0] sm:$0xff]
        %v369 = vld [vmem:[%s291 + $0x1a8] sm:$0xff]
        %v370 = vld [vmem:[%s291 + $0x1b0] sm:$0xff]
        %v371 = vld [vmem:[%s291 + $0x1b8] sm:$0xff]
        %v372 = vld [vmem:[%s291 + $0x1c0] sm:$0xff]
        %v373 = vld [vmem:[%s291 + $0x1c8] sm:$0xff]
        %v374 = vld [vmem:[%s291 + $0x1d0] sm:$0xff]
        %v375 = vld [vmem:[%s291 + $0x1d8] sm:$0xff]
        %v376 = vld [vmem:[%s291 + $0x1e0] sm:$0xff]
        %v377 = vld [vmem:[%s291 + $0x1e8] sm:$0xff]
        %v378 = vld [vmem:[%s291 + $0x1f0] sm:$0xff]
        %v379 = vld [vmem:[%s291 + $0x1f8] sm:$0xff]
        %v380 = vld [vmem:[%s2] sm:$0xff]
        %v381 = vld [vmem:[%s2 + $0x8] sm:$0xff]
        %383 = vset.pattern.permute.xlu0 0
        %384 = vperm.xlu0 %383, %v380
        %v385 = vpop.permute.xlu0 %384
        %388 = vset.pattern.permute.xlu0 0
        %389 = vperm.xlu0 %388, %v381
        %v390 = vpop.permute.xlu0 %389
        %v394 = vunpack.c.l.b16 %v314
        %v395 = vunpack.c.l.b16 %v315
        %v396 = vpack.c.b16 %v395, %v394
        %v462 = vunpack.c.l.b16 %v316
        %v463 = vunpack.c.h.b16 %v316
        %v464 = vunpack.c.l.b16 %v317
        %v465 = vunpack.c.h.b16 %v317
        %v466 = vunpack.c.l.b16 %v318
        %v467 = vunpack.c.h.b16 %v318
        %v468 = vunpack.c.l.b16 %v319
        %v469 = vunpack.c.h.b16 %v319
        %v470 = vunpack.c.l.b16 %v320
        %v471 = vunpack.c.h.b16 %v320
        %v472 = vunpack.c.l.b16 %v321
        %v473 = vunpack.c.h.b16 %v321
        %v474 = vunpack.c.l.b16 %v322
        %v475 = vunpack.c.h.b16 %v322
        %v476 = vunpack.c.l.b16 %v323
        %v477 = vunpack.c.h.b16 %v323
        %v478 = vunpack.c.l.b16 %v324
        %v479 = vunpack.c.h.b16 %v324
        %v480 = vunpack.c.l.b16 %v325
        %v481 = vunpack.c.h.b16 %v325
        %v482 = vunpack.c.l.b16 %v326
        %v483 = vunpack.c.h.b16 %v326
        %v484 = vunpack.c.l.b16 %v327
        %v485 = vunpack.c.h.b16 %v327
        %v486 = vunpack.c.l.b16 %v328
        %v487 = vunpack.c.h.b16 %v328
        %v488 = vunpack.c.l.b16 %v329
        %v489 = vunpack.c.h.b16 %v329
        %v490 = vunpack.c.l.b16 %v330
        %v491 = vunpack.c.h.b16 %v330
        %v492 = vunpack.c.l.b16 %v331
        %v493 = vunpack.c.h.b16 %v331
        %v494 = vunpack.c.l.b16 %v332
        %v495 = vunpack.c.h.b16 %v332
        %v496 = vunpack.c.l.b16 %v333
        %v497 = vunpack.c.h.b16 %v333
        %v498 = vunpack.c.l.b16 %v334
        %v499 = vunpack.c.h.b16 %v334
        %v500 = vunpack.c.l.b16 %v335
        %v501 = vunpack.c.h.b16 %v335
        %v502 = vunpack.c.l.b16 %v336
        %v503 = vunpack.c.h.b16 %v336
        %v504 = vunpack.c.l.b16 %v337
        %v505 = vunpack.c.h.b16 %v337
        %v506 = vunpack.c.l.b16 %v338
        %v507 = vunpack.c.h.b16 %v338
        %v508 = vunpack.c.l.b16 %v339
        %v509 = vunpack.c.h.b16 %v339
        %v510 = vunpack.c.l.b16 %v340
        %v511 = vunpack.c.h.b16 %v340
        %v512 = vunpack.c.l.b16 %v341
        %v513 = vunpack.c.h.b16 %v341
        %v514 = vunpack.c.l.b16 %v342
        %v515 = vunpack.c.h.b16 %v342
        %v516 = vunpack.c.l.b16 %v343
        %v517 = vunpack.c.h.b16 %v343
        %v518 = vunpack.c.l.b16 %v344
        %v519 = vunpack.c.h.b16 %v344
        %v520 = vunpack.c.l.b16 %v345
        %v521 = vunpack.c.h.b16 %v345
        %v522 = vunpack.c.l.b16 %v346
        %v523 = vunpack.c.h.b16 %v346
        %v524 = vunpack.c.l.b16 %v347
        %v525 = vunpack.c.h.b16 %v347
        %v526 = vunpack.c.l.b16 %v348
        %v527 = vunpack.c.h.b16 %v348
        %v528 = vunpack.c.l.b16 %v349
        %v529 = vunpack.c.h.b16 %v349
        %v530 = vunpack.c.l.b16 %v350
        %v531 = vunpack.c.h.b16 %v350
        %v532 = vunpack.c.l.b16 %v351
        %v533 = vunpack.c.h.b16 %v351
        %v534 = vunpack.c.l.b16 %v352
        %v535 = vunpack.c.h.b16 %v352
        %v536 = vunpack.c.l.b16 %v353
        %v537 = vunpack.c.h.b16 %v353
        %v538 = vunpack.c.l.b16 %v354
        %v539 = vunpack.c.h.b16 %v354
        %v540 = vunpack.c.l.b16 %v355
        %v541 = vunpack.c.h.b16 %v355
        %v542 = vunpack.c.l.b16 %v356
        %v543 = vunpack.c.h.b16 %v356
        %v544 = vunpack.c.l.b16 %v357
        %v545 = vunpack.c.h.b16 %v357
        %v546 = vunpack.c.l.b16 %v358
        %v547 = vunpack.c.h.b16 %v358
        %v548 = vunpack.c.l.b16 %v359
        %v549 = vunpack.c.h.b16 %v359
        %v550 = vunpack.c.l.b16 %v360
        %v551 = vunpack.c.h.b16 %v360
        %v552 = vunpack.c.l.b16 %v361
        %v553 = vunpack.c.h.b16 %v361
        %v554 = vunpack.c.l.b16 %v362
        %v555 = vunpack.c.h.b16 %v362
        %v556 = vunpack.c.l.b16 %v363
        %v557 = vunpack.c.h.b16 %v363
        %v558 = vunpack.c.l.b16 %v364
        %v559 = vunpack.c.h.b16 %v364
        %v560 = vunpack.c.l.b16 %v365
        %v561 = vunpack.c.h.b16 %v365
        %v562 = vunpack.c.l.b16 %v366
        %v563 = vunpack.c.h.b16 %v366
        %v564 = vunpack.c.l.b16 %v367
        %v565 = vunpack.c.h.b16 %v367
        %v566 = vunpack.c.l.b16 %v368
        %v567 = vunpack.c.h.b16 %v368
        %v568 = vunpack.c.l.b16 %v369
        %v569 = vunpack.c.h.b16 %v369
        %v570 = vunpack.c.l.b16 %v370
        %v571 = vunpack.c.h.b16 %v370
        %v572 = vunpack.c.l.b16 %v371
        %v573 = vunpack.c.h.b16 %v371
        %v574 = vunpack.c.l.b16 %v372
        %v575 = vunpack.c.h.b16 %v372
        %v576 = vunpack.c.l.b16 %v373
        %v577 = vunpack.c.h.b16 %v373
        %v578 = vunpack.c.l.b16 %v374
        %v579 = vunpack.c.h.b16 %v374
        %v580 = vunpack.c.l.b16 %v375
        %v581 = vunpack.c.h.b16 %v375
        %v582 = vunpack.c.l.b16 %v376
        %v583 = vunpack.c.h.b16 %v376
        %v584 = vunpack.c.l.b16 %v377
        %v585 = vunpack.c.h.b16 %v377
        %v586 = vunpack.c.l.b16 %v378
        %v587 = vunpack.c.h.b16 %v378
        %v588 = vunpack.c.l.b16 %v379
        %v589 = vunpack.c.h.b16 %v379
        %v590 = vpack.c.b16 %v470, %v462
        %v591 = vpack.c.b16 %v471, %v463
        %v592 = vpack.c.b16 %v472, %v464
        %v593 = vpack.c.b16 %v473, %v465
        %v594 = vpack.c.b16 %v474, %v466
        %v595 = vpack.c.b16 %v475, %v467
        %v596 = vpack.c.b16 %v476, %v468
        %v597 = vpack.c.b16 %v477, %v469
        %v598 = vpack.c.b16 %v486, %v478
        %v599 = vpack.c.b16 %v487, %v479
        %v600 = vpack.c.b16 %v488, %v480
        %v601 = vpack.c.b16 %v489, %v481
        %v602 = vpack.c.b16 %v490, %v482
        %v603 = vpack.c.b16 %v491, %v483
        %v604 = vpack.c.b16 %v492, %v484
        %v605 = vpack.c.b16 %v493, %v485
        %v606 = vpack.c.b16 %v502, %v494
        %v607 = vpack.c.b16 %v503, %v495
        %v608 = vpack.c.b16 %v504, %v496
        %v609 = vpack.c.b16 %v505, %v497
        %v610 = vpack.c.b16 %v506, %v498
        %v611 = vpack.c.b16 %v507, %v499
        %v612 = vpack.c.b16 %v508, %v500
        %v613 = vpack.c.b16 %v509, %v501
        %v614 = vpack.c.b16 %v518, %v510
        %v615 = vpack.c.b16 %v519, %v511
        %v616 = vpack.c.b16 %v520, %v512
        %v617 = vpack.c.b16 %v521, %v513
        %v618 = vpack.c.b16 %v522, %v514
        %v619 = vpack.c.b16 %v523, %v515
        %v620 = vpack.c.b16 %v524, %v516
        %v621 = vpack.c.b16 %v525, %v517
        %v622 = vpack.c.b16 %v534, %v526
        %v623 = vpack.c.b16 %v535, %v527
        %v624 = vpack.c.b16 %v536, %v528
        %v625 = vpack.c.b16 %v537, %v529
        %v626 = vpack.c.b16 %v538, %v530
        %v627 = vpack.c.b16 %v539, %v531
        %v628 = vpack.c.b16 %v540, %v532
        %v629 = vpack.c.b16 %v541, %v533
        %v630 = vpack.c.b16 %v550, %v542
        %v631 = vpack.c.b16 %v551, %v543
        %v632 = vpack.c.b16 %v552, %v544
        %v633 = vpack.c.b16 %v553, %v545
        %v634 = vpack.c.b16 %v554, %v546
        %v635 = vpack.c.b16 %v555, %v547
        %v636 = vpack.c.b16 %v556, %v548
        %v637 = vpack.c.b16 %v557, %v549
        %v638 = vpack.c.b16 %v566, %v558
        %v639 = vpack.c.b16 %v567, %v559
        %v640 = vpack.c.b16 %v568, %v560
        %v641 = vpack.c.b16 %v569, %v561
        %v642 = vpack.c.b16 %v570, %v562
        %v643 = vpack.c.b16 %v571, %v563
        %v644 = vpack.c.b16 %v572, %v564
        %v645 = vpack.c.b16 %v573, %v565
        %v646 = vpack.c.b16 %v582, %v574
        %v647 = vpack.c.b16 %v583, %v575
        %v648 = vpack.c.b16 %v584, %v576
        %v649 = vpack.c.b16 %v585, %v577
        %v650 = vpack.c.b16 %v586, %v578
        %v651 = vpack.c.b16 %v587, %v579
        %v652 = vpack.c.b16 %v588, %v580
        %v653 = vpack.c.b16 %v589, %v581
        %718 = vmatprep.subr.bf16.mxu0 %v647
        %719 = vmatpush1.bf16.msra.mxu0 %v646
        %720 = vmatprep.subr.bf16.mxu0 %v639
        %721 = vmatpush1.bf16.msra.mxu0 %v638
        %722 = vmatprep.subr.bf16.mxu0 %v631
        %723 = vmatpush1.bf16.msra.mxu0 %v630
        %724 = vmatprep.subr.bf16.mxu0 %v623
        %725 = vmatpush1.bf16.msra.mxu0 %v622
        %726 = vmatprep.subr.bf16.mxu0 %v615
        %727 = vmatpush1.bf16.msra.mxu0 %v614
        %728 = vmatprep.subr.bf16.mxu0 %v607
        %729 = vmatpush1.bf16.msra.mxu0 %v606
        %730 = vmatprep.subr.bf16.mxu0 %v599
        %731 = vmatpush1.bf16.msra.mxu0 %v598
        %732 = vmatprep.subr.bf16.mxu0 %v591
        %733 = vmatpush1.bf16.msra.mxu0 %v590
        %734 = vmatprep.subr.bf16.mxu0 0
        %735 = vmatpush2.bf16.msra.mxu0 0
        %736 = vmatprep.subr.bf16.mxu0 0
        %737 = vmatpush2.bf16.msra.mxu0 0
        %738 = vmatprep.subr.bf16.mxu0 0
        %739 = vmatpush2.bf16.msra.mxu0 0
        %740 = vmatprep.subr.bf16.mxu0 0
        %741 = vmatpush2.bf16.msra.mxu0 0
        %742 = vmatprep.subr.bf16.mxu0 0
        %743 = vmatpush2.bf16.msra.mxu0 0
        %744 = vmatprep.subr.bf16.mxu0 0
        %745 = vmatpush2.bf16.msra.mxu0 0
        %746 = vmatprep.subr.bf16.mxu0 0
        %747 = vmatpush2.bf16.msra.mxu0 0
        %748 = vmatprep.subr.bf16.mxu0 0
        %749 = vmatpush2.bf16.msra.mxu0 0
        %750 = vmatprep.mubr.bf16.mxu0 0
        %751 = vmatmul.mubr.bf16.gmra.mxu0 %v396
        %v752 = vpop.f32.mrf.mxu0
        %v753 = vadd.f32 %v385, %v752
        %v754 = vpop.f32.mrf.mxu0
        %v755 = vadd.f32 %v385, %v754
        %v756 = vpop.f32.mrf.mxu0
        %v757 = vadd.f32 %v390, %v756
        %v758 = vpop.f32.mrf.mxu0
        %v759 = vadd.f32 %v390, %v758
        %760 = vdwg.mxu0
        %761 = vmatprep.subr.bf16.mxu0 %v649
        %762 = vmatpush1.bf16.msra.mxu0 %v648
        %763 = vmatprep.subr.bf16.mxu0 %v641
        %764 = vmatpush1.bf16.msra.mxu0 %v640
        %765 = vmatprep.subr.bf16.mxu0 %v633
        %766 = vmatpush1.bf16.msra.mxu0 %v632
        %767 = vmatprep.subr.bf16.mxu0 %v625
        %768 = vmatpush1.bf16.msra.mxu0 %v624
        %769 = vmatprep.subr.bf16.mxu0 %v617
        %770 = vmatpush1.bf16.msra.mxu0 %v616
        %771 = vmatprep.subr.bf16.mxu0 %v609
        %772 = vmatpush1.bf16.msra.mxu0 %v608
        %773 = vmatprep.subr.bf16.mxu0 %v601
        %774 = vmatpush1.bf16.msra.mxu0 %v600
        %775 = vmatprep.subr.bf16.mxu0 %v593
        %776 = vmatpush1.bf16.msra.mxu0 %v592
        %777 = vmatprep.subr.bf16.mxu0 0
        %778 = vmatpush2.bf16.msra.mxu0 0
        %779 = vmatprep.subr.bf16.mxu0 0
        %780 = vmatpush2.bf16.msra.mxu0 0
        %781 = vmatprep.subr.bf16.mxu0 0
        %782 = vmatpush2.bf16.msra.mxu0 0
        %783 = vmatprep.subr.bf16.mxu0 0
        %784 = vmatpush2.bf16.msra.mxu0 0
        %785 = vmatprep.subr.bf16.mxu0 0
        %786 = vmatpush2.bf16.msra.mxu0 0
        %787 = vmatprep.subr.bf16.mxu0 0
        %788 = vmatpush2.bf16.msra.mxu0 0
        %789 = vmatprep.subr.bf16.mxu0 0
        %790 = vmatpush2.bf16.msra.mxu0 0
        %791 = vmatprep.subr.bf16.mxu0 0
        %792 = vmatpush2.bf16.msra.mxu0 0
        %793 = vmatprep.mubr.bf16.mxu0 0
        %794 = vmatmul.mubr.bf16.gmra.mxu0 %v396
        %v795 = vpop.f32.mrf.mxu0
        %v796 = vadd.f32 %v385, %v795
        %v797 = vpop.f32.mrf.mxu0
        %v798 = vadd.f32 %v385, %v797
        %v799 = vpop.f32.mrf.mxu0
        %v800 = vadd.f32 %v390, %v799
        %v801 = vpop.f32.mrf.mxu0
        %v802 = vadd.f32 %v390, %v801
        %803 = vdwg.mxu0
        %804 = vmatprep.subr.bf16.mxu0 %v651
        %805 = vmatpush1.bf16.msra.mxu0 %v650
        %806 = vmatprep.subr.bf16.mxu0 %v643
        %807 = vmatpush1.bf16.msra.mxu0 %v642
        %808 = vmatprep.subr.bf16.mxu0 %v635
        %809 = vmatpush1.bf16.msra.mxu0 %v634
        %810 = vmatprep.subr.bf16.mxu0 %v627
        %811 = vmatpush1.bf16.msra.mxu0 %v626
        %812 = vmatprep.subr.bf16.mxu0 %v619
        %813 = vmatpush1.bf16.msra.mxu0 %v618
        %814 = vmatprep.subr.bf16.mxu0 %v611
        %815 = vmatpush1.bf16.msra.mxu0 %v610
        %816 = vmatprep.subr.bf16.mxu0 %v603
        %817 = vmatpush1.bf16.msra.mxu0 %v602
        %818 = vmatprep.subr.bf16.mxu0 %v595
        %819 = vmatpush1.bf16.msra.mxu0 %v594
        %820 = vmatprep.subr.bf16.mxu0 0
        %821 = vmatpush2.bf16.msra.mxu0 0
        %822 = vmatprep.subr.bf16.mxu0 0
        %823 = vmatpush2.bf16.msra.mxu0 0
        %824 = vmatprep.subr.bf16.mxu0 0
        %825 = vmatpush2.bf16.msra.mxu0 0
        %826 = vmatprep.subr.bf16.mxu0 0
        %827 = vmatpush2.bf16.msra.mxu0 0
        %828 = vmatprep.subr.bf16.mxu0 0
        %829 = vmatpush2.bf16.msra.mxu0 0
        %830 = vmatprep.subr.bf16.mxu0 0
        %831 = vmatpush2.bf16.msra.mxu0 0
        %832 = vmatprep.subr.bf16.mxu0 0
        %833 = vmatpush2.bf16.msra.mxu0 0
        %834 = vmatprep.subr.bf16.mxu0 0
        %835 = vmatpush2.bf16.msra.mxu0 0
        %836 = vmatprep.mubr.bf16.mxu0 0
        %837 = vmatmul.mubr.bf16.gmra.mxu0 %v396
        %v838 = vpop.f32.mrf.mxu0
        %v839 = vadd.f32 %v385, %v838
        %v840 = vpop.f32.mrf.mxu0
        %v841 = vadd.f32 %v385, %v840
        %v842 = vpop.f32.mrf.mxu0
        %v843 = vadd.f32 %v390, %v842
        %v844 = vpop.f32.mrf.mxu0
        %v845 = vadd.f32 %v390, %v844
        %846 = vdwg.mxu0
        %847 = vmatprep.subr.bf16.mxu0 %v653
        %848 = vmatpush1.bf16.msra.mxu0 %v652
        %849 = vmatprep.subr.bf16.mxu0 %v645
        %850 = vmatpush1.bf16.msra.mxu0 %v644
        %851 = vmatprep.subr.bf16.mxu0 %v637
        %852 = vmatpush1.bf16.msra.mxu0 %v636
        %853 = vmatprep.subr.bf16.mxu0 %v629
        %854 = vmatpush1.bf16.msra.mxu0 %v628
        %855 = vmatprep.subr.bf16.mxu0 %v621
        %856 = vmatpush1.bf16.msra.mxu0 %v620
        %857 = vmatprep.subr.bf16.mxu0 %v613
        %858 = vmatpush1.bf16.msra.mxu0 %v612
        %859 = vmatprep.subr.bf16.mxu0 %v605
        %860 = vmatpush1.bf16.msra.mxu0 %v604
        %861 = vmatprep.subr.bf16.mxu0 %v597
        %862 = vmatpush1.bf16.msra.mxu0 %v596
        %863 = vmatprep.subr.bf16.mxu0 0
        %864 = vmatpush2.bf16.msra.mxu0 0
        %865 = vmatprep.subr.bf16.mxu0 0
        %866 = vmatpush2.bf16.msra.mxu0 0
        %867 = vmatprep.subr.bf16.mxu0 0
        %868 = vmatpush2.bf16.msra.mxu0 0
        %869 = vmatprep.subr.bf16.mxu0 0
        %870 = vmatpush2.bf16.msra.mxu0 0
        %871 = vmatprep.subr.bf16.mxu0 0
        %872 = vmatpush2.bf16.msra.mxu0 0
        %873 = vmatprep.subr.bf16.mxu0 0
        %874 = vmatpush2.bf16.msra.mxu0 0
        %875 = vmatprep.subr.bf16.mxu0 0
        %876 = vmatpush2.bf16.msra.mxu0 0
        %877 = vmatprep.subr.bf16.mxu0 0
        %878 = vmatpush2.bf16.msra.mxu0 0
        %879 = vmatprep.mubr.bf16.mxu0 0
        %880 = vmatmul.mubr.bf16.gmra.mxu0 %v396
        %v881 = vpop.f32.mrf.mxu0
        %v882 = vadd.f32 %v385, %v881
        %v883 = vpop.f32.mrf.mxu0
        %v884 = vadd.f32 %v385, %v883
        %v885 = vpop.f32.mrf.mxu0
        %v886 = vadd.f32 %v390, %v885
        %v887 = vpop.f32.mrf.mxu0
        %v888 = vadd.f32 %v390, %v887
        %889 = vdwg.mxu0
        %vm890 = vcmp.gt.f32.partialorder %v753, 0.0
        %vm891 = vcmp.gt.f32.partialorder %v755, 0.0
        %vm892 = vcmp.gt.f32.partialorder %v796, 0.0
        %vm893 = vcmp.gt.f32.partialorder %v798, 0.0
        %vm894 = vcmp.gt.f32.partialorder %v839, 0.0
        %vm895 = vcmp.gt.f32.partialorder %v841, 0.0
        %vm896 = vcmp.gt.f32.partialorder %v882, 0.0
        %vm897 = vcmp.gt.f32.partialorder %v884, 0.0
        %vm898 = vcmp.gt.f32.partialorder %v757, 0.0
        %vm899 = vcmp.gt.f32.partialorder %v759, 0.0
        %vm900 = vcmp.gt.f32.partialorder %v800, 0.0
        %vm901 = vcmp.gt.f32.partialorder %v802, 0.0
        %vm902 = vcmp.gt.f32.partialorder %v843, 0.0
        %vm903 = vcmp.gt.f32.partialorder %v845, 0.0
        %vm904 = vcmp.gt.f32.partialorder %v886, 0.0
        %vm905 = vcmp.gt.f32.partialorder %v888, 0.0
        %v906 = vmul.f32 %v753, 0.2
        %v907 = vmul.f32 %v755, 0.2
        %v908 = vmul.f32 %v796, 0.2
        %v909 = vmul.f32 %v798, 0.2
        %v910 = vmul.f32 %v839, 0.2
        %v911 = vmul.f32 %v841, 0.2
        %v912 = vmul.f32 %v882, 0.2
        %v913 = vmul.f32 %v884, 0.2
        %v914 = vmul.f32 %v757, 0.2
        %v915 = vmul.f32 %v759, 0.2
        %v916 = vmul.f32 %v800, 0.2
        %v917 = vmul.f32 %v802, 0.2
        %v918 = vmul.f32 %v843, 0.2
        %v919 = vmul.f32 %v845, 0.2
        %v920 = vmul.f32 %v886, 0.2
        %v921 = vmul.f32 %v888, 0.2
        %v922 = vsel %vm890, %v753, %v906
        %v923 = vsel %vm891, %v755, %v907
        %v924 = vsel %vm892, %v796, %v908
        %v925 = vsel %vm893, %v798, %v909
        %v926 = vsel %vm894, %v839, %v910
        %v927 = vsel %vm895, %v841, %v911
        %v928 = vsel %vm896, %v882, %v912
        %v929 = vsel %vm897, %v884, %v913
        %v930 = vsel %vm898, %v757, %v914
        %v931 = vsel %vm899, %v759, %v915
        %v932 = vsel %vm900, %v800, %v916
        %v933 = vsel %vm901, %v802, %v917
        %v934 = vsel %vm902, %v843, %v918
        %v935 = vsel %vm903, %v845, %v919
        %v936 = vsel %vm904, %v886, %v920
        %v937 = vsel %vm905, %v888, %v921
        %v938 = vpack.c.bf16 %v930, %v922
        %v939 = vpack.c.bf16 %v931, %v923
        %v940 = vpack.c.bf16 %v932, %v924
        %v941 = vpack.c.bf16 %v933, %v925
        %v942 = vpack.c.bf16 %v934, %v926
        %v943 = vpack.c.bf16 %v935, %v927
        %v944 = vpack.c.bf16 %v936, %v928
        %v945 = vpack.c.bf16 %v937, %v929
        %v954 = vunpack.c.l.b16 %v938
        %v955 = vunpack.c.l.b16 %v939
        %v956 = vunpack.c.l.b16 %v940
        %v957 = vunpack.c.l.b16 %v941
        %v958 = vunpack.c.l.b16 %v942
        %v959 = vunpack.c.l.b16 %v943
        %v960 = vunpack.c.l.b16 %v944
        %v961 = vunpack.c.l.b16 %v945
        %v962 = vunpack.c.h.b16 %v938
        %v963 = vunpack.c.h.b16 %v939
        %v964 = vunpack.c.h.b16 %v940
        %v965 = vunpack.c.h.b16 %v941
        %v966 = vunpack.c.h.b16 %v942
        %v967 = vunpack.c.h.b16 %v943
        %v968 = vunpack.c.h.b16 %v944
        %v969 = vunpack.c.h.b16 %v945
        %v970 = vpack.c.b16 %v955, %v954
        %v971 = vpack.c.b16 %v957, %v956
        %v972 = vpack.c.b16 %v959, %v958
        %v973 = vpack.c.b16 %v961, %v960
        %v974 = vpack.c.b16 %v963, %v962
        %v975 = vpack.c.b16 %v965, %v964
        %v976 = vpack.c.b16 %v967, %v966
        %v977 = vpack.c.b16 %v969, %v968
        %986 = vst [vmem:[%s310] sm:$0xff] %v970
        %987 = vst [vmem:[%s310 + $0x8] sm:$0xff] %v971
        %988 = vst [vmem:[%s310 + $0x10] sm:$0xff] %v972
        %989 = vst [vmem:[%s310 + $0x18] sm:$0xff] %v973
        %990 = vst [vmem:[%s310 + $0x20] sm:$0xff] %v974
        %991 = vst [vmem:[%s310 + $0x28] sm:$0xff] %v975
        %992 = vst [vmem:[%s310 + $0x30] sm:$0xff] %v976
        %993 = vst [vmem:[%s310 + $0x38] sm:$0xff] %v977
        %s994 = sand.u32 %s90, 1
        %s995 = sand.u32 %s90, 1
        %s996 = smul.addr %s995, 64
        %s997 = scalar_lea.vmem [#allocation3], %s996
        // Predicated region
        $region56: #{discriminator_forward.8} parent=50 // pred_check
          %p998 = pneg %p100
        $region57: #{discriminator_forward.8} parent=50 // pred_check_branch
          %1000 = sbr.rel (%p998) target = $region59
        $region58: #{discriminator_forward.8} parent=50 // pred_region
          %s1001 = smul.u32 8, %s14
          %s1002 = smul.addr %s1001, 4
          %s1003 = scalar_lea.vmem %s3, %s1002
          // Predicated region
          $region60: #{discriminator_forward.8} parent=58 // pred_check
            _
          $region61: #{discriminator_forward.8} parent=58 // pred_check_branch
            %1005 = sbr.rel (0) target = $region63
          $region62: #{discriminator_forward.8} parent=58 // pred_region
            // Predicated region
            $region64: #{discriminator_forward.8} parent=62 // pred_check
              _
            $region65: #{discriminator_forward.8} parent=62 // pred_check_branch
              %1007 = sbr.rel (0) target = $region67
            $region66: #{discriminator_forward.8} parent=62 // pred_region
              loop: start=0, step=1, limit=1
              $region68: #{discriminator_forward.8} parent=66 // loop_pre_header
                _
              $region69: #{discriminator_forward.8} parent=66 // loop_header
                %s1009 = sphi 0, %s1013
                %p1010 = scmp.ge.s32.totalorder %s1009, 1
                %s1014 = sphi %s997, %s997
                %s1015 = sphi %s1003, %s1003
              $region70: #{discriminator_forward.8} parent=66 // loop_header_branch
                %1012 = sbr.rel (%p1010) target = $region74
              $region71: #{discriminator_forward.8} parent=66 // loop_body
                %v1016 = vld [vmem:[%s1014] sm:$0xff]
                %1017 = vst [vmem:[%s1015] sm:$0xff] %v1016
                %v1018 = vld [vmem:[%s1014 + $0x8] sm:$0xff]
                %1019 = vst [vmem:[%s1015 + $0x8] sm:$0xff] %v1018
                %v1020 = vld [vmem:[%s1014 + $0x10] sm:$0xff]
                %1021 = vst [vmem:[%s1015 + $0x10] sm:$0xff] %v1020
                %v1022 = vld [vmem:[%s1014 + $0x18] sm:$0xff]
                %1023 = vst [vmem:[%s1015 + $0x18] sm:$0xff] %v1022
                %v1024 = vld [vmem:[%s1014 + $0x20] sm:$0xff]
                %1025 = vst [vmem:[%s1015 + $0x40] sm:$0xff] %v1024
                %v1026 = vld [vmem:[%s1014 + $0x28] sm:$0xff]
                %1027 = vst [vmem:[%s1015 + $0x48] sm:$0xff] %v1026
                %v1028 = vld [vmem:[%s1014 + $0x30] sm:$0xff]
                %1029 = vst [vmem:[%s1015 + $0x50] sm:$0xff] %v1028
                %v1030 = vld [vmem:[%s1014 + $0x38] sm:$0xff]
                %1031 = vst [vmem:[%s1015 + $0x58] sm:$0xff] %v1030
              $region72: #{discriminator_forward.8} parent=66 // loop_footer
                %s1013 = sadd.s32 1, %s1009
              $region73: #{discriminator_forward.8} parent=66 // loop_footer_branch
                %1008 = sbr.rel target = $region69
              $region74: #{discriminator_forward.8} parent=66 // loop_exit
                _
            $region67: #{discriminator_forward.8} parent=62 // pred_fallthru
              _
            // Predicated region
            $region75: #{discriminator_forward.8} parent=62 // pred_check
              _
            $region76: #{discriminator_forward.8} parent=62 // pred_check_branch
              %1033 = sbr.rel target = $region78
            $region77: #{discriminator_forward.8} parent=62 // pred_region
              _
            $region78: #{discriminator_forward.8} parent=62 // pred_fallthru
              _
          $region63: #{discriminator_forward.8} parent=58 // pred_fallthru
            _
          %1034 = vnop
        $region59: #{discriminator_forward.8} parent=50 // pred_fallthru
          _
      $region51: #{discriminator_forward.8} parent=5 // pred_fallthru
        _
      %p1035 = scmp.le.s32.totalorder 2, %s9
      // Predicated region
      $region79: #{discriminator_forward.8} parent=5 // pred_check
        %p1036 = pneg %p1035
      $region80: #{discriminator_forward.8} parent=5 // pred_check_branch
        %1038 = sbr.rel (%p1036) target = $region82
      $region81: #{discriminator_forward.8} parent=5 // pred_region
        %s1039 = ssub.s32 %s9, 2
        // Predicated region
        $region83: #{discriminator_forward.8} parent=81 // pred_check
          %p1040 = pneg %p106
        $region84: #{discriminator_forward.8} parent=81 // pred_check_branch
          %1042 = sbr.rel (%p1040) target = $region86
        $region85: #{discriminator_forward.8} parent=81 // pred_region
          %s1043 = sand.u32 %s91, 1
          %s1044 = sand.u32 %s91, 1
          %s1045 = smul.addr %s1044, 64
          %s1046 = scalar_lea.vmem [#allocation3], %s1045
        $region86: #{discriminator_forward.8} parent=81 // pred_fallthru
          _
      $region82: #{discriminator_forward.8} parent=5 // pred_fallthru
        _
    $region6: #{discriminator_forward.8} parent=1 // loop_footer
      %s13 = sadd.s32 1, %s9
    $region7: #{discriminator_forward.8} parent=1 // loop_footer_branch
      %8 = sbr.rel target = $region3
    $region8: #{discriminator_forward.8} parent=1 // loop_exit
      _

// kernel: discriminator_forward.9
$region0: #{discriminator_forward.9}
  #allocation0 [shape = 'u32[]', space=smem, size = 0x4, offset = 0x4, fixed_abs, tag = 'smem constant byte address 0x4 - core index']
  #allocation1 [shape = 'u32[144,128]{1,0:T(1,128)}', space=vmem, size = 0x12000, scoped, tag = 'internal scratch']
  %s0 = inlined_call_operand.vmem [shape: bf16[32,256], index: 0, kind: input, shape index: {}]
  %s1 = inlined_call_operand.vmem [shape: bf16[256,512], index: 1, kind: input, shape index: {}]
  %s2 = inlined_call_operand.vmem [shape: f32[32,1], index: 2, kind: input, shape index: {}]
  %s3 = inlined_call_operand.vmem [shape: bf16[32,512], index: 3, kind: output, shape index: {}]
  %s4 = sld [smem:[#allocation0]]
  $region117: #{discriminator_forward.9} parent=0
    _
  %s6 = ssub.s32 1, %s4
  %s7 = scalar_select 0, %s6, %s4
  $region1: #{discriminator_forward.9} parent=0
    #allocation2 [shape = 'u8[262144]{0}', space=vmem, size = 0x40000, scoped, tag = 'input window, operand 1']
    #allocation3 [shape = 'u8[32768]{0}', space=vmem, size = 0x8000, scoped, tag = 'output window, operand 0']
    loop: start=0, step=1, limit=4
    $region2: #{discriminator_forward.9} parent=1 // loop_pre_header
      _
    $region3: #{discriminator_forward.9} parent=1 // loop_header
      %s9 = sphi 0, %s13
      %p10 = scmp.ge.s32.totalorder %s9, 4
      %s17 = sphi 0, %s17
      %s19 = sphi 0, %s17
      %s20 = sphi 0, %s19
      %s34 = sphi 0, %s20
      %s40 = sphi 0, %s42
      %s43 = sphi 0, %s40
      %s44 = sphi 0, %s43
      %s60 = sphi 0, %s44
      %s64 = sphi 0, %s64
      %s66 = sphi 0, %s64
      %s67 = sphi 0, %s66
      %s81 = sphi 0, %s67
      %s87 = sphi 0, %s89
      %s90 = sphi 0, %s87
      %s91 = sphi 0, %s90
      %s107 = sphi 0, %s91
    $region4: #{discriminator_forward.9} parent=1 // loop_header_branch
      %12 = sbr.rel (%p10) target = $region8
    $region5: #{discriminator_forward.9} parent=1 // loop_body
      %s14 = ssub.s32 %s9, 1
      %s15 = ssub.s32 %s9, 2
      %s16 = sadd.s32 %s9, 1
      %s18 = sadd.s32 %s17, 1
      %p21 = scmp.eq.s32.totalorder %s9, 1
      %p22 = scmp.ne.s32.totalorder %s17, %s19
      %p23 = scmp.eq.s32.totalorder %s9, 0
      %p24 = por %p22, %p23
      %p25 = scmp.ne.s32.totalorder %s17, %s19
      %p26 = scmp.eq.s32.totalorder %s14, 1
      %p27 = por %p25, %p26
      %p28 = scmp.ne.s32.totalorder %s19, %s20
      %p29 = scmp.eq.s32.totalorder %s14, 0
      %p30 = por %p28, %p29
      %p31 = scmp.ne.s32.totalorder %s19, %s20
      %p32 = scmp.eq.s32.totalorder %s15, 1
      %p33 = por %p31, %p32
      %p35 = scmp.ne.s32.totalorder %s20, %s34
      %p36 = scmp.eq.s32.totalorder %s15, 0
      %p37 = por %p35, %p36
      %s38 = ssub.s32 %s9, %s16
      %p39 = scmp.eq.s32.totalorder %s38, 0
      %s41 = sadd.s32 %s40, 1
      %s42 = scalar_select %p39, %s40, %s41
      %p45 = pneg %p39
      %p46 = scmp.eq.s32.totalorder %s9, 1
      %p47 = por %p45, %p46
      %p48 = scmp.ne.s32.totalorder %s40, %s43
      %p49 = scmp.eq.s32.totalorder %s9, 0
      %p50 = por %p48, %p49
      %p51 = scmp.ne.s32.totalorder %s40, %s43
      %p52 = scmp.eq.s32.totalorder %s14, 1
      %p53 = por %p51, %p52
      %p54 = scmp.ne.s32.totalorder %s43, %s44
      %p55 = scmp.eq.s32.totalorder %s14, 0
      %p56 = por %p54, %p55
      %p57 = scmp.ne.s32.totalorder %s43, %s44
      %p58 = scmp.eq.s32.totalorder %s15, 1
      %p59 = por %p57, %p58
      %p61 = scmp.ne.s32.totalorder %s44, %s60
      %p62 = scmp.eq.s32.totalorder %s15, 0
      %p63 = por %p61, %p62
      %s65 = sadd.s32 %s64, 1
      %p68 = scmp.eq.s32.totalorder %s9, 1
      %p69 = scmp.ne.s32.totalorder %s64, %s66
      %p70 = scmp.eq.s32.totalorder %s9, 0
      %p71 = por %p69, %p70
      %p72 = scmp.ne.s32.totalorder %s64, %s66
      %p73 = scmp.eq.s32.totalorder %s14, 1
      %p74 = por %p72, %p73
      %p75 = scmp.ne.s32.totalorder %s66, %s67
      %p76 = scmp.eq.s32.totalorder %s14, 0
      %p77 = por %p75, %p76
      %p78 = scmp.ne.s32.totalorder %s66, %s67
      %p79 = scmp.eq.s32.totalorder %s15, 1
      %p80 = por %p78, %p79
      %p82 = scmp.ne.s32.totalorder %s67, %s81
      %p83 = scmp.eq.s32.totalorder %s15, 0
      %p84 = por %p82, %p83
      %s85 = ssub.s32 %s9, %s16
      %p86 = scmp.eq.s32.totalorder %s85, 0
      %s88 = sadd.s32 %s87, 1
      %s89 = scalar_select %p86, %s87, %s88
      %p92 = pneg %p86
      %p93 = scmp.eq.s32.totalorder %s9, 1
      %p94 = por %p92, %p93
      %p95 = scmp.ne.s32.totalorder %s87, %s90
      %p96 = scmp.eq.s32.totalorder %s9, 0
      %p97 = por %p95, %p96
      %p98 = scmp.ne.s32.totalorder %s87, %s90
      %p99 = scmp.eq.s32.totalorder %s14, 1
      %p100 = por %p98, %p99
      %p101 = scmp.ne.s32.totalorder %s90, %s91
      %p102 = scmp.eq.s32.totalorder %s14, 0
      %p103 = por %p101, %p102
      %p104 = scmp.ne.s32.totalorder %s90, %s91
      %p105 = scmp.eq.s32.totalorder %s15, 1
      %p106 = por %p104, %p105
      %p108 = scmp.ne.s32.totalorder %s91, %s107
      %p109 = scmp.eq.s32.totalorder %s15, 0
      %p110 = por %p108, %p109
      %p111 = scmp.le.s32.totalorder 1, %s9
      %p112 = scmp.lt.s32.totalorder %s9, 3
      %p113 = pnand %p111, %p112
      %p114 = pneg %p113
      // Predicated region
      $region9: #{discriminator_forward.9} parent=5 // pred_check
        _
      $region10: #{discriminator_forward.9} parent=5 // pred_check_branch
        %116 = sbr.rel (%p113) target = $region12
      $region11: #{discriminator_forward.9} parent=5 // pred_region
        %s117 = ssub.s32 %s9, 1
        // Predicated region
        $region13: #{discriminator_forward.9} parent=11 // pred_check
          %p118 = pneg %p30
        $region14: #{discriminator_forward.9} parent=11 // pred_check_branch
          %120 = sbr.rel (%p118) target = $region16
        $region15: #{discriminator_forward.9} parent=11 // pred_region
          _
        $region16: #{discriminator_forward.9} parent=11 // pred_fallthru
          _
        // Predicated region
        $region17: #{discriminator_forward.9} parent=11 // pred_check
          %p121 = pneg %p77
        $region18: #{discriminator_forward.9} parent=11 // pred_check_branch
          %123 = sbr.rel (%p121) target = $region20
        $region19: #{discriminator_forward.9} parent=11 // pred_region
          _
        $region20: #{discriminator_forward.9} parent=11 // pred_fallthru
          _
      $region12: #{discriminator_forward.9} parent=5 // pred_fallthru
        _
      %p124 = scmp.lt.s32.totalorder %s9, 2
      // Predicated region
      $region21: #{discriminator_forward.9} parent=5 // pred_check
        %p125 = pneg %p124
      $region22: #{discriminator_forward.9} parent=5 // pred_check_branch
        %127 = sbr.rel (%p125) target = $region24
      $region23: #{discriminator_forward.9} parent=5 // pred_region
        // Predicated region
        $region25: #{discriminator_forward.9} parent=23 // pred_check
          %p128 = pneg %p50
        $region26: #{discriminator_forward.9} parent=23 // pred_check_branch
          %130 = sbr.rel (%p128) target = $region28
        $region27: #{discriminator_forward.9} parent=23 // pred_region
          %s131 = sand.u32 %s40, 1
          %s132 = sand.u32 %s40, 1
          %s133 = smul.addr %s132, 256
          %s134 = scalar_lea.vmem [#allocation2], %s133
          %s135 = smul.u32 2, %s9
          %s136 = smul.addr %s135, 4
          %s137 = scalar_lea.vmem %s1, %s136
          // Predicated region
          $region29: #{discriminator_forward.9} parent=27 // pred_check
            _
          $region30: #{discriminator_forward.9} parent=27 // pred_check_branch
            %139 = sbr.rel (0) target = $region32
          $region31: #{discriminator_forward.9} parent=27 // pred_region
            // Predicated region
            $region33: #{discriminator_forward.9} parent=31 // pred_check
              _
            $region34: #{discriminator_forward.9} parent=31 // pred_check_branch
              %141 = sbr.rel (0) target = $region36
            $region35: #{discriminator_forward.9} parent=31 // pred_region
              // Predicated region
              $region48: #{discriminator_forward.9} parent=35 // pred_check
                _
              $region49: #{discriminator_forward.9} parent=35 // pred_check_branch
                %219 = sbr.rel (0) target = $region51
              $region50: #{discriminator_forward.9} parent=35 // pred_region
                loop: start=0, step=1, limit=1
                $region52: #{discriminator_forward.9} parent=50 // loop_pre_header
                  _
                $region53: #{discriminator_forward.9} parent=50 // loop_header
                  %s221 = sphi 0, %s225
                  %p222 = scmp.ge.s32.totalorder %s221, 1
                  %s226 = sphi %s137, %s137
                  %s227 = sphi %s134, %s134
                $region54: #{discriminator_forward.9} parent=50 // loop_header_branch
                  %224 = sbr.rel (%p222) target = $region58
                $region55: #{discriminator_forward.9} parent=50 // loop_body
                  %v228 = vld [vmem:[%s226] sm:$0xff]
                  %229 = vst [vmem:[%s227] sm:$0xff] %v228
                  %v230 = vld [vmem:[%s226 + $0x10] sm:$0xff]
                  %231 = vst [vmem:[%s227 + $0x8] sm:$0xff] %v230
                  %v232 = vld [vmem:[%s226 + $0x20] sm:$0xff]
                  %233 = vst [vmem:[%s227 + $0x10] sm:$0xff] %v232
                  %v234 = vld [vmem:[%s226 + $0x30] sm:$0xff]
                  %235 = vst [vmem:[%s227 + $0x18] sm:$0xff] %v234
                  %v236 = vld [vmem:[%s226 + $0x40] sm:$0xff]
                  %237 = vst [vmem:[%s227 + $0x20] sm:$0xff] %v236
                  %v238 = vld [vmem:[%s226 + $0x50] sm:$0xff]
                  %239 = vst [vmem:[%s227 + $0x28] sm:$0xff] %v238
                  %v240 = vld [vmem:[%s226 + $0x60] sm:$0xff]
                  %241 = vst [vmem:[%s227 + $0x30] sm:$0xff] %v240
                  %v242 = vld [vmem:[%s226 + $0x70] sm:$0xff]
                  %243 = vst [vmem:[%s227 + $0x38] sm:$0xff] %v242
                  %v244 = vld [vmem:[%s226 + $0x80] sm:$0xff]
                  %245 = vst [vmem:[%s227 + $0x40] sm:$0xff] %v244
                  %v246 = vld [vmem:[%s226 + $0x90] sm:$0xff]
                  %247 = vst [vmem:[%s227 + $0x48] sm:$0xff] %v246
                  %v248 = vld [vmem:[%s226 + $0xa0] sm:$0xff]
                  %249 = vst [vmem:[%s227 + $0x50] sm:$0xff] %v248
                  %v250 = vld [vmem:[%s226 + $0xb0] sm:$0xff]
                  %251 = vst [vmem:[%s227 + $0x58] sm:$0xff] %v250
                  %v252 = vld [vmem:[%s226 + $0xc0] sm:$0xff]
                  %253 = vst [vmem:[%s227 + $0x60] sm:$0xff] %v252
                  %v254 = vld [vmem:[%s226 + $0xd0] sm:$0xff]
                  %255 = vst [vmem:[%s227 + $0x68] sm:$0xff] %v254
                  %v256 = vld [vmem:[%s226 + $0xe0] sm:$0xff]
                  %257 = vst [vmem:[%s227 + $0x70] sm:$0xff] %v256
                  %v258 = vld [vmem:[%s226 + $0xf0] sm:$0xff]
                  %259 = vst [vmem:[%s227 + $0x78] sm:$0xff] %v258
                  %v260 = vld [vmem:[%s226 + $0x100] sm:$0xff]
                  %261 = vst [vmem:[%s227 + $0x80] sm:$0xff] %v260
                  %v262 = vld [vmem:[%s226 + $0x110] sm:$0xff]
                  %263 = vst [vmem:[%s227 + $0x88] sm:$0xff] %v262
                  %v264 = vld [vmem:[%s226 + $0x120] sm:$0xff]
                  %265 = vst [vmem:[%s227 + $0x90] sm:$0xff] %v264
                  %v266 = vld [vmem:[%s226 + $0x130] sm:$0xff]
                  %267 = vst [vmem:[%s227 + $0x98] sm:$0xff] %v266
                  %v268 = vld [vmem:[%s226 + $0x140] sm:$0xff]
                  %269 = vst [vmem:[%s227 + $0xa0] sm:$0xff] %v268
                  %v270 = vld [vmem:[%s226 + $0x150] sm:$0xff]
                  %271 = vst [vmem:[%s227 + $0xa8] sm:$0xff] %v270
                  %v272 = vld [vmem:[%s226 + $0x160] sm:$0xff]
                  %273 = vst [vmem:[%s227 + $0xb0] sm:$0xff] %v272
                  %v274 = vld [vmem:[%s226 + $0x170] sm:$0xff]
                  %275 = vst [vmem:[%s227 + $0xb8] sm:$0xff] %v274
                  %v276 = vld [vmem:[%s226 + $0x180] sm:$0xff]
                  %277 = vst [vmem:[%s227 + $0xc0] sm:$0xff] %v276
                  %v278 = vld [vmem:[%s226 + $0x190] sm:$0xff]
                  %279 = vst [vmem:[%s227 + $0xc8] sm:$0xff] %v278
                  %v280 = vld [vmem:[%s226 + $0x1a0] sm:$0xff]
                  %281 = vst [vmem:[%s227 + $0xd0] sm:$0xff] %v280
                  %v282 = vld [vmem:[%s226 + $0x1b0] sm:$0xff]
                  %283 = vst [vmem:[%s227 + $0xd8] sm:$0xff] %v282
                  %v284 = vld [vmem:[%s226 + $0x1c0] sm:$0xff]
                  %285 = vst [vmem:[%s227 + $0xe0] sm:$0xff] %v284
                  %v286 = vld [vmem:[%s226 + $0x1d0] sm:$0xff]
                  %287 = vst [vmem:[%s227 + $0xe8] sm:$0xff] %v286
                  %v288 = vld [vmem:[%s226 + $0x1e0] sm:$0xff]
                  %289 = vst [vmem:[%s227 + $0xf0] sm:$0xff] %v288
                  %v290 = vld [vmem:[%s226 + $0x1f0] sm:$0xff]
                  %291 = vst [vmem:[%s227 + $0xf8] sm:$0xff] %v290
                $region56: #{discriminator_forward.9} parent=50 // loop_footer
                  %s225 = sadd.s32 1, %s221
                $region57: #{discriminator_forward.9} parent=50 // loop_footer_branch
                  %220 = sbr.rel target = $region53
                $region58: #{discriminator_forward.9} parent=50 // loop_exit
                  _
              $region51: #{discriminator_forward.9} parent=35 // pred_fallthru
                _
              // Predicated region
              $region59: #{discriminator_forward.9} parent=35 // pred_check
                _
              $region60: #{discriminator_forward.9} parent=35 // pred_check_branch
                %293 = sbr.rel target = $region62
              $region61: #{discriminator_forward.9} parent=35 // pred_region
                _
              $region62: #{discriminator_forward.9} parent=35 // pred_fallthru
                _
            $region36: #{discriminator_forward.9} parent=31 // pred_fallthru
              _
            // Predicated region
            $region37: #{discriminator_forward.9} parent=31 // pred_check
              _
            $region38: #{discriminator_forward.9} parent=31 // pred_check_branch
              %143 = sbr.rel target = $region40
            $region39: #{discriminator_forward.9} parent=31 // pred_region
              %s145 = ssub.s32 256, 1
              loop: start=0, step=1, limit=1
              $region41: #{discriminator_forward.9} parent=39 // loop_pre_header
                _
              $region42: #{discriminator_forward.9} parent=39 // loop_header
                %s147 = sphi 0, %s151
                %p148 = scmp.ge.s32.totalorder %s147, 1
                %s152 = sphi %s137, %s137
                %s153 = sphi %s134, %s134
              $region43: #{discriminator_forward.9} parent=39 // loop_header_branch
                %150 = sbr.rel (%p148) target = $region47
              $region44: #{discriminator_forward.9} parent=39 // loop_body
                %v154 = vld [vmem:[%s152] sm:%s145]
                %155 = vst [vmem:[%s153] sm:%s145] %v154
                %v156 = vld [vmem:[%s152 + $0x10] sm:%s145]
                %157 = vst [vmem:[%s153 + $0x8] sm:%s145] %v156
                %v158 = vld [vmem:[%s152 + $0x20] sm:%s145]
                %159 = vst [vmem:[%s153 + $0x10] sm:%s145] %v158
                %v160 = vld [vmem:[%s152 + $0x30] sm:%s145]
                %161 = vst [vmem:[%s153 + $0x18] sm:%s145] %v160
                %v162 = vld [vmem:[%s152 + $0x40] sm:%s145]
                %163 = vst [vmem:[%s153 + $0x20] sm:%s145] %v162
                %v164 = vld [vmem:[%s152 + $0x50] sm:%s145]
                %165 = vst [vmem:[%s153 + $0x28] sm:%s145] %v164
                %v166 = vld [vmem:[%s152 + $0x60] sm:%s145]
                %167 = vst [vmem:[%s153 + $0x30] sm:%s145] %v166
                %v168 = vld [vmem:[%s152 + $0x70] sm:%s145]
                %169 = vst [vmem:[%s153 + $0x38] sm:%s145] %v168
                %v170 = vld [vmem:[%s152 + $0x80] sm:%s145]
                %171 = vst [vmem:[%s153 + $0x40] sm:%s145] %v170
                %v172 = vld [vmem:[%s152 + $0x90] sm:%s145]
                %173 = vst [vmem:[%s153 + $0x48] sm:%s145] %v172
                %v174 = vld [vmem:[%s152 + $0xa0] sm:%s145]
                %175 = vst [vmem:[%s153 + $0x50] sm:%s145] %v174
                %v176 = vld [vmem:[%s152 + $0xb0] sm:%s145]
                %177 = vst [vmem:[%s153 + $0x58] sm:%s145] %v176
                %v178 = vld [vmem:[%s152 + $0xc0] sm:%s145]
                %179 = vst [vmem:[%s153 + $0x60] sm:%s145] %v178
                %v180 = vld [vmem:[%s152 + $0xd0] sm:%s145]
                %181 = vst [vmem:[%s153 + $0x68] sm:%s145] %v180
                %v182 = vld [vmem:[%s152 + $0xe0] sm:%s145]
                %183 = vst [vmem:[%s153 + $0x70] sm:%s145] %v182
                %v184 = vld [vmem:[%s152 + $0xf0] sm:%s145]
                %185 = vst [vmem:[%s153 + $0x78] sm:%s145] %v184
                %v186 = vld [vmem:[%s152 + $0x100] sm:%s145]
                %187 = vst [vmem:[%s153 + $0x80] sm:%s145] %v186
                %v188 = vld [vmem:[%s152 + $0x110] sm:%s145]
                %189 = vst [vmem:[%s153 + $0x88] sm:%s145] %v188
                %v190 = vld [vmem:[%s152 + $0x120] sm:%s145]
                %191 = vst [vmem:[%s153 + $0x90] sm:%s145] %v190
                %v192 = vld [vmem:[%s152 + $0x130] sm:%s145]
                %193 = vst [vmem:[%s153 + $0x98] sm:%s145] %v192
                %v194 = vld [vmem:[%s152 + $0x140] sm:%s145]
                %195 = vst [vmem:[%s153 + $0xa0] sm:%s145] %v194
                %v196 = vld [vmem:[%s152 + $0x150] sm:%s145]
                %197 = vst [vmem:[%s153 + $0xa8] sm:%s145] %v196
                %v198 = vld [vmem:[%s152 + $0x160] sm:%s145]
                %199 = vst [vmem:[%s153 + $0xb0] sm:%s145] %v198
                %v200 = vld [vmem:[%s152 + $0x170] sm:%s145]
                %201 = vst [vmem:[%s153 + $0xb8] sm:%s145] %v200
                %v202 = vld [vmem:[%s152 + $0x180] sm:%s145]
                %203 = vst [vmem:[%s153 + $0xc0] sm:%s145] %v202
                %v204 = vld [vmem:[%s152 + $0x190] sm:%s145]
                %205 = vst [vmem:[%s153 + $0xc8] sm:%s145] %v204
                %v206 = vld [vmem:[%s152 + $0x1a0] sm:%s145]
                %207 = vst [vmem:[%s153 + $0xd0] sm:%s145] %v206
                %v208 = vld [vmem:[%s152 + $0x1b0] sm:%s145]
                %209 = vst [vmem:[%s153 + $0xd8] sm:%s145] %v208
                %v210 = vld [vmem:[%s152 + $0x1c0] sm:%s145]
                %211 = vst [vmem:[%s153 + $0xe0] sm:%s145] %v210
                %v212 = vld [vmem:[%s152 + $0x1d0] sm:%s145]
                %213 = vst [vmem:[%s153 + $0xe8] sm:%s145] %v212
                %v214 = vld [vmem:[%s152 + $0x1e0] sm:%s145]
                %215 = vst [vmem:[%s153 + $0xf0] sm:%s145] %v214
                %v216 = vld [vmem:[%s152 + $0x1f0] sm:%s145]
                %217 = vst [vmem:[%s153 + $0xf8] sm:%s145] %v216
              $region45: #{discriminator_forward.9} parent=39 // loop_footer
                %s151 = sadd.s32 1, %s147
              $region46: #{discriminator_forward.9} parent=39 // loop_footer_branch
                %146 = sbr.rel target = $region42
              $region47: #{discriminator_forward.9} parent=39 // loop_exit
                _
            $region40: #{discriminator_forward.9} parent=31 // pred_fallthru
              _
          $region32: #{discriminator_forward.9} parent=27 // pred_fallthru
            _
          %294 = vnop
        $region28: #{discriminator_forward.9} parent=23 // pred_fallthru
          _
      $region24: #{discriminator_forward.9} parent=5 // pred_fallthru
        _
      %p295 = scmp.le.s32.totalorder 1, %s9
      %p296 = scmp.lt.s32.totalorder %s9, 3
      %p297 = pnand %p295, %p296
      %p298 = pneg %p297
      // Predicated region
      $region63: #{discriminator_forward.9} parent=5 // pred_check
        _
      $region64: #{discriminator_forward.9} parent=5 // pred_check_branch
        %300 = sbr.rel (%p297) target = $region66
      $region65: #{discriminator_forward.9} parent=5 // pred_region
        %s301 = ssub.s32 %s9, 1
        %s302 = sand.u32 %s43, 1
        %s303 = sand.u32 %s43, 1
        %s304 = smul.addr %s303, 256
        %s305 = scalar_lea.vmem [#allocation2], %s304
        // Predicated region
        $region67: #{discriminator_forward.9} parent=65 // pred_check
          %p306 = pneg %p56
        $region68: #{discriminator_forward.9} parent=65 // pred_check_branch
          %308 = sbr.rel (%p306) target = $region70
        $region69: #{discriminator_forward.9} parent=65 // pred_region
          _
        $region70: #{discriminator_forward.9} parent=65 // pred_fallthru
          _
        %p309 = pneg %p30
        %p310 = pneg %p27
        %s311 = sand.u32 %s43, 1
        %s312 = sand.u32 %s43, 1
        %s313 = smul.addr %s312, 256
        %s314 = scalar_lea.vmem [#allocation2], %s313
        %p315 = pneg %p56
        %p316 = pneg %p53
        %p317 = pneg %p77
        %p318 = pneg %p74
        %p319 = pneg %p103
        %p320 = pneg %p100
        %s321 = sand.u32 %s90, 1
        %s322 = sand.u32 %s90, 1
        %s323 = smul.addr %s322, 32
        %s324 = scalar_lea.vmem [#allocation3], %s323
        %s325 = smul.u32 2, %s14
        %s326 = smul.u32 2, %s14
        %v327 = vld [vmem:[%s0] sm:$0xff]
        %v328 = vld [vmem:[%s0 + $0x8] sm:$0xff]
        %v329 = vld [vmem:[%s0 + $0x10] sm:$0xff]
        %v330 = vld [vmem:[%s0 + $0x18] sm:$0xff]
        %v331 = vld [vmem:[%s305] sm:$0xff]
        %v332 = vld [vmem:[%s305 + $0x8] sm:$0xff]
        %v333 = vld [vmem:[%s305 + $0x10] sm:$0xff]
        %v334 = vld [vmem:[%s305 + $0x18] sm:$0xff]
        %v335 = vld [vmem:[%s305 + $0x20] sm:$0xff]
        %v336 = vld [vmem:[%s305 + $0x28] sm:$0xff]
        %v337 = vld [vmem:[%s305 + $0x30] sm:$0xff]
        %v338 = vld [vmem:[%s305 + $0x38] sm:$0xff]
        %v339 = vld [vmem:[%s305 + $0x40] sm:$0xff]
        %v340 = vld [vmem:[%s305 + $0x48] sm:$0xff]
        %v341 = vld [vmem:[%s305 + $0x50] sm:$0xff]
        %v342 = vld [vmem:[%s305 + $0x58] sm:$0xff]
        %v343 = vld [vmem:[%s305 + $0x60] sm:$0xff]
        %v344 = vld [vmem:[%s305 + $0x68] sm:$0xff]
        %v345 = vld [vmem:[%s305 + $0x70] sm:$0xff]
        %v346 = vld [vmem:[%s305 + $0x78] sm:$0xff]
        %v347 = vld [vmem:[%s305 + $0x80] sm:$0xff]
        %v348 = vld [vmem:[%s305 + $0x88] sm:$0xff]
        %v349 = vld [vmem:[%s305 + $0x90] sm:$0xff]
        %v350 = vld [vmem:[%s305 + $0x98] sm:$0xff]
        %v351 = vld [vmem:[%s305 + $0xa0] sm:$0xff]
        %v352 = vld [vmem:[%s305 + $0xa8] sm:$0xff]
        %v353 = vld [vmem:[%s305 + $0xb0] sm:$0xff]
        %v354 = vld [vmem:[%s305 + $0xb8] sm:$0xff]
        %v355 = vld [vmem:[%s305 + $0xc0] sm:$0xff]
        %v356 = vld [vmem:[%s305 + $0xc8] sm:$0xff]
        %v357 = vld [vmem:[%s305 + $0xd0] sm:$0xff]
        %v358 = vld [vmem:[%s305 + $0xd8] sm:$0xff]
        %v359 = vld [vmem:[%s305 + $0xe0] sm:$0xff]
        %v360 = vld [vmem:[%s305 + $0xe8] sm:$0xff]
        %v361 = vld [vmem:[%s305 + $0xf0] sm:$0xff]
        %v362 = vld [vmem:[%s305 + $0xf8] sm:$0xff]
        %v363 = vld [vmem:[%s2] sm:$0xff]
        %v364 = vld [vmem:[%s2 + $0x8] sm:$0xff]
        %v365 = vld [vmem:[%s2 + $0x10] sm:$0xff]
        %v366 = vld [vmem:[%s2 + $0x18] sm:$0xff]
        %368 = vset.pattern.permute.xlu0 0
        %369 = vperm.xlu0 %368, %v363
        %v370 = vpop.permute.xlu0 %369
        %373 = vset.pattern.permute.xlu0 0
        %374 = vperm.xlu0 %373, %v364
        %v375 = vpop.permute.xlu0 %374
        %378 = vset.pattern.permute.xlu0 0
        %379 = vperm.xlu0 %378, %v365
        %v380 = vpop.permute.xlu0 %379
        %383 = vset.pattern.permute.xlu0 0
        %384 = vperm.xlu0 %383, %v366
        %v385 = vpop.permute.xlu0 %384
        %v391 = vunpack.c.l.b16 %v327
        %v392 = vunpack.c.h.b16 %v327
        %v393 = vunpack.c.l.b16 %v328
        %v394 = vunpack.c.h.b16 %v328
        %v395 = vunpack.c.l.b16 %v329
        %v396 = vunpack.c.h.b16 %v329
        %v397 = vunpack.c.l.b16 %v330
        %v398 = vunpack.c.h.b16 %v330
        %v399 = vpack.c.b16 %v393, %v391
        %v400 = vpack.c.b16 %v394, %v392
        %v401 = vpack.c.b16 %v397, %v395
        %v402 = vpack.c.b16 %v398, %v396
        %v439 = vunpack.c.l.b16 %v331
        %v440 = vunpack.c.h.b16 %v331
        %v441 = vunpack.c.l.b16 %v332
        %v442 = vunpack.c.h.b16 %v332
        %v443 = vunpack.c.l.b16 %v333
        %v444 = vunpack.c.h.b16 %v333
        %v445 = vunpack.c.l.b16 %v334
        %v446 = vunpack.c.h.b16 %v334
        %v447 = vunpack.c.l.b16 %v335
        %v448 = vunpack.c.h.b16 %v335
        %v449 = vunpack.c.l.b16 %v336
        %v450 = vunpack.c.h.b16 %v336
        %v451 = vunpack.c.l.b16 %v337
        %v452 = vunpack.c.h.b16 %v337
        %v453 = vunpack.c.l.b16 %v338
        %v454 = vunpack.c.h.b16 %v338
        %v455 = vunpack.c.l.b16 %v339
        %v456 = vunpack.c.h.b16 %v339
        %v457 = vunpack.c.l.b16 %v340
        %v458 = vunpack.c.h.b16 %v340
        %v459 = vunpack.c.l.b16 %v341
        %v460 = vunpack.c.h.b16 %v341
        %v461 = vunpack.c.l.b16 %v342
        %v462 = vunpack.c.h.b16 %v342
        %v463 = vunpack.c.l.b16 %v343
        %v464 = vunpack.c.h.b16 %v343
        %v465 = vunpack.c.l.b16 %v344
        %v466 = vunpack.c.h.b16 %v344
        %v467 = vunpack.c.l.b16 %v345
        %v468 = vunpack.c.h.b16 %v345
        %v469 = vunpack.c.l.b16 %v346
        %v470 = vunpack.c.h.b16 %v346
        %v471 = vunpack.c.l.b16 %v347
        %v472 = vunpack.c.h.b16 %v347
        %v473 = vunpack.c.l.b16 %v348
        %v474 = vunpack.c.h.b16 %v348
        %v475 = vunpack.c.l.b16 %v349
        %v476 = vunpack.c.h.b16 %v349
        %v477 = vunpack.c.l.b16 %v350
        %v478 = vunpack.c.h.b16 %v350
        %v479 = vunpack.c.l.b16 %v351
        %v480 = vunpack.c.h.b16 %v351
        %v481 = vunpack.c.l.b16 %v352
        %v482 = vunpack.c.h.b16 %v352
        %v483 = vunpack.c.l.b16 %v353
        %v484 = vunpack.c.h.b16 %v353
        %v485 = vunpack.c.l.b16 %v354
        %v486 = vunpack.c.h.b16 %v354
        %v487 = vunpack.c.l.b16 %v355
        %v488 = vunpack.c.h.b16 %v355
        %v489 = vunpack.c.l.b16 %v356
        %v490 = vunpack.c.h.b16 %v356
        %v491 = vunpack.c.l.b16 %v357
        %v492 = vunpack.c.h.b16 %v357
        %v493 = vunpack.c.l.b16 %v358
        %v494 = vunpack.c.h.b16 %v358
        %v495 = vunpack.c.l.b16 %v359
        %v496 = vunpack.c.h.b16 %v359
        %v497 = vunpack.c.l.b16 %v360
        %v498 = vunpack.c.h.b16 %v360
        %v499 = vunpack.c.l.b16 %v361
        %v500 = vunpack.c.h.b16 %v361
        %v501 = vunpack.c.l.b16 %v362
        %v502 = vunpack.c.h.b16 %v362
        %v503 = vpack.c.b16 %v441, %v439
        %v504 = vpack.c.b16 %v442, %v440
        %v505 = vpack.c.b16 %v445, %v443
        %v506 = vpack.c.b16 %v446, %v444
        %v507 = vpack.c.b16 %v449, %v447
        %v508 = vpack.c.b16 %v450, %v448
        %v509 = vpack.c.b16 %v453, %v451
        %v510 = vpack.c.b16 %v454, %v452
        %v511 = vpack.c.b16 %v457, %v455
        %v512 = vpack.c.b16 %v458, %v456
        %v513 = vpack.c.b16 %v461, %v459
        %v514 = vpack.c.b16 %v462, %v460
        %v515 = vpack.c.b16 %v465, %v463
        %v516 = vpack.c.b16 %v466, %v464
        %v517 = vpack.c.b16 %v469, %v467
        %v518 = vpack.c.b16 %v470, %v468
        %v519 = vpack.c.b16 %v473, %v471
        %v520 = vpack.c.b16 %v474, %v472
        %v521 = vpack.c.b16 %v477, %v475
        %v522 = vpack.c.b16 %v478, %v476
        %v523 = vpack.c.b16 %v481, %v479
        %v524 = vpack.c.b16 %v482, %v480
        %v525 = vpack.c.b16 %v485, %v483
        %v526 = vpack.c.b16 %v486, %v484
        %v527 = vpack.c.b16 %v489, %v487
        %v528 = vpack.c.b16 %v490, %v488
        %v529 = vpack.c.b16 %v493, %v491
        %v530 = vpack.c.b16 %v494, %v492
        %v531 = vpack.c.b16 %v497, %v495
        %v532 = vpack.c.b16 %v498, %v496
        %v533 = vpack.c.b16 %v501, %v499
        %v534 = vpack.c.b16 %v502, %v500
        %567 = vmatprep.subr.bf16.mxu0 %v518
        %568 = vmatpush1.bf16.msra.mxu0 %v517
        %569 = vmatprep.subr.bf16.mxu0 %v516
        %570 = vmatpush1.bf16.msra.mxu0 %v515
        %571 = vmatprep.subr.bf16.mxu0 %v514
        %572 = vmatpush1.bf16.msra.mxu0 %v513
        %573 = vmatprep.subr.bf16.mxu0 %v512
        %574 = vmatpush1.bf16.msra.mxu0 %v511
        %575 = vmatprep.subr.bf16.mxu0 %v510
        %576 = vmatpush1.bf16.msra.mxu0 %v509
        %577 = vmatprep.subr.bf16.mxu0 %v508
        %578 = vmatpush1.bf16.msra.mxu0 %v507
        %579 = vmatprep.subr.bf16.mxu0 %v506
        %580 = vmatpush1.bf16.msra.mxu0 %v505
        %581 = vmatprep.subr.bf16.mxu0 %v504
        %582 = vmatpush1.bf16.msra.mxu0 %v503
        %583 = vmatprep.subr.bf16.mxu0 %v534
        %584 = vmatpush2.bf16.msra.mxu0 %v533
        %585 = vmatprep.subr.bf16.mxu0 %v532
        %586 = vmatpush2.bf16.msra.mxu0 %v531
        %587 = vmatprep.subr.bf16.mxu0 %v530
        %588 = vmatpush2.bf16.msra.mxu0 %v529
        %589 = vmatprep.subr.bf16.mxu0 %v528
        %590 = vmatpush2.bf16.msra.mxu0 %v527
        %591 = vmatprep.subr.bf16.mxu0 %v526
        %592 = vmatpush2.bf16.msra.mxu0 %v525
        %593 = vmatprep.subr.bf16.mxu0 %v524
        %594 = vmatpush2.bf16.msra.mxu0 %v523
        %595 = vmatprep.subr.bf16.mxu0 %v522
        %596 = vmatpush2.bf16.msra.mxu0 %v521
        %597 = vmatprep.subr.bf16.mxu0 %v520
        %598 = vmatpush2.bf16.msra.mxu0 %v519
        %599 = vmatprep.mubr.bf16.mxu0 %v400
        %600 = vmatmul.mubr.bf16.gmra.mxu0 %v399
        %v601 = vpop.f32.mrf.mxu0
        %v602 = vadd.f32 %v370, %v601
        %v603 = vpop.f32.mrf.mxu0
        %v604 = vadd.f32 %v370, %v603
        %v605 = vpop.f32.mrf.mxu0
        %v606 = vadd.f32 %v375, %v605
        %v607 = vpop.f32.mrf.mxu0
        %v608 = vadd.f32 %v375, %v607
        %609 = vmatprep.mubr.bf16.mxu0 %v402
        %610 = vmatmul.mubr.bf16.gmra.mxu0 %v401
        %v611 = vpop.f32.mrf.mxu0
        %v612 = vadd.f32 %v380, %v611
        %v613 = vpop.f32.mrf.mxu0
        %v614 = vadd.f32 %v380, %v613
        %v615 = vpop.f32.mrf.mxu0
        %v616 = vadd.f32 %v385, %v615
        %v617 = vpop.f32.mrf.mxu0
        %v618 = vadd.f32 %v385, %v617
        %619 = vdwg.mxu0
        %vm620 = vcmp.gt.f32.partialorder %v602, 0.0
        %vm621 = vcmp.gt.f32.partialorder %v604, 0.0
        %vm622 = vcmp.gt.f32.partialorder %v606, 0.0
        %vm623 = vcmp.gt.f32.partialorder %v608, 0.0
        %vm624 = vcmp.gt.f32.partialorder %v612, 0.0
        %vm625 = vcmp.gt.f32.partialorder %v614, 0.0
        %vm626 = vcmp.gt.f32.partialorder %v616, 0.0
        %vm627 = vcmp.gt.f32.partialorder %v618, 0.0
        %v628 = vmul.f32 %v602, 0.2
        %v629 = vmul.f32 %v604, 0.2
        %v630 = vmul.f32 %v606, 0.2
        %v631 = vmul.f32 %v608, 0.2
        %v632 = vmul.f32 %v612, 0.2
        %v633 = vmul.f32 %v614, 0.2
        %v634 = vmul.f32 %v616, 0.2
        %v635 = vmul.f32 %v618, 0.2
        %v636 = vsel %vm620, %v602, %v628
        %v637 = vsel %vm621, %v604, %v629
        %v638 = vsel %vm622, %v606, %v630
        %v639 = vsel %vm623, %v608, %v631
        %v640 = vsel %vm624, %v612, %v632
        %v641 = vsel %vm625, %v614, %v633
        %v642 = vsel %vm626, %v616, %v634
        %v643 = vsel %vm627, %v618, %v635
        %v644 = vpack.c.bf16 %v638, %v636
        %v645 = vpack.c.bf16 %v639, %v637
        %v646 = vpack.c.bf16 %v642, %v640
        %v647 = vpack.c.bf16 %v643, %v641
        %v652 = vunpack.c.l.b16 %v644
        %v653 = vunpack.c.l.b16 %v645
        %v654 = vunpack.c.h.b16 %v644
        %v655 = vunpack.c.h.b16 %v645
        %v656 = vunpack.c.l.b16 %v646
        %v657 = vunpack.c.l.b16 %v647
        %v658 = vunpack.c.h.b16 %v646
        %v659 = vunpack.c.h.b16 %v647
        %v660 = vpack.c.b16 %v653, %v652
        %v661 = vpack.c.b16 %v655, %v654
        %v662 = vpack.c.b16 %v657, %v656
        %v663 = vpack.c.b16 %v659, %v658
        %668 = vst [vmem:[%s324] sm:$0xff] %v660
        %669 = vst [vmem:[%s324 + $0x8] sm:$0xff] %v661
        %670 = vst [vmem:[%s324 + $0x10] sm:$0xff] %v662
        %671 = vst [vmem:[%s324 + $0x18] sm:$0xff] %v663
        %s672 = sand.u32 %s90, 1
        %s673 = sand.u32 %s90, 1
        %s674 = smul.addr %s673, 32
        %s675 = scalar_lea.vmem [#allocation3], %s674
        // Predicated region
        $region71: #{discriminator_forward.9} parent=65 // pred_check
          %p676 = pneg %p100
        $region72: #{discriminator_forward.9} parent=65 // pred_check_branch
          %678 = sbr.rel (%p676) target = $region74
        $region73: #{discriminator_forward.9} parent=65 // pred_region
          %s679 = smul.u32 2, %s14
          %s680 = smul.addr %s679, 4
          %s681 = scalar_lea.vmem %s3, %s680
          // Predicated region
          $region75: #{discriminator_forward.9} parent=73 // pred_check
            _
          $region76: #{discriminator_forward.9} parent=73 // pred_check_branch
            %683 = sbr.rel (0) target = $region78
          $region77: #{discriminator_forward.9} parent=73 // pred_region
            // Predicated region
            $region79: #{discriminator_forward.9} parent=77 // pred_check
              _
            $region80: #{discriminator_forward.9} parent=77 // pred_check_branch
              %685 = sbr.rel (0) target = $region82
            $region81: #{discriminator_forward.9} parent=77 // pred_region
              // Predicated region
              $region94: #{discriminator_forward.9} parent=81 // pred_check
                _
              $region95: #{discriminator_forward.9} parent=81 // pred_check_branch
                %707 = sbr.rel (0) target = $region97
              $region96: #{discriminator_forward.9} parent=81 // pred_region
                loop: start=0, step=1, limit=1
                $region98: #{discriminator_forward.9} parent=96 // loop_pre_header
                  _
                $region99: #{discriminator_forward.9} parent=96 // loop_header
                  %s709 = sphi 0, %s713
                  %p710 = scmp.ge.s32.totalorder %s709, 1
                  %s714 = sphi %s675, %s675
                  %s715 = sphi %s681, %s681
                $region100: #{discriminator_forward.9} parent=96 // loop_header_branch
                  %712 = sbr.rel (%p710) target = $region104
                $region101: #{discriminator_forward.9} parent=96 // loop_body
                  %v716 = vld [vmem:[%s714] sm:$0xff]
                  %717 = vst [vmem:[%s715] sm:$0xff] %v716
                  %v718 = vld [vmem:[%s714 + $0x8] sm:$0xff]
                  %719 = vst [vmem:[%s715 + $0x10] sm:$0xff] %v718
                  %v720 = vld [vmem:[%s714 + $0x10] sm:$0xff]
                  %721 = vst [vmem:[%s715 + $0x20] sm:$0xff] %v720
                  %v722 = vld [vmem:[%s714 + $0x18] sm:$0xff]
                  %723 = vst [vmem:[%s715 + $0x30] sm:$0xff] %v722
                $region102: #{discriminator_forward.9} parent=96 // loop_footer
                  %s713 = sadd.s32 1, %s709
                $region103: #{discriminator_forward.9} parent=96 // loop_footer_branch
                  %708 = sbr.rel target = $region99
                $region104: #{discriminator_forward.9} parent=96 // loop_exit
                  _
              $region97: #{discriminator_forward.9} parent=81 // pred_fallthru
                _
              // Predicated region
              $region105: #{discriminator_forward.9} parent=81 // pred_check
                _
              $region106: #{discriminator_forward.9} parent=81 // pred_check_branch
                %725 = sbr.rel target = $region108
              $region107: #{discriminator_forward.9} parent=81 // pred_region
                _
              $region108: #{discriminator_forward.9} parent=81 // pred_fallthru
                _
            $region82: #{discriminator_forward.9} parent=77 // pred_fallthru
              _
            // Predicated region
            $region83: #{discriminator_forward.9} parent=77 // pred_check
              _
            $region84: #{discriminator_forward.9} parent=77 // pred_check_branch
              %687 = sbr.rel target = $region86
            $region85: #{discriminator_forward.9} parent=77 // pred_region
              %s689 = ssub.s32 256, 1
              loop: start=0, step=1, limit=1
              $region87: #{discriminator_forward.9} parent=85 // loop_pre_header
                _
              $region88: #{discriminator_forward.9} parent=85 // loop_header
                %s691 = sphi 0, %s695
                %p692 = scmp.ge.s32.totalorder %s691, 1
                %s696 = sphi %s675, %s675
                %s697 = sphi %s681, %s681
              $region89: #{discriminator_forward.9} parent=85 // loop_header_branch
                %694 = sbr.rel (%p692) target = $region93
              $region90: #{discriminator_forward.9} parent=85 // loop_body
                %v698 = vld [vmem:[%s696] sm:%s689]
                %699 = vst [vmem:[%s697] sm:%s689] %v698
                %v700 = vld [vmem:[%s696 + $0x8] sm:%s689]
                %701 = vst [vmem:[%s697 + $0x10] sm:%s689] %v700
                %v702 = vld [vmem:[%s696 + $0x10] sm:%s689]
                %703 = vst [vmem:[%s697 + $0x20] sm:%s689] %v702
                %v704 = vld [vmem:[%s696 + $0x18] sm:%s689]
                %705 = vst [vmem:[%s697 + $0x30] sm:%s689] %v704
              $region91: #{discriminator_forward.9} parent=85 // loop_footer
                %s695 = sadd.s32 1, %s691
              $region92: #{discriminator_forward.9} parent=85 // loop_footer_branch
                %690 = sbr.rel target = $region88
              $region93: #{discriminator_forward.9} parent=85 // loop_exit
                _
            $region86: #{discriminator_forward.9} parent=77 // pred_fallthru
              _
          $region78: #{discriminator_forward.9} parent=73 // pred_fallthru
            _
          %726 = vnop
        $region74: #{discriminator_forward.9} parent=65 // pred_fallthru
          _
      $region66: #{discriminator_forward.9} parent=5 // pred_fallthru
        _
      %p727 = scmp.le.s32.totalorder 2, %s9
      // Predicated region
      $region109: #{discriminator_forward.9} parent=5 // pred_check
        %p728 = pneg %p727
      $region110: #{discriminator_forward.9} parent=5 // pred_check_branch
        %730 = sbr.rel (%p728) target = $region112
      $region111: #{discriminator_forward.9} parent=5 // pred_region
        %s731 = ssub.s32 %s9, 2
        // Predicated region
        $region113: #{discriminator_forward.9} parent=111 // pred_check
          %p732 = pneg %p106
        $region114: #{discriminator_forward.9} parent=111 // pred_check_branch
          %734 = sbr.rel (%p732) target = $region116
        $region115: #{discriminator_forward.9} parent=111 // pred_region
          %s735 = sand.u32 %s91, 1
          %s736 = sand.u32 %s91, 1
          %s737 = smul.addr %s736, 32
          %s738 = scalar_lea.vmem [#allocation3], %s737
        $region116: #{discriminator_forward.9} parent=111 // pred_fallthru
          _
      $region112: #{discriminator_forward.9} parent=5 // pred_fallthru
        _
    $region6: #{discriminator_forward.9} parent=1 // loop_footer
      %s13 = sadd.s32 1, %s9
    $region7: #{discriminator_forward.9} parent=1 // loop_footer_branch
      %8 = sbr.rel target = $region3
    $region8: #{discriminator_forward.9} parent=1 // loop_exit
      _

// kernel: discriminator_forward.10
$region0: #{discriminator_forward.10}
  #allocation0 [shape = 'u32[]', space=smem, size = 0x4, offset = 0x4, fixed_abs, tag = 'smem constant byte address 0x4 - core index']
  #allocation1 [shape = 'u32[144,128]{1,0:T(1,128)}', space=vmem, size = 0x12000, scoped, tag = 'internal scratch']
  %s0 = inlined_call_operand.vmem [shape: bf16[64,512], index: 0, kind: input, shape index: {}]
  %s1 = inlined_call_operand.vmem [shape: bf16[512,128], index: 1, kind: input, shape index: {}]
  %s2 = inlined_call_operand.vmem [shape: f32[64,1], index: 2, kind: input, shape index: {}]
  %s3 = inlined_call_operand.vmem [shape: bf16[64,128], index: 3, kind: output, shape index: {}]
  %s4 = sld [smem:[#allocation0]]
  $region22: #{discriminator_forward.10} parent=0
    _
  %s6 = ssub.s32 1, %s4
  %s7 = scalar_select 0, %s6, %s4
  // Predicated region
  $region2: #{discriminator_forward.10} parent=0 // pred_check
    _
  $region3: #{discriminator_forward.10} parent=0 // pred_check_branch
    %9 = sbr.rel (0) target = $region5
  $region4: #{discriminator_forward.10} parent=0 // pred_region
    _
  $region5: #{discriminator_forward.10} parent=0 // pred_fallthru
    _
  // Predicated region
  $region6: #{discriminator_forward.10} parent=0 // pred_check
    _
  $region7: #{discriminator_forward.10} parent=0 // pred_check_branch
    %11 = sbr.rel (0) target = $region9
  $region8: #{discriminator_forward.10} parent=0 // pred_region
    _
  $region9: #{discriminator_forward.10} parent=0 // pred_fallthru
    _
  // Predicated region
  $region10: #{discriminator_forward.10} parent=0 // pred_check
    _
  $region11: #{discriminator_forward.10} parent=0 // pred_check_branch
    %13 = sbr.rel (0) target = $region13
  $region12: #{discriminator_forward.10} parent=0 // pred_region
    _
  $region13: #{discriminator_forward.10} parent=0 // pred_fallthru
    _
  %v15 = vld [vmem:[%s0] sm:$0xff]
  %v16 = vld [vmem:[%s0 + $0x8] sm:$0xff]
  %v17 = vld [vmem:[%s0 + $0x10] sm:$0xff]
  %v18 = vld [vmem:[%s0 + $0x18] sm:$0xff]
  %v19 = vld [vmem:[%s0 + $0x20] sm:$0xff]
  %v20 = vld [vmem:[%s0 + $0x28] sm:$0xff]
  %v21 = vld [vmem:[%s0 + $0x30] sm:$0xff]
  %v22 = vld [vmem:[%s0 + $0x38] sm:$0xff]
  %v23 = vld [vmem:[%s0 + $0x40] sm:$0xff]
  %v24 = vld [vmem:[%s0 + $0x48] sm:$0xff]
  %v25 = vld [vmem:[%s0 + $0x50] sm:$0xff]
  %v26 = vld [vmem:[%s0 + $0x58] sm:$0xff]
  %v27 = vld [vmem:[%s0 + $0x60] sm:$0xff]
  %v28 = vld [vmem:[%s0 + $0x68] sm:$0xff]
  %v29 = vld [vmem:[%s0 + $0x70] sm:$0xff]
  %v30 = vld [vmem:[%s0 + $0x78] sm:$0xff]
  %v31 = vld [vmem:[%s1] sm:$0xf]
  %v32 = vld [vmem:[%s1 + $0x4] sm:$0xf]
  %v33 = vld [vmem:[%s1 + $0x8] sm:$0xf]
  %v34 = vld [vmem:[%s1 + $0xc] sm:$0xf]
  %v35 = vld [vmem:[%s1 + $0x10] sm:$0xf]
  %v36 = vld [vmem:[%s1 + $0x14] sm:$0xf]
  %v37 = vld [vmem:[%s1 + $0x18] sm:$0xf]
  %v38 = vld [vmem:[%s1 + $0x1c] sm:$0xf]
  %v39 = vld [vmem:[%s1 + $0x20] sm:$0xf]
  %v40 = vld [vmem:[%s1 + $0x24] sm:$0xf]
  %v41 = vld [vmem:[%s1 + $0x28] sm:$0xf]
  %v42 = vld [vmem:[%s1 + $0x2c] sm:$0xf]
  %v43 = vld [vmem:[%s1 + $0x30] sm:$0xf]
  %v44 = vld [vmem:[%s1 + $0x34] sm:$0xf]
  %v45 = vld [vmem:[%s1 + $0x38] sm:$0xf]
  %v46 = vld [vmem:[%s1 + $0x3c] sm:$0xf]
  %v47 = vld [vmem:[%s1 + $0x40] sm:$0xf]
  %v48 = vld [vmem:[%s1 + $0x44] sm:$0xf]
  %v49 = vld [vmem:[%s1 + $0x48] sm:$0xf]
  %v50 = vld [vmem:[%s1 + $0x4c] sm:$0xf]
  %v51 = vld [vmem:[%s1 + $0x50] sm:$0xf]
  %v52 = vld [vmem:[%s1 + $0x54] sm:$0xf]
  %v53 = vld [vmem:[%s1 + $0x58] sm:$0xf]
  %v54 = vld [vmem:[%s1 + $0x5c] sm:$0xf]
  %v55 = vld [vmem:[%s1 + $0x60] sm:$0xf]
  %v56 = vld [vmem:[%s1 + $0x64] sm:$0xf]
  %v57 = vld [vmem:[%s1 + $0x68] sm:$0xf]
  %v58 = vld [vmem:[%s1 + $0x6c] sm:$0xf]
  %v59 = vld [vmem:[%s1 + $0x70] sm:$0xf]
  %v60 = vld [vmem:[%s1 + $0x74] sm:$0xf]
  %v61 = vld [vmem:[%s1 + $0x78] sm:$0xf]
  %v62 = vld [vmem:[%s1 + $0x7c] sm:$0xf]
  %v63 = vld [vmem:[%s1 + $0x80] sm:$0xf]
  %v64 = vld [vmem:[%s1 + $0x84] sm:$0xf]
  %v65 = vld [vmem:[%s1 + $0x88] sm:$0xf]
  %v66 = vld [vmem:[%s1 + $0x8c] sm:$0xf]
  %v67 = vld [vmem:[%s1 + $0x90] sm:$0xf]
  %v68 = vld [vmem:[%s1 + $0x94] sm:$0xf]
  %v69 = vld [vmem:[%s1 + $0x98] sm:$0xf]
  %v70 = vld [vmem:[%s1 + $0x9c] sm:$0xf]
  %v71 = vld [vmem:[%s1 + $0xa0] sm:$0xf]
  %v72 = vld [vmem:[%s1 + $0xa4] sm:$0xf]
  %v73 = vld [vmem:[%s1 + $0xa8] sm:$0xf]
  %v74 = vld [vmem:[%s1 + $0xac] sm:$0xf]
  %v75 = vld [vmem:[%s1 + $0xb0] sm:$0xf]
  %v76 = vld [vmem:[%s1 + $0xb4] sm:$0xf]
  %v77 = vld [vmem:[%s1 + $0xb8] sm:$0xf]
  %v78 = vld [vmem:[%s1 + $0xbc] sm:$0xf]
  %v79 = vld [vmem:[%s1 + $0xc0] sm:$0xf]
  %v80 = vld [vmem:[%s1 + $0xc4] sm:$0xf]
  %v81 = vld [vmem:[%s1 + $0xc8] sm:$0xf]
  %v82 = vld [vmem:[%s1 + $0xcc] sm:$0xf]
  %v83 = vld [vmem:[%s1 + $0xd0] sm:$0xf]
  %v84 = vld [vmem:[%s1 + $0xd4] sm:$0xf]
  %v85 = vld [vmem:[%s1 + $0xd8] sm:$0xf]
  %v86 = vld [vmem:[%s1 + $0xdc] sm:$0xf]
  %v87 = vld [vmem:[%s1 + $0xe0] sm:$0xf]
  %v88 = vld [vmem:[%s1 + $0xe4] sm:$0xf]
  %v89 = vld [vmem:[%s1 + $0xe8] sm:$0xf]
  %v90 = vld [vmem:[%s1 + $0xec] sm:$0xf]
  %v91 = vld [vmem:[%s1 + $0xf0] sm:$0xf]
  %v92 = vld [vmem:[%s1 + $0xf4] sm:$0xf]
  %v93 = vld [vmem:[%s1 + $0xf8] sm:$0xf]
  %v94 = vld [vmem:[%s1 + $0xfc] sm:$0xf]
  %v95 = vld [vmem:[%s2] sm:$0xff]
  %v96 = vld [vmem:[%s2 + $0x8] sm:$0xff]
  %v97 = vld [vmem:[%s2 + $0x10] sm:$0xff]
  %v98 = vld [vmem:[%s2 + $0x18] sm:$0xff]
  %v99 = vld [vmem:[%s2 + $0x20] sm:$0xff]
  %v100 = vld [vmem:[%s2 + $0x28] sm:$0xff]
  %v101 = vld [vmem:[%s2 + $0x30] sm:$0xff]
  %v102 = vld [vmem:[%s2 + $0x38] sm:$0xff]
  %104 = vset.pattern.permute.xlu0 0
  %105 = vperm.xlu0 %104, %v95
  %v106 = vpop.permute.xlu0 %105
  %109 = vset.pattern.permute.xlu0 0
  %110 = vperm.xlu0 %109, %v96
  %v111 = vpop.permute.xlu0 %110
  %114 = vset.pattern.permute.xlu0 0
  %115 = vperm.xlu0 %114, %v97
  %v116 = vpop.permute.xlu0 %115
  %119 = vset.pattern.permute.xlu0 0
  %120 = vperm.xlu0 %119, %v98
  %v121 = vpop.permute.xlu0 %120
  %124 = vset.pattern.permute.xlu0 0
  %125 = vperm.xlu0 %124, %v99
  %v126 = vpop.permute.xlu0 %125
  %129 = vset.pattern.permute.xlu0 0
  %130 = vperm.xlu0 %129, %v100
  %v131 = vpop.permute.xlu0 %130
  %134 = vset.pattern.permute.xlu0 0
  %135 = vperm.xlu0 %134, %v101
  %v136 = vpop.permute.xlu0 %135
  %139 = vset.pattern.permute.xlu0 0
  %140 = vperm.xlu0 %139, %v102
  %v141 = vpop.permute.xlu0 %140
  %v159 = vunpack.c.l.b16 %v15
  %v160 = vunpack.c.h.b16 %v15
  %v161 = vunpack.c.l.b16 %v16
  %v162 = vunpack.c.h.b16 %v16
  %v163 = vunpack.c.l.b16 %v17
  %v164 = vunpack.c.h.b16 %v17
  %v165 = vunpack.c.l.b16 %v18
  %v166 = vunpack.c.h.b16 %v18
  %v167 = vunpack.c.l.b16 %v19
  %v168 = vunpack.c.h.b16 %v19
  %v169 = vunpack.c.l.b16 %v20
  %v170 = vunpack.c.h.b16 %v20
  %v171 = vunpack.c.l.b16 %v21
  %v172 = vunpack.c.h.b16 %v21
  %v173 = vunpack.c.l.b16 %v22
  %v174 = vunpack.c.h.b16 %v22
  %v175 = vunpack.c.l.b16 %v23
  %v176 = vunpack.c.h.b16 %v23
  %v177 = vunpack.c.l.b16 %v24
  %v178 = vunpack.c.h.b16 %v24
  %v179 = vunpack.c.l.b16 %v25
  %v180 = vunpack.c.h.b16 %v25
  %v181 = vunpack.c.l.b16 %v26
  %v182 = vunpack.c.h.b16 %v26
  %v183 = vunpack.c.l.b16 %v27
  %v184 = vunpack.c.h.b16 %v27
  %v185 = vunpack.c.l.b16 %v28
  %v186 = vunpack.c.h.b16 %v28
  %v187 = vunpack.c.l.b16 %v29
  %v188 = vunpack.c.h.b16 %v29
  %v189 = vunpack.c.l.b16 %v30
  %v190 = vunpack.c.h.b16 %v30
  %v191 = vpack.c.b16 %v163, %v159
  %v192 = vpack.c.b16 %v164, %v160
  %v193 = vpack.c.b16 %v165, %v161
  %v194 = vpack.c.b16 %v166, %v162
  %v195 = vpack.c.b16 %v171, %v167
  %v196 = vpack.c.b16 %v172, %v168
  %v197 = vpack.c.b16 %v173, %v169
  %v198 = vpack.c.b16 %v174, %v170
  %v199 = vpack.c.b16 %v179, %v175
  %v200 = vpack.c.b16 %v180, %v176
  %v201 = vpack.c.b16 %v181, %v177
  %v202 = vpack.c.b16 %v182, %v178
  %v203 = vpack.c.b16 %v187, %v183
  %v204 = vpack.c.b16 %v188, %v184
  %v205 = vpack.c.b16 %v189, %v185
  %v206 = vpack.c.b16 %v190, %v186
  %v287 = vunpack.c.l.b16 %v31
  %v288 = vunpack.c.l.b16 %v32
  %v289 = vunpack.c.l.b16 %v33
  %v290 = vunpack.c.l.b16 %v34
  %v291 = vunpack.c.l.b16 %v35
  %v292 = vunpack.c.l.b16 %v36
  %v293 = vunpack.c.l.b16 %v37
  %v294 = vunpack.c.l.b16 %v38
  %v295 = vunpack.c.l.b16 %v39
  %v296 = vunpack.c.l.b16 %v40
  %v297 = vunpack.c.l.b16 %v41
  %v298 = vunpack.c.l.b16 %v42
  %v299 = vunpack.c.l.b16 %v43
  %v300 = vunpack.c.l.b16 %v44
  %v301 = vunpack.c.l.b16 %v45
  %v302 = vunpack.c.l.b16 %v46
  %v303 = vunpack.c.l.b16 %v47
  %v304 = vunpack.c.l.b16 %v48
  %v305 = vunpack.c.l.b16 %v49
  %v306 = vunpack.c.l.b16 %v50
  %v307 = vunpack.c.l.b16 %v51
  %v308 = vunpack.c.l.b16 %v52
  %v309 = vunpack.c.l.b16 %v53
  %v310 = vunpack.c.l.b16 %v54
  %v311 = vunpack.c.l.b16 %v55
  %v312 = vunpack.c.l.b16 %v56
  %v313 = vunpack.c.l.b16 %v57
  %v314 = vunpack.c.l.b16 %v58
  %v315 = vunpack.c.l.b16 %v59
  %v316 = vunpack.c.l.b16 %v60
  %v317 = vunpack.c.l.b16 %v61
  %v318 = vunpack.c.l.b16 %v62
  %v319 = vunpack.c.l.b16 %v63
  %v320 = vunpack.c.l.b16 %v64
  %v321 = vunpack.c.l.b16 %v65
  %v322 = vunpack.c.l.b16 %v66
  %v323 = vunpack.c.l.b16 %v67
  %v324 = vunpack.c.l.b16 %v68
  %v325 = vunpack.c.l.b16 %v69
  %v326 = vunpack.c.l.b16 %v70
  %v327 = vunpack.c.l.b16 %v71
  %v328 = vunpack.c.l.b16 %v72
  %v329 = vunpack.c.l.b16 %v73
  %v330 = vunpack.c.l.b16 %v74
  %v331 = vunpack.c.l.b16 %v75
  %v332 = vunpack.c.l.b16 %v76
  %v333 = vunpack.c.l.b16 %v77
  %v334 = vunpack.c.l.b16 %v78
  %v335 = vunpack.c.l.b16 %v79
  %v336 = vunpack.c.l.b16 %v80
  %v337 = vunpack.c.l.b16 %v81
  %v338 = vunpack.c.l.b16 %v82
  %v339 = vunpack.c.l.b16 %v83
  %v340 = vunpack.c.l.b16 %v84
  %v341 = vunpack.c.l.b16 %v85
  %v342 = vunpack.c.l.b16 %v86
  %v343 = vunpack.c.l.b16 %v87
  %v344 = vunpack.c.l.b16 %v88
  %v345 = vunpack.c.l.b16 %v89
  %v346 = vunpack.c.l.b16 %v90
  %v347 = vunpack.c.l.b16 %v91
  %v348 = vunpack.c.l.b16 %v92
  %v349 = vunpack.c.l.b16 %v93
  %v350 = vunpack.c.l.b16 %v94
  %v351 = vpack.c.b16 %v288, %v287
  %v352 = vpack.c.b16 %v290, %v289
  %v353 = vpack.c.b16 %v292, %v291
  %v354 = vpack.c.b16 %v294, %v293
  %v355 = vpack.c.b16 %v296, %v295
  %v356 = vpack.c.b16 %v298, %v297
  %v357 = vpack.c.b16 %v300, %v299
  %v358 = vpack.c.b16 %v302, %v301
  %v359 = vpack.c.b16 %v304, %v303
  %v360 = vpack.c.b16 %v306, %v305
  %v361 = vpack.c.b16 %v308, %v307
  %v362 = vpack.c.b16 %v310, %v309
  %v363 = vpack.c.b16 %v312, %v311
  %v364 = vpack.c.b16 %v314, %v313
  %v365 = vpack.c.b16 %v316, %v315
  %v366 = vpack.c.b16 %v318, %v317
  %v367 = vpack.c.b16 %v320, %v319
  %v368 = vpack.c.b16 %v322, %v321
  %v369 = vpack.c.b16 %v324, %v323
  %v370 = vpack.c.b16 %v326, %v325
  %v371 = vpack.c.b16 %v328, %v327
  %v372 = vpack.c.b16 %v330, %v329
  %v373 = vpack.c.b16 %v332, %v331
  %v374 = vpack.c.b16 %v334, %v333
  %v375 = vpack.c.b16 %v336, %v335
  %v376 = vpack.c.b16 %v338, %v337
  %v377 = vpack.c.b16 %v340, %v339
  %v378 = vpack.c.b16 %v342, %v341
  %v379 = vpack.c.b16 %v344, %v343
  %v380 = vpack.c.b16 %v346, %v345
  %v381 = vpack.c.b16 %v348, %v347
  %v382 = vpack.c.b16 %v350, %v349
  %415 = vmatprep.subr.bf16.mxu0 0
  %416 = vmatpush1.bf16.msra.mxu0 %v358
  %417 = vmatprep.subr.bf16.mxu0 0
  %418 = vmatpush1.bf16.msra.mxu0 %v357
  %419 = vmatprep.subr.bf16.mxu0 0
  %420 = vmatpush1.bf16.msra.mxu0 %v356
  %421 = vmatprep.subr.bf16.mxu0 0
  %422 = vmatpush1.bf16.msra.mxu0 %v355
  %423 = vmatprep.subr.bf16.mxu0 0
  %424 = vmatpush1.bf16.msra.mxu0 %v354
  %425 = vmatprep.subr.bf16.mxu0 0
  %426 = vmatpush1.bf16.msra.mxu0 %v353
  %427 = vmatprep.subr.bf16.mxu0 0
  %428 = vmatpush1.bf16.msra.mxu0 %v352
  %429 = vmatprep.subr.bf16.mxu0 0
  %430 = vmatpush1.bf16.msra.mxu0 %v351
  %431 = vmatprep.subr.bf16.mxu0 0
  %432 = vmatpush2.bf16.msra.mxu0 %v366
  %433 = vmatprep.subr.bf16.mxu0 0
  %434 = vmatpush2.bf16.msra.mxu0 %v365
  %435 = vmatprep.subr.bf16.mxu0 0
  %436 = vmatpush2.bf16.msra.mxu0 %v364
  %437 = vmatprep.subr.bf16.mxu0 0
  %438 = vmatpush2.bf16.msra.mxu0 %v363
  %439 = vmatprep.subr.bf16.mxu0 0
  %440 = vmatpush2.bf16.msra.mxu0 %v362
  %441 = vmatprep.subr.bf16.mxu0 0
  %442 = vmatpush2.bf16.msra.mxu0 %v361
  %443 = vmatprep.subr.bf16.mxu0 0
  %444 = vmatpush2.bf16.msra.mxu0 %v360
  %445 = vmatprep.subr.bf16.mxu0 0
  %446 = vmatpush2.bf16.msra.mxu0 %v359
  %447 = vmatprep.mubr.bf16.mxu0 %v192
  %448 = vmatmul.mubr.bf16.gmra.mxu0 %v191
  %v449 = vpop.f32.mrf.mxu0
  %v450 = vadd.f32 %v106, %v449
  %v451 = vpop.f32.mrf.mxu0
  %v452 = vpop.f32.mrf.mxu0
  %v453 = vadd.f32 %v111, %v452
  %v454 = vpop.f32.mrf.mxu0
  %455 = vmatprep.mubr.bf16.mxu0 %v196
  %456 = vmatmul.mubr.bf16.gmra.mxu0 %v195
  %v457 = vpop.f32.mrf.mxu0
  %v458 = vadd.f32 %v116, %v457
  %v459 = vpop.f32.mrf.mxu0
  %v460 = vpop.f32.mrf.mxu0
  %v461 = vadd.f32 %v121, %v460
  %v462 = vpop.f32.mrf.mxu0
  %463 = vmatprep.mubr.bf16.mxu0 %v200
  %464 = vmatmul.mubr.bf16.gmra.mxu0 %v199
  %v465 = vpop.f32.mrf.mxu0
  %v466 = vadd.f32 %v126, %v465
  %v467 = vpop.f32.mrf.mxu0
  %v468 = vpop.f32.mrf.mxu0
  %v469 = vadd.f32 %v131, %v468
  %v470 = vpop.f32.mrf.mxu0
  %471 = vmatprep.mubr.bf16.mxu0 %v204
  %472 = vmatmul.mubr.bf16.gmra.mxu0 %v203
  %v473 = vpop.f32.mrf.mxu0
  %v474 = vadd.f32 %v136, %v473
  %v475 = vpop.f32.mrf.mxu0
  %v476 = vpop.f32.mrf.mxu0
  %v477 = vadd.f32 %v141, %v476
  %v478 = vpop.f32.mrf.mxu0
  %479 = vdwg.mxu0
  %480 = vmatprep.subr.bf16.mxu0 0
  %481 = vmatpush1.bf16.msra.mxu0 %v374
  %482 = vmatprep.subr.bf16.mxu0 0
  %483 = vmatpush1.bf16.msra.mxu0 %v373
  %484 = vmatprep.subr.bf16.mxu0 0
  %485 = vmatpush1.bf16.msra.mxu0 %v372
  %486 = vmatprep.subr.bf16.mxu0 0
  %487 = vmatpush1.bf16.msra.mxu0 %v371
  %488 = vmatprep.subr.bf16.mxu0 0
  %489 = vmatpush1.bf16.msra.mxu0 %v370
  %490 = vmatprep.subr.bf16.mxu0 0
  %491 = vmatpush1.bf16.msra.mxu0 %v369
  %492 = vmatprep.subr.bf16.mxu0 0
  %493 = vmatpush1.bf16.msra.mxu0 %v368
  %494 = vmatprep.subr.bf16.mxu0 0
  %495 = vmatpush1.bf16.msra.mxu0 %v367
  %496 = vmatprep.subr.bf16.mxu0 0
  %497 = vmatpush2.bf16.msra.mxu0 %v382
  %498 = vmatprep.subr.bf16.mxu0 0
  %499 = vmatpush2.bf16.msra.mxu0 %v381
  %500 = vmatprep.subr.bf16.mxu0 0
  %501 = vmatpush2.bf16.msra.mxu0 %v380
  %502 = vmatprep.subr.bf16.mxu0 0
  %503 = vmatpush2.bf16.msra.mxu0 %v379
  %504 = vmatprep.subr.bf16.mxu0 0
  %505 = vmatpush2.bf16.msra.mxu0 %v378
  %506 = vmatprep.subr.bf16.mxu0 0
  %507 = vmatpush2.bf16.msra.mxu0 %v377
  %508 = vmatprep.subr.bf16.mxu0 0
  %509 = vmatpush2.bf16.msra.mxu0 %v376
  %510 = vmatprep.subr.bf16.mxu0 0
  %511 = vmatpush2.bf16.msra.mxu0 %v375
  %512 = vmatprep.mubr.bf16.mxu0 %v194
  %513 = vmatmul.mubr.bf16.gmra.mxu0 %v193
  %v514 = vpop.f32.mrf.mxu0
  %v515 = vadd.f32 %v450, %v514
  %v516 = vpop.f32.mrf.mxu0
  %v517 = vpop.f32.mrf.mxu0
  %v518 = vadd.f32 %v453, %v517
  %v519 = vpop.f32.mrf.mxu0
  %520 = vmatprep.mubr.bf16.mxu0 %v198
  %521 = vmatmul.mubr.bf16.gmra.mxu0 %v197
  %v522 = vpop.f32.mrf.mxu0
  %v523 = vadd.f32 %v458, %v522
  %v524 = vpop.f32.mrf.mxu0
  %v525 = vpop.f32.mrf.mxu0
  %v526 = vadd.f32 %v461, %v525
  %v527 = vpop.f32.mrf.mxu0
  %528 = vmatprep.mubr.bf16.mxu0 %v202
  %529 = vmatmul.mubr.bf16.gmra.mxu0 %v201
  %v530 = vpop.f32.mrf.mxu0
  %v531 = vadd.f32 %v466, %v530
  %v532 = vpop.f32.mrf.mxu0
  %v533 = vpop.f32.mrf.mxu0
  %v534 = vadd.f32 %v469, %v533
  %v535 = vpop.f32.mrf.mxu0
  %536 = vmatprep.mubr.bf16.mxu0 %v206
  %537 = vmatmul.mubr.bf16.gmra.mxu0 %v205
  %v538 = vpop.f32.mrf.mxu0
  %v539 = vadd.f32 %v474, %v538
  %v540 = vpop.f32.mrf.mxu0
  %v541 = vpop.f32.mrf.mxu0
  %v542 = vadd.f32 %v477, %v541
  %v543 = vpop.f32.mrf.mxu0
  %544 = vdwg.mxu0
  %vm545 = vcmp.gt.f32.partialorder %v515, 0.0
  %vm546 = vcmp.gt.f32.partialorder %v518, 0.0
  %vm547 = vcmp.gt.f32.partialorder %v523, 0.0
  %vm548 = vcmp.gt.f32.partialorder %v526, 0.0
  %vm549 = vcmp.gt.f32.partialorder %v531, 0.0
  %vm550 = vcmp.gt.f32.partialorder %v534, 0.0
  %vm551 = vcmp.gt.f32.partialorder %v539, 0.0
  %vm552 = vcmp.gt.f32.partialorder %v542, 0.0
  %v553 = vmul.f32 %v515, 0.2
  %v554 = vmul.f32 %v518, 0.2
  %v555 = vmul.f32 %v523, 0.2
  %v556 = vmul.f32 %v526, 0.2
  %v557 = vmul.f32 %v531, 0.2
  %v558 = vmul.f32 %v534, 0.2
  %v559 = vmul.f32 %v539, 0.2
  %v560 = vmul.f32 %v542, 0.2
  %v561 = vsel %vm545, %v515, %v553
  %v562 = vsel %vm546, %v518, %v554
  %v563 = vsel %vm547, %v523, %v555
  %v564 = vsel %vm548, %v526, %v556
  %v565 = vsel %vm549, %v531, %v557
  %v566 = vsel %vm550, %v534, %v558
  %v567 = vsel %vm551, %v539, %v559
  %v568 = vsel %vm552, %v542, %v560
  %v569 = vpack.c.bf16 %v562, %v561
  %v570 = vpack.c.bf16 %v564, %v563
  %v571 = vpack.c.bf16 %v566, %v565
  %v572 = vpack.c.bf16 %v568, %v567
  %v577 = vunpack.c.l.b16 %v569
  %v578 = vunpack.c.h.b16 %v569
  %v579 = vunpack.c.l.b16 %v570
  %v580 = vunpack.c.h.b16 %v570
  %v581 = vunpack.c.l.b16 %v571
  %v582 = vunpack.c.h.b16 %v571
  %v583 = vunpack.c.l.b16 %v572
  %v584 = vunpack.c.h.b16 %v572
  %v585 = vpack.c.b16 %v577, %v577
  %v586 = vpack.c.b16 %v578, %v578
  %v587 = vpack.c.b16 %v579, %v579
  %v588 = vpack.c.b16 %v580, %v580
  %v589 = vpack.c.b16 %v581, %v581
  %v590 = vpack.c.b16 %v582, %v582
  %v591 = vpack.c.b16 %v583, %v583
  %v592 = vpack.c.b16 %v584, %v584
  %601 = vst [vmem:[%s3] sm:$0xf] %v585
  %602 = vst [vmem:[%s3 + $0x4] sm:$0xf] %v586
  %603 = vst [vmem:[%s3 + $0x8] sm:$0xf] %v587
  %604 = vst [vmem:[%s3 + $0xc] sm:$0xf] %v588
  %605 = vst [vmem:[%s3 + $0x10] sm:$0xf] %v589
  %606 = vst [vmem:[%s3 + $0x14] sm:$0xf] %v590
  %607 = vst [vmem:[%s3 + $0x18] sm:$0xf] %v591
  %608 = vst [vmem:[%s3 + $0x1c] sm:$0xf] %v592
  // Predicated region
  $region14: #{discriminator_forward.10} parent=0 // pred_check
    _
  $region15: #{discriminator_forward.10} parent=0 // pred_check_branch
    %610 = sbr.rel (0) target = $region17
  $region16: #{discriminator_forward.10} parent=0 // pred_region
    _
  $region17: #{discriminator_forward.10} parent=0 // pred_fallthru
    _
  // Predicated region
  $region18: #{discriminator_forward.10} parent=0 // pred_check
    _
  $region19: #{discriminator_forward.10} parent=0 // pred_check_branch
    %612 = sbr.rel (0) target = $region21
  $region20: #{discriminator_forward.10} parent=0 // pred_region
    _
  $region21: #{discriminator_forward.10} parent=0 // pred_fallthru
    _

// kernel: discriminator_forward.11
$region0: #{discriminator_forward.11}
  #allocation0 [shape = 'u32[]', space=smem, size = 0x4, offset = 0x4, fixed_abs, tag = 'smem constant byte address 0x4 - core index']
  #allocation1 [shape = 'u32[144,128]{1,0:T(1,128)}', space=vmem, size = 0x12000, scoped, tag = 'internal scratch']
  %s0 = inlined_call_operand.vmem [shape: bf16[128,1024], index: 0, kind: input, shape index: {}]
  %s1 = inlined_call_operand.vmem [shape: bf16[1024,32], index: 1, kind: input, shape index: {}]
  %s2 = inlined_call_operand.vmem [shape: f32[128,1], index: 2, kind: input, shape index: {}]
  %s3 = inlined_call_operand.vmem [shape: bf16[128,32], index: 3, kind: output, shape index: {}]
  %s4 = sld [smem:[#allocation0]]
  $region22: #{discriminator_forward.11} parent=0
    _
  %s6 = ssub.s32 1, %s4
  %s7 = scalar_select 0, %s6, %s4
  // Predicated region
  $region2: #{discriminator_forward.11} parent=0 // pred_check
    _
  $region3: #{discriminator_forward.11} parent=0 // pred_check_branch
    %9 = sbr.rel (0) target = $region5
  $region4: #{discriminator_forward.11} parent=0 // pred_region
    _
  $region5: #{discriminator_forward.11} parent=0 // pred_fallthru
    _
  // Predicated region
  $region6: #{discriminator_forward.11} parent=0 // pred_check
    _
  $region7: #{discriminator_forward.11} parent=0 // pred_check_branch
    %11 = sbr.rel (0) target = $region9
  $region8: #{discriminator_forward.11} parent=0 // pred_region
    _
  $region9: #{discriminator_forward.11} parent=0 // pred_fallthru
    _
  // Predicated region
  $region10: #{discriminator_forward.11} parent=0 // pred_check
    _
  $region11: #{discriminator_forward.11} parent=0 // pred_check_branch
    %13 = sbr.rel (0) target = $region13
  $region12: #{discriminator_forward.11} parent=0 // pred_region
    _
  $region13: #{discriminator_forward.11} parent=0 // pred_fallthru
    _
  %v15 = vld [vmem:[%s0] sm:$0xff]
  %v16 = vld [vmem:[%s0 + $0x8] sm:$0xff]
  %v17 = vld [vmem:[%s0 + $0x10] sm:$0xff]
  %v18 = vld [vmem:[%s0 + $0x18] sm:$0xff]
  %v19 = vld [vmem:[%s0 + $0x20] sm:$0xff]
  %v20 = vld [vmem:[%s0 + $0x28] sm:$0xff]
  %v21 = vld [vmem:[%s0 + $0x30] sm:$0xff]
  %v22 = vld [vmem:[%s0 + $0x38] sm:$0xff]
  %v23 = vld [vmem:[%s0 + $0x40] sm:$0xff]
  %v24 = vld [vmem:[%s0 + $0x48] sm:$0xff]
  %v25 = vld [vmem:[%s0 + $0x50] sm:$0xff]
  %v26 = vld [vmem:[%s0 + $0x58] sm:$0xff]
  %v27 = vld [vmem:[%s0 + $0x60] sm:$0xff]
  %v28 = vld [vmem:[%s0 + $0x68] sm:$0xff]
  %v29 = vld [vmem:[%s0 + $0x70] sm:$0xff]
  %v30 = vld [vmem:[%s0 + $0x78] sm:$0xff]
  %v31 = vld [vmem:[%s0 + $0x80] sm:$0xff]
  %v32 = vld [vmem:[%s0 + $0x88] sm:$0xff]
  %v33 = vld [vmem:[%s0 + $0x90] sm:$0xff]
  %v34 = vld [vmem:[%s0 + $0x98] sm:$0xff]
  %v35 = vld [vmem:[%s0 + $0xa0] sm:$0xff]
  %v36 = vld [vmem:[%s0 + $0xa8] sm:$0xff]
  %v37 = vld [vmem:[%s0 + $0xb0] sm:$0xff]
  %v38 = vld [vmem:[%s0 + $0xb8] sm:$0xff]
  %v39 = vld [vmem:[%s0 + $0xc0] sm:$0xff]
  %v40 = vld [vmem:[%s0 + $0xc8] sm:$0xff]
  %v41 = vld [vmem:[%s0 + $0xd0] sm:$0xff]
  %v42 = vld [vmem:[%s0 + $0xd8] sm:$0xff]
  %v43 = vld [vmem:[%s0 + $0xe0] sm:$0xff]
  %v44 = vld [vmem:[%s0 + $0xe8] sm:$0xff]
  %v45 = vld [vmem:[%s0 + $0xf0] sm:$0xff]
  %v46 = vld [vmem:[%s0 + $0xf8] sm:$0xff]
  %v47 = vld [vmem:[%s0 + $0x100] sm:$0xff]
  %v48 = vld [vmem:[%s0 + $0x108] sm:$0xff]
  %v49 = vld [vmem:[%s0 + $0x110] sm:$0xff]
  %v50 = vld [vmem:[%s0 + $0x118] sm:$0xff]
  %v51 = vld [vmem:[%s0 + $0x120] sm:$0xff]
  %v52 = vld [vmem:[%s0 + $0x128] sm:$0xff]
  %v53 = vld [vmem:[%s0 + $0x130] sm:$0xff]
  %v54 = vld [vmem:[%s0 + $0x138] sm:$0xff]
  %v55 = vld [vmem:[%s0 + $0x140] sm:$0xff]
  %v56 = vld [vmem:[%s0 + $0x148] sm:$0xff]
  %v57 = vld [vmem:[%s0 + $0x150] sm:$0xff]
  %v58 = vld [vmem:[%s0 + $0x158] sm:$0xff]
  %v59 = vld [vmem:[%s0 + $0x160] sm:$0xff]
  %v60 = vld [vmem:[%s0 + $0x168] sm:$0xff]
  %v61 = vld [vmem:[%s0 + $0x170] sm:$0xff]
  %v62 = vld [vmem:[%s0 + $0x178] sm:$0xff]
  %v63 = vld [vmem:[%s0 + $0x180] sm:$0xff]
  %v64 = vld [vmem:[%s0 + $0x188] sm:$0xff]
  %v65 = vld [vmem:[%s0 + $0x190] sm:$0xff]
  %v66 = vld [vmem:[%s0 + $0x198] sm:$0xff]
  %v67 = vld [vmem:[%s0 + $0x1a0] sm:$0xff]
  %v68 = vld [vmem:[%s0 + $0x1a8] sm:$0xff]
  %v69 = vld [vmem:[%s0 + $0x1b0] sm:$0xff]
  %v70 = vld [vmem:[%s0 + $0x1b8] sm:$0xff]
  %v71 = vld [vmem:[%s0 + $0x1c0] sm:$0xff]
  %v72 = vld [vmem:[%s0 + $0x1c8] sm:$0xff]
  %v73 = vld [vmem:[%s0 + $0x1d0] sm:$0xff]
  %v74 = vld [vmem:[%s0 + $0x1d8] sm:$0xff]
  %v75 = vld [vmem:[%s0 + $0x1e0] sm:$0xff]
  %v76 = vld [vmem:[%s0 + $0x1e8] sm:$0xff]
  %v77 = vld [vmem:[%s0 + $0x1f0] sm:$0xff]
  %v78 = vld [vmem:[%s0 + $0x1f8] sm:$0xff]
  %v79 = vld [vmem:[%s1] sm:$0xf]
  %v80 = vld [vmem:[%s1 + $0x4] sm:$0xf]
  %v81 = vld [vmem:[%s1 + $0x8] sm:$0xf]
  %v82 = vld [vmem:[%s1 + $0xc] sm:$0xf]
  %v83 = vld [vmem:[%s1 + $0x10] sm:$0xf]
  %v84 = vld [vmem:[%s1 + $0x14] sm:$0xf]
  %v85 = vld [vmem:[%s1 + $0x18] sm:$0xf]
  %v86 = vld [vmem:[%s1 + $0x1c] sm:$0xf]
  %v87 = vld [vmem:[%s1 + $0x20] sm:$0xf]
  %v88 = vld [vmem:[%s1 + $0x24] sm:$0xf]
  %v89 = vld [vmem:[%s1 + $0x28] sm:$0xf]
  %v90 = vld [vmem:[%s1 + $0x2c] sm:$0xf]
  %v91 = vld [vmem:[%s1 + $0x30] sm:$0xf]
  %v92 = vld [vmem:[%s1 + $0x34] sm:$0xf]
  %v93 = vld [vmem:[%s1 + $0x38] sm:$0xf]
  %v94 = vld [vmem:[%s1 + $0x3c] sm:$0xf]
  %v95 = vld [vmem:[%s1 + $0x40] sm:$0xf]
  %v96 = vld [vmem:[%s1 + $0x44] sm:$0xf]
  %v97 = vld [vmem:[%s1 + $0x48] sm:$0xf]
  %v98 = vld [vmem:[%s1 + $0x4c] sm:$0xf]
  %v99 = vld [vmem:[%s1 + $0x50] sm:$0xf]
  %v100 = vld [vmem:[%s1 + $0x54] sm:$0xf]
  %v101 = vld [vmem:[%s1 + $0x58] sm:$0xf]
  %v102 = vld [vmem:[%s1 + $0x5c] sm:$0xf]
  %v103 = vld [vmem:[%s1 + $0x60] sm:$0xf]
  %v104 = vld [vmem:[%s1 + $0x64] sm:$0xf]
  %v105 = vld [vmem:[%s1 + $0x68] sm:$0xf]
  %v106 = vld [vmem:[%s1 + $0x6c] sm:$0xf]
  %v107 = vld [vmem:[%s1 + $0x70] sm:$0xf]
  %v108 = vld [vmem:[%s1 + $0x74] sm:$0xf]
  %v109 = vld [vmem:[%s1 + $0x78] sm:$0xf]
  %v110 = vld [vmem:[%s1 + $0x7c] sm:$0xf]
  %v111 = vld [vmem:[%s1 + $0x80] sm:$0xf]
  %v112 = vld [vmem:[%s1 + $0x84] sm:$0xf]
  %v113 = vld [vmem:[%s1 + $0x88] sm:$0xf]
  %v114 = vld [vmem:[%s1 + $0x8c] sm:$0xf]
  %v115 = vld [vmem:[%s1 + $0x90] sm:$0xf]
  %v116 = vld [vmem:[%s1 + $0x94] sm:$0xf]
  %v117 = vld [vmem:[%s1 + $0x98] sm:$0xf]
  %v118 = vld [vmem:[%s1 + $0x9c] sm:$0xf]
  %v119 = vld [vmem:[%s1 + $0xa0] sm:$0xf]
  %v120 = vld [vmem:[%s1 + $0xa4] sm:$0xf]
  %v121 = vld [vmem:[%s1 + $0xa8] sm:$0xf]
  %v122 = vld [vmem:[%s1 + $0xac] sm:$0xf]
  %v123 = vld [vmem:[%s1 + $0xb0] sm:$0xf]
  %v124 = vld [vmem:[%s1 + $0xb4] sm:$0xf]
  %v125 = vld [vmem:[%s1 + $0xb8] sm:$0xf]
  %v126 = vld [vmem:[%s1 + $0xbc] sm:$0xf]
  %v127 = vld [vmem:[%s1 + $0xc0] sm:$0xf]
  %v128 = vld [vmem:[%s1 + $0xc4] sm:$0xf]
  %v129 = vld [vmem:[%s1 + $0xc8] sm:$0xf]
  %v130 = vld [vmem:[%s1 + $0xcc] sm:$0xf]
  %v131 = vld [vmem:[%s1 + $0xd0] sm:$0xf]
  %v132 = vld [vmem:[%s1 + $0xd4] sm:$0xf]
  %v133 = vld [vmem:[%s1 + $0xd8] sm:$0xf]
  %v134 = vld [vmem:[%s1 + $0xdc] sm:$0xf]
  %v135 = vld [vmem:[%s1 + $0xe0] sm:$0xf]
  %v136 = vld [vmem:[%s1 + $0xe4] sm:$0xf]
  %v137 = vld [vmem:[%s1 + $0xe8] sm:$0xf]
  %v138 = vld [vmem:[%s1 + $0xec] sm:$0xf]
  %v139 = vld [vmem:[%s1 + $0xf0] sm:$0xf]
  %v140 = vld [vmem:[%s1 + $0xf4] sm:$0xf]
  %v141 = vld [vmem:[%s1 + $0xf8] sm:$0xf]
  %v142 = vld [vmem:[%s1 + $0xfc] sm:$0xf]
  %v143 = vld [vmem:[%s1 + $0x100] sm:$0xf]
  %v144 = vld [vmem:[%s1 + $0x104] sm:$0xf]
  %v145 = vld [vmem:[%s1 + $0x108] sm:$0xf]
  %v146 = vld [vmem:[%s1 + $0x10c] sm:$0xf]
  %v147 = vld [vmem:[%s1 + $0x110] sm:$0xf]
  %v148 = vld [vmem:[%s1 + $0x114] sm:$0xf]
  %v149 = vld [vmem:[%s1 + $0x118] sm:$0xf]
  %v150 = vld [vmem:[%s1 + $0x11c] sm:$0xf]
  %v151 = vld [vmem:[%s1 + $0x120] sm:$0xf]
  %v152 = vld [vmem:[%s1 + $0x124] sm:$0xf]
  %v153 = vld [vmem:[%s1 + $0x128] sm:$0xf]
  %v154 = vld [vmem:[%s1 + $0x12c] sm:$0xf]
  %v155 = vld [vmem:[%s1 + $0x130] sm:$0xf]
  %v156 = vld [vmem:[%s1 + $0x134] sm:$0xf]
  %v157 = vld [vmem:[%s1 + $0x138] sm:$0xf]
  %v158 = vld [vmem:[%s1 + $0x13c] sm:$0xf]
  %v159 = vld [vmem:[%s1 + $0x140] sm:$0xf]
  %v160 = vld [vmem:[%s1 + $0x144] sm:$0xf]
  %v161 = vld [vmem:[%s1 + $0x148] sm:$0xf]
  %v162 = vld [vmem:[%s1 + $0x14c] sm:$0xf]
  %v163 = vld [vmem:[%s1 + $0x150] sm:$0xf]
  %v164 = vld [vmem:[%s1 + $0x154] sm:$0xf]
  %v165 = vld [vmem:[%s1 + $0x158] sm:$0xf]
  %v166 = vld [vmem:[%s1 + $0x15c] sm:$0xf]
  %v167 = vld [vmem:[%s1 + $0x160] sm:$0xf]
  %v168 = vld [vmem:[%s1 + $0x164] sm:$0xf]
  %v169 = vld [vmem:[%s1 + $0x168] sm:$0xf]
  %v170 = vld [vmem:[%s1 + $0x16c] sm:$0xf]
  %v171 = vld [vmem:[%s1 + $0x170] sm:$0xf]
  %v172 = vld [vmem:[%s1 + $0x174] sm:$0xf]
  %v173 = vld [vmem:[%s1 + $0x178] sm:$0xf]
  %v174 = vld [vmem:[%s1 + $0x17c] sm:$0xf]
  %v175 = vld [vmem:[%s1 + $0x180] sm:$0xf]
  %v176 = vld [vmem:[%s1 + $0x184] sm:$0xf]
  %v177 = vld [vmem:[%s1 + $0x188] sm:$0xf]
  %v178 = vld [vmem:[%s1 + $0x18c] sm:$0xf]
  %v179 = vld [vmem:[%s1 + $0x190] sm:$0xf]
  %v180 = vld [vmem:[%s1 + $0x194] sm:$0xf]
  %v181 = vld [vmem:[%s1 + $0x198] sm:$0xf]
  %v182 = vld [vmem:[%s1 + $0x19c] sm:$0xf]
  %v183 = vld [vmem:[%s1 + $0x1a0] sm:$0xf]
  %v184 = vld [vmem:[%s1 + $0x1a4] sm:$0xf]
  %v185 = vld [vmem:[%s1 + $0x1a8] sm:$0xf]
  %v186 = vld [vmem:[%s1 + $0x1ac] sm:$0xf]
  %v187 = vld [vmem:[%s1 + $0x1b0] sm:$0xf]
  %v188 = vld [vmem:[%s1 + $0x1b4] sm:$0xf]
  %v189 = vld [vmem:[%s1 + $0x1b8] sm:$0xf]
  %v190 = vld [vmem:[%s1 + $0x1bc] sm:$0xf]
  %v191 = vld [vmem:[%s1 + $0x1c0] sm:$0xf]
  %v192 = vld [vmem:[%s1 + $0x1c4] sm:$0xf]
  %v193 = vld [vmem:[%s1 + $0x1c8] sm:$0xf]
  %v194 = vld [vmem:[%s1 + $0x1cc] sm:$0xf]
  %v195 = vld [vmem:[%s1 + $0x1d0] sm:$0xf]
  %v196 = vld [vmem:[%s1 + $0x1d4] sm:$0xf]
  %v197 = vld [vmem:[%s1 + $0x1d8] sm:$0xf]
  %v198 = vld [vmem:[%s1 + $0x1dc] sm:$0xf]
  %v199 = vld [vmem:[%s1 + $0x1e0] sm:$0xf]
  %v200 = vld [vmem:[%s1 + $0x1e4] sm:$0xf]
  %v201 = vld [vmem:[%s1 + $0x1e8] sm:$0xf]
  %v202 = vld [vmem:[%s1 + $0x1ec] sm:$0xf]
  %v203 = vld [vmem:[%s1 + $0x1f0] sm:$0xf]
  %v204 = vld [vmem:[%s1 + $0x1f4] sm:$0xf]
  %v205 = vld [vmem:[%s1 + $0x1f8] sm:$0xf]
  %v206 = vld [vmem:[%s1 + $0x1fc] sm:$0xf]
  %v207 = vld [vmem:[%s2] sm:$0xff]
  %v208 = vld [vmem:[%s2 + $0x8] sm:$0xff]
  %v209 = vld [vmem:[%s2 + $0x10] sm:$0xff]
  %v210 = vld [vmem:[%s2 + $0x18] sm:$0xff]
  %v211 = vld [vmem:[%s2 + $0x20] sm:$0xff]
  %v212 = vld [vmem:[%s2 + $0x28] sm:$0xff]
  %v213 = vld [vmem:[%s2 + $0x30] sm:$0xff]
  %v214 = vld [vmem:[%s2 + $0x38] sm:$0xff]
  %v215 = vld [vmem:[%s2 + $0x40] sm:$0xff]
  %v216 = vld [vmem:[%s2 + $0x48] sm:$0xff]
  %v217 = vld [vmem:[%s2 + $0x50] sm:$0xff]
  %v218 = vld [vmem:[%s2 + $0x58] sm:$0xff]
  %v219 = vld [vmem:[%s2 + $0x60] sm:$0xff]
  %v220 = vld [vmem:[%s2 + $0x68] sm:$0xff]
  %v221 = vld [vmem:[%s2 + $0x70] sm:$0xff]
  %v222 = vld [vmem:[%s2 + $0x78] sm:$0xff]
  %224 = vset.pattern.permute.xlu0 0
  %225 = vperm.xlu0 %224, %v207
  %v226 = vpop.permute.xlu0 %225
  %229 = vset.pattern.permute.xlu0 0
  %230 = vperm.xlu0 %229, %v208
  %v231 = vpop.permute.xlu0 %230
  %234 = vset.pattern.permute.xlu0 0
  %235 = vperm.xlu0 %234, %v209
  %v236 = vpop.permute.xlu0 %235
  %239 = vset.pattern.permute.xlu0 0
  %240 = vperm.xlu0 %239, %v210
  %v241 = vpop.permute.xlu0 %240
  %244 = vset.pattern.permute.xlu0 0
  %245 = vperm.xlu0 %244, %v211
  %v246 = vpop.permute.xlu0 %245
  %249 = vset.pattern.permute.xlu0 0
  %250 = vperm.xlu0 %249, %v212
  %v251 = vpop.permute.xlu0 %250
  %254 = vset.pattern.permute.xlu0 0
  %255 = vperm.xlu0 %254, %v213
  %v256 = vpop.permute.xlu0 %255
  %259 = vset.pattern.permute.xlu0 0
  %260 = vperm.xlu0 %259, %v214
  %v261 = vpop.permute.xlu0 %260
  %264 = vset.pattern.permute.xlu0 0
  %265 = vperm.xlu0 %264, %v215
  %v266 = vpop.permute.xlu0 %265
  %269 = vset.pattern.permute.xlu0 0
  %270 = vperm.xlu0 %269, %v216
  %v271 = vpop.permute.xlu0 %270
  %274 = vset.pattern.permute.xlu0 0
  %275 = vperm.xlu0 %274, %v217
  %v276 = vpop.permute.xlu0 %275
  %279 = vset.pattern.permute.xlu0 0
  %280 = vperm.xlu0 %279, %v218
  %v281 = vpop.permute.xlu0 %280
  %284 = vset.pattern.permute.xlu0 0
  %285 = vperm.xlu0 %284, %v219
  %v286 = vpop.permute.xlu0 %285
  %289 = vset.pattern.permute.xlu0 0
  %290 = vperm.xlu0 %289, %v220
  %v291 = vpop.permute.xlu0 %290
  %294 = vset.pattern.permute.xlu0 0
  %295 = vperm.xlu0 %294, %v221
  %v296 = vpop.permute.xlu0 %295
  %299 = vset.pattern.permute.xlu0 0
  %300 = vperm.xlu0 %299, %v222
  %v301 = vpop.permute.xlu0 %300
  %v367 = vunpack.c.l.b16 %v15
  %v368 = vunpack.c.h.b16 %v15
  %v369 = vunpack.c.l.b16 %v16
  %v370 = vunpack.c.h.b16 %v16
  %v371 = vunpack.c.l.b16 %v17
  %v372 = vunpack.c.h.b16 %v17
  %v373 = vunpack.c.l.b16 %v18
  %v374 = vunpack.c.h.b16 %v18
  %v375 = vunpack.c.l.b16 %v19
  %v376 = vunpack.c.h.b16 %v19
  %v377 = vunpack.c.l.b16 %v20
  %v378 = vunpack.c.h.b16 %v20
  %v379 = vunpack.c.l.b16 %v21
  %v380 = vunpack.c.h.b16 %v21
  %v381 = vunpack.c.l.b16 %v22
  %v382 = vunpack.c.h.b16 %v22
  %v383 = vunpack.c.l.b16 %v23
  %v384 = vunpack.c.h.b16 %v23
  %v385 = vunpack.c.l.b16 %v24
  %v386 = vunpack.c.h.b16 %v24
  %v387 = vunpack.c.l.b16 %v25
  %v388 = vunpack.c.h.b16 %v25
  %v389 = vunpack.c.l.b16 %v26
  %v390 = vunpack.c.h.b16 %v26
  %v391 = vunpack.c.l.b16 %v27
  %v392 = vunpack.c.h.b16 %v27
  %v393 = vunpack.c.l.b16 %v28
  %v394 = vunpack.c.h.b16 %v28
  %v395 = vunpack.c.l.b16 %v29
  %v396 = vunpack.c.h.b16 %v29
  %v397 = vunpack.c.l.b16 %v30
  %v398 = vunpack.c.h.b16 %v30
  %v399 = vunpack.c.l.b16 %v31
  %v400 = vunpack.c.h.b16 %v31
  %v401 = vunpack.c.l.b16 %v32
  %v402 = vunpack.c.h.b16 %v32
  %v403 = vunpack.c.l.b16 %v33
  %v404 = vunpack.c.h.b16 %v33
  %v405 = vunpack.c.l.b16 %v34
  %v406 = vunpack.c.h.b16 %v34
  %v407 = vunpack.c.l.b16 %v35
  %v408 = vunpack.c.h.b16 %v35
  %v409 = vunpack.c.l.b16 %v36
  %v410 = vunpack.c.h.b16 %v36
  %v411 = vunpack.c.l.b16 %v37
  %v412 = vunpack.c.h.b16 %v37
  %v413 = vunpack.c.l.b16 %v38
  %v414 = vunpack.c.h.b16 %v38
  %v415 = vunpack.c.l.b16 %v39
  %v416 = vunpack.c.h.b16 %v39
  %v417 = vunpack.c.l.b16 %v40
  %v418 = vunpack.c.h.b16 %v40
  %v419 = vunpack.c.l.b16 %v41
  %v420 = vunpack.c.h.b16 %v41
  %v421 = vunpack.c.l.b16 %v42
  %v422 = vunpack.c.h.b16 %v42
  %v423 = vunpack.c.l.b16 %v43
  %v424 = vunpack.c.h.b16 %v43
  %v425 = vunpack.c.l.b16 %v44
  %v426 = vunpack.c.h.b16 %v44
  %v427 = vunpack.c.l.b16 %v45
  %v428 = vunpack.c.h.b16 %v45
  %v429 = vunpack.c.l.b16 %v46
  %v430 = vunpack.c.h.b16 %v46
  %v431 = vunpack.c.l.b16 %v47
  %v432 = vunpack.c.h.b16 %v47
  %v433 = vunpack.c.l.b16 %v48
  %v434 = vunpack.c.h.b16 %v48
  %v435 = vunpack.c.l.b16 %v49
  %v436 = vunpack.c.h.b16 %v49
  %v437 = vunpack.c.l.b16 %v50
  %v438 = vunpack.c.h.b16 %v50
  %v439 = vunpack.c.l.b16 %v51
  %v440 = vunpack.c.h.b16 %v51
  %v441 = vunpack.c.l.b16 %v52
  %v442 = vunpack.c.h.b16 %v52
  %v443 = vunpack.c.l.b16 %v53
  %v444 = vunpack.c.h.b16 %v53
  %v445 = vunpack.c.l.b16 %v54
  %v446 = vunpack.c.h.b16 %v54
  %v447 = vunpack.c.l.b16 %v55
  %v448 = vunpack.c.h.b16 %v55
  %v449 = vunpack.c.l.b16 %v56
  %v450 = vunpack.c.h.b16 %v56
  %v451 = vunpack.c.l.b16 %v57
  %v452 = vunpack.c.h.b16 %v57
  %v453 = vunpack.c.l.b16 %v58
  %v454 = vunpack.c.h.b16 %v58
  %v455 = vunpack.c.l.b16 %v59
  %v456 = vunpack.c.h.b16 %v59
  %v457 = vunpack.c.l.b16 %v60
  %v458 = vunpack.c.h.b16 %v60
  %v459 = vunpack.c.l.b16 %v61
  %v460 = vunpack.c.h.b16 %v61
  %v461 = vunpack.c.l.b16 %v62
  %v462 = vunpack.c.h.b16 %v62
  %v463 = vunpack.c.l.b16 %v63
  %v464 = vunpack.c.h.b16 %v63
  %v465 = vunpack.c.l.b16 %v64
  %v466 = vunpack.c.h.b16 %v64
  %v467 = vunpack.c.l.b16 %v65
  %v468 = vunpack.c.h.b16 %v65
  %v469 = vunpack.c.l.b16 %v66
  %v470 = vunpack.c.h.b16 %v66
  %v471 = vunpack.c.l.b16 %v67
  %v472 = vunpack.c.h.b16 %v67
  %v473 = vunpack.c.l.b16 %v68
  %v474 = vunpack.c.h.b16 %v68
  %v475 = vunpack.c.l.b16 %v69
  %v476 = vunpack.c.h.b16 %v69
  %v477 = vunpack.c.l.b16 %v70
  %v478 = vunpack.c.h.b16 %v70
  %v479 = vunpack.c.l.b16 %v71
  %v480 = vunpack.c.h.b16 %v71
  %v481 = vunpack.c.l.b16 %v72
  %v482 = vunpack.c.h.b16 %v72
  %v483 = vunpack.c.l.b16 %v73
  %v484 = vunpack.c.h.b16 %v73
  %v485 = vunpack.c.l.b16 %v74
  %v486 = vunpack.c.h.b16 %v74
  %v487 = vunpack.c.l.b16 %v75
  %v488 = vunpack.c.h.b16 %v75
  %v489 = vunpack.c.l.b16 %v76
  %v490 = vunpack.c.h.b16 %v76
  %v491 = vunpack.c.l.b16 %v77
  %v492 = vunpack.c.h.b16 %v77
  %v493 = vunpack.c.l.b16 %v78
  %v494 = vunpack.c.h.b16 %v78
  %v495 = vpack.c.b16 %v375, %v367
  %v496 = vpack.c.b16 %v376, %v368
  %v497 = vpack.c.b16 %v377, %v369
  %v498 = vpack.c.b16 %v378, %v370
  %v499 = vpack.c.b16 %v379, %v371
  %v500 = vpack.c.b16 %v380, %v372
  %v501 = vpack.c.b16 %v381, %v373
  %v502 = vpack.c.b16 %v382, %v374
  %v503 = vpack.c.b16 %v391, %v383
  %v504 = vpack.c.b16 %v392, %v384
  %v505 = vpack.c.b16 %v393, %v385
  %v506 = vpack.c.b16 %v394, %v386
  %v507 = vpack.c.b16 %v395, %v387
  %v508 = vpack.c.b16 %v396, %v388
  %v509 = vpack.c.b16 %v397, %v389
  %v510 = vpack.c.b16 %v398, %v390
  %v511 = vpack.c.b16 %v407, %v399
  %v512 = vpack.c.b16 %v408, %v400
  %v513 = vpack.c.b16 %v409, %v401
  %v514 = vpack.c.b16 %v410, %v402
  %v515 = vpack.c.b16 %v411, %v403
  %v516 = vpack.c.b16 %v412, %v404
  %v517 = vpack.c.b16 %v413, %v405
  %v518 = vpack.c.b16 %v414, %v406
  %v519 = vpack.c.b16 %v423, %v415
  %v520 = vpack.c.b16 %v424, %v416
  %v521 = vpack.c.b16 %v425, %v417
  %v522 = vpack.c.b16 %v426, %v418
  %v523 = vpack.c.b16 %v427, %v419
  %v524 = vpack.c.b16 %v428, %v420
  %v525 = vpack.c.b16 %v429, %v421
  %v526 = vpack.c.b16 %v430, %v422
  %v527 = vpack.c.b16 %v439, %v431
  %v528 = vpack.c.b16 %v440, %v432
  %v529 = vpack.c.b16 %v441, %v433
  %v530 = vpack.c.b16 %v442, %v434
  %v531 = vpack.c.b16 %v443, %v435
  %v532 = vpack.c.b16 %v444, %v436
  %v533 = vpack.c.b16 %v445, %v437
  %v534 = vpack.c.b16 %v446, %v438
  %v535 = vpack.c.b16 %v455, %v447
  %v536 = vpack.c.b16 %v456, %v448
  %v537 = vpack.c.b16 %v457, %v449
  %v538 = vpack.c.b16 %v458, %v450
  %v539 = vpack.c.b16 %v459, %v451
  %v540 = vpack.c.b16 %v460, %v452
  %v541 = vpack.c.b16 %v461, %v453
  %v542 = vpack.c.b16 %v462, %v454
  %v543 = vpack.c.b16 %v471, %v463
  %v544 = vpack.c.b16 %v472, %v464
  %v545 = vpack.c.b16 %v473, %v465
  %v546 = vpack.c.b16 %v474, %v466
  %v547 = vpack.c.b16 %v475, %v467
  %v548 = vpack.c.b16 %v476, %v468
  %v549 = vpack.c.b16 %v477, %v469
  %v550 = vpack.c.b16 %v478, %v470
  %v551 = vpack.c.b16 %v487, %v479
  %v552 = vpack.c.b16 %v488, %v480
  %v553 = vpack.c.b16 %v489, %v481
  %v554 = vpack.c.b16 %v490, %v482
  %v555 = vpack.c.b16 %v491, %v483
  %v556 = vpack.c.b16 %v492, %v484
  %v557 = vpack.c.b16 %v493, %v485
  %v558 = vpack.c.b16 %v494, %v486
  %v751 = vunpack.c.l.b16 %v79
  %v752 = vunpack.c.l.b16 %v80
  %v753 = vunpack.c.l.b16 %v81
  %v754 = vunpack.c.l.b16 %v82
  %v755 = vunpack.c.l.b16 %v83
  %v756 = vunpack.c.l.b16 %v84
  %v757 = vunpack.c.l.b16 %v85
  %v758 = vunpack.c.l.b16 %v86
  %v759 = vunpack.c.l.b16 %v87
  %v760 = vunpack.c.l.b16 %v88
  %v761 = vunpack.c.l.b16 %v89
  %v762 = vunpack.c.l.b16 %v90
  %v763 = vunpack.c.l.b16 %v91
  %v764 = vunpack.c.l.b16 %v92
  %v765 = vunpack.c.l.b16 %v93
  %v766 = vunpack.c.l.b16 %v94
  %v767 = vunpack.c.l.b16 %v95
  %v768 = vunpack.c.l.b16 %v96
  %v769 = vunpack.c.l.b16 %v97
  %v770 = vunpack.c.l.b16 %v98
  %v771 = vunpack.c.l.b16 %v99
  %v772 = vunpack.c.l.b16 %v100
  %v773 = vunpack.c.l.b16 %v101
  %v774 = vunpack.c.l.b16 %v102
  %v775 = vunpack.c.l.b16 %v103
  %v776 = vunpack.c.l.b16 %v104
  %v777 = vunpack.c.l.b16 %v105
  %v778 = vunpack.c.l.b16 %v106
  %v779 = vunpack.c.l.b16 %v107
  %v780 = vunpack.c.l.b16 %v108
  %v781 = vunpack.c.l.b16 %v109
  %v782 = vunpack.c.l.b16 %v110
  %v783 = vunpack.c.l.b16 %v111
  %v784 = vunpack.c.l.b16 %v112
  %v785 = vunpack.c.l.b16 %v113
  %v786 = vunpack.c.l.b16 %v114
  %v787 = vunpack.c.l.b16 %v115
  %v788 = vunpack.c.l.b16 %v116
  %v789 = vunpack.c.l.b16 %v117
  %v790 = vunpack.c.l.b16 %v118
  %v791 = vunpack.c.l.b16 %v119
  %v792 = vunpack.c.l.b16 %v120
  %v793 = vunpack.c.l.b16 %v121
  %v794 = vunpack.c.l.b16 %v122
  %v795 = vunpack.c.l.b16 %v123
  %v796 = vunpack.c.l.b16 %v124
  %v797 = vunpack.c.l.b16 %v125
  %v798 = vunpack.c.l.b16 %v126
  %v799 = vunpack.c.l.b16 %v127
  %v800 = vunpack.c.l.b16 %v128
  %v801 = vunpack.c.l.b16 %v129
  %v802 = vunpack.c.l.b16 %v130
  %v803 = vunpack.c.l.b16 %v131
  %v804 = vunpack.c.l.b16 %v132
  %v805 = vunpack.c.l.b16 %v133
  %v806 = vunpack.c.l.b16 %v134
  %v807 = vunpack.c.l.b16 %v135
  %v808 = vunpack.c.l.b16 %v136
  %v809 = vunpack.c.l.b16 %v137
  %v810 = vunpack.c.l.b16 %v138
  %v811 = vunpack.c.l.b16 %v139
  %v812 = vunpack.c.l.b16 %v140
  %v813 = vunpack.c.l.b16 %v141
  %v814 = vunpack.c.l.b16 %v142
  %v815 = vunpack.c.l.b16 %v143
  %v816 = vunpack.c.l.b16 %v144
  %v817 = vunpack.c.l.b16 %v145
  %v818 = vunpack.c.l.b16 %v146
  %v819 = vunpack.c.l.b16 %v147
  %v820 = vunpack.c.l.b16 %v148
  %v821 = vunpack.c.l.b16 %v149
  %v822 = vunpack.c.l.b16 %v150
  %v823 = vunpack.c.l.b16 %v151
  %v824 = vunpack.c.l.b16 %v152
  %v825 = vunpack.c.l.b16 %v153
  %v826 = vunpack.c.l.b16 %v154
  %v827 = vunpack.c.l.b16 %v155
  %v828 = vunpack.c.l.b16 %v156
  %v829 = vunpack.c.l.b16 %v157
  %v830 = vunpack.c.l.b16 %v158
  %v831 = vunpack.c.l.b16 %v159
  %v832 = vunpack.c.l.b16 %v160
  %v833 = vunpack.c.l.b16 %v161
  %v834 = vunpack.c.l.b16 %v162
  %v835 = vunpack.c.l.b16 %v163
  %v836 = vunpack.c.l.b16 %v164
  %v837 = vunpack.c.l.b16 %v165
  %v838 = vunpack.c.l.b16 %v166
  %v839 = vunpack.c.l.b16 %v167
  %v840 = vunpack.c.l.b16 %v168
  %v841 = vunpack.c.l.b16 %v169
  %v842 = vunpack.c.l.b16 %v170
  %v843 = vunpack.c.l.b16 %v171
  %v844 = vunpack.c.l.b16 %v172
  %v845 = vunpack.c.l.b16 %v173
  %v846 = vunpack.c.l.b16 %v174
  %v847 = vunpack.c.l.b16 %v175
  %v848 = vunpack.c.l.b16 %v176
  %v849 = vunpack.c.l.b16 %v177
  %v850 = vunpack.c.l.b16 %v178
  %v851 = vunpack.c.l.b16 %v179
  %v852 = vunpack.c.l.b16 %v180
  %v853 = vunpack.c.l.b16 %v181
  %v854 = vunpack.c.l.b16 %v182
  %v855 = vunpack.c.l.b16 %v183
  %v856 = vunpack.c.l.b16 %v184
  %v857 = vunpack.c.l.b16 %v185
  %v858 = vunpack.c.l.b16 %v186
  %v859 = vunpack.c.l.b16 %v187
  %v860 = vunpack.c.l.b16 %v188
  %v861 = vunpack.c.l.b16 %v189
  %v862 = vunpack.c.l.b16 %v190
  %v863 = vunpack.c.l.b16 %v191
  %v864 = vunpack.c.l.b16 %v192
  %v865 = vunpack.c.l.b16 %v193
  %v866 = vunpack.c.l.b16 %v194
  %v867 = vunpack.c.l.b16 %v195
  %v868 = vunpack.c.l.b16 %v196
  %v869 = vunpack.c.l.b16 %v197
  %v870 = vunpack.c.l.b16 %v198
  %v871 = vunpack.c.l.b16 %v199
  %v872 = vunpack.c.l.b16 %v200
  %v873 = vunpack.c.l.b16 %v201
  %v874 = vunpack.c.l.b16 %v202
  %v875 = vunpack.c.l.b16 %v203
  %v876 = vunpack.c.l.b16 %v204
  %v877 = vunpack.c.l.b16 %v205
  %v878 = vunpack.c.l.b16 %v206
  %v879 = vpack.c.b16 %v752, %v751
  %v880 = vpack.c.b16 %v754, %v753
  %v881 = vpack.c.b16 %v756, %v755
  %v882 = vpack.c.b16 %v758, %v757
  %v883 = vpack.c.b16 %v760, %v759
  %v884 = vpack.c.b16 %v762, %v761
  %v885 = vpack.c.b16 %v764, %v763
  %v886 = vpack.c.b16 %v766, %v765
  %v887 = vpack.c.b16 %v768, %v767
  %v888 = vpack.c.b16 %v770, %v769
  %v889 = vpack.c.b16 %v772, %v771
  %v890 = vpack.c.b16 %v774, %v773
  %v891 = vpack.c.b16 %v776, %v775
  %v892 = vpack.c.b16 %v778, %v777
  %v893 = vpack.c.b16 %v780, %v779
  %v894 = vpack.c.b16 %v782, %v781
  %v895 = vpack.c.b16 %v784, %v783
  %v896 = vpack.c.b16 %v786, %v785
  %v897 = vpack.c.b16 %v788, %v787
  %v898 = vpack.c.b16 %v790, %v789
  %v899 = vpack.c.b16 %v792, %v791
  %v900 = vpack.c.b16 %v794, %v793
  %v901 = vpack.c.b16 %v796, %v795
  %v902 = vpack.c.b16 %v798, %v797
  %v903 = vpack.c.b16 %v800, %v799
  %v904 = vpack.c.b16 %v802, %v801
  %v905 = vpack.c.b16 %v804, %v803
  %v906 = vpack.c.b16 %v806, %v805
  %v907 = vpack.c.b16 %v808, %v807
  %v908 = vpack.c.b16 %v810, %v809
  %v909 = vpack.c.b16 %v812, %v811
  %v910 = vpack.c.b16 %v814, %v813
  %v911 = vpack.c.b16 %v816, %v815
  %v912 = vpack.c.b16 %v818, %v817
  %v913 = vpack.c.b16 %v820, %v819
  %v914 = vpack.c.b16 %v822, %v821
  %v915 = vpack.c.b16 %v824, %v823
  %v916 = vpack.c.b16 %v826, %v825
  %v917 = vpack.c.b16 %v828, %v827
  %v918 = vpack.c.b16 %v830, %v829
  %v919 = vpack.c.b16 %v832, %v831
  %v920 = vpack.c.b16 %v834, %v833
  %v921 = vpack.c.b16 %v836, %v835
  %v922 = vpack.c.b16 %v838, %v837
  %v923 = vpack.c.b16 %v840, %v839
  %v924 = vpack.c.b16 %v842, %v841
  %v925 = vpack.c.b16 %v844, %v843
  %v926 = vpack.c.b16 %v846, %v845
  %v927 = vpack.c.b16 %v848, %v847
  %v928 = vpack.c.b16 %v850, %v849
  %v929 = vpack.c.b16 %v852, %v851
  %v930 = vpack.c.b16 %v854, %v853
  %v931 = vpack.c.b16 %v856, %v855
  %v932 = vpack.c.b16 %v858, %v857
  %v933 = vpack.c.b16 %v860, %v859
  %v934 = vpack.c.b16 %v862, %v861
  %v935 = vpack.c.b16 %v864, %v863
  %v936 = vpack.c.b16 %v866, %v865
  %v937 = vpack.c.b16 %v868, %v867
  %v938 = vpack.c.b16 %v870, %v869
  %v939 = vpack.c.b16 %v872, %v871
  %v940 = vpack.c.b16 %v874, %v873
  %v941 = vpack.c.b16 %v876, %v875
  %v942 = vpack.c.b16 %v878, %v877
  %1007 = vmatprep.subr.bf16.mxu0 0
  %1008 = vmatpush1.bf16.msra.mxu0 %v886
  %1009 = vmatprep.subr.bf16.mxu0 0
  %1010 = vmatpush1.bf16.msra.mxu0 %v885
  %1011 = vmatprep.subr.bf16.mxu0 0
  %1012 = vmatpush1.bf16.msra.mxu0 %v884
  %1013 = vmatprep.subr.bf16.mxu0 0
  %1014 = vmatpush1.bf16.msra.mxu0 %v883
  %1015 = vmatprep.subr.bf16.mxu0 0
  %1016 = vmatpush1.bf16.msra.mxu0 %v882
  %1017 = vmatprep.subr.bf16.mxu0 0
  %1018 = vmatpush1.bf16.msra.mxu0 %v881
  %1019 = vmatprep.subr.bf16.mxu0 0
  %1020 = vmatpush1.bf16.msra.mxu0 %v880
  %1021 = vmatprep.subr.bf16.mxu0 0
  %1022 = vmatpush1.bf16.msra.mxu0 %v879
  %1023 = vmatprep.subr.bf16.mxu0 0
  %1024 = vmatpush2.bf16.msra.mxu0 %v894
  %1025 = vmatprep.subr.bf16.mxu0 0
  %1026 = vmatpush2.bf16.msra.mxu0 %v893
  %1027 = vmatprep.subr.bf16.mxu0 0
  %1028 = vmatpush2.bf16.msra.mxu0 %v892
  %1029 = vmatprep.subr.bf16.mxu0 0
  %1030 = vmatpush2.bf16.msra.mxu0 %v891
  %1031 = vmatprep.subr.bf16.mxu0 0
  %1032 = vmatpush2.bf16.msra.mxu0 %v890
  %1033 = vmatprep.subr.bf16.mxu0 0
  %1034 = vmatpush2.bf16.msra.mxu0 %v889
  %1035 = vmatprep.subr.bf16.mxu0 0
  %1036 = vmatpush2.bf16.msra.mxu0 %v888
  %1037 = vmatprep.subr.bf16.mxu0 0
  %1038 = vmatpush2.bf16.msra.mxu0 %v887
  %1039 = vmatprep.mubr.bf16.mxu0 %v496
  %1040 = vmatmul.mubr.bf16.gmra.mxu0 %v495
  %v1041 = vpop.f32.mrf.mxu0
  %v1042 = vadd.f32 %v226, %v1041
  %v1043 = vpop.f32.mrf.mxu0
  %v1044 = vpop.f32.mrf.mxu0
  %v1045 = vadd.f32 %v231, %v1044
  %v1046 = vpop.f32.mrf.mxu0
  %1047 = vmatprep.mubr.bf16.mxu0 %v504
  %1048 = vmatmul.mubr.bf16.gmra.mxu0 %v503
  %v1049 = vpop.f32.mrf.mxu0
  %v1050 = vadd.f32 %v236, %v1049
  %v1051 = vpop.f32.mrf.mxu0
  %v1052 = vpop.f32.mrf.mxu0
  %v1053 = vadd.f32 %v241, %v1052
  %v1054 = vpop.f32.mrf.mxu0
  %1055 = vmatprep.mubr.bf16.mxu0 %v512
  %1056 = vmatmul.mubr.bf16.gmra.mxu0 %v511
  %v1057 = vpop.f32.mrf.mxu0
  %v1058 = vadd.f32 %v246, %v1057
  %v1059 = vpop.f32.mrf.mxu0
  %v1060 = vpop.f32.mrf.mxu0
  %v1061 = vadd.f32 %v251, %v1060
  %v1062 = vpop.f32.mrf.mxu0
  %1063 = vmatprep.mubr.bf16.mxu0 %v520
  %1064 = vmatmul.mubr.bf16.gmra.mxu0 %v519
  %v1065 = vpop.f32.mrf.mxu0
  %v1066 = vadd.f32 %v256, %v1065
  %v1067 = vpop.f32.mrf.mxu0
  %v1068 = vpop.f32.mrf.mxu0
  %v1069 = vadd.f32 %v261, %v1068
  %v1070 = vpop.f32.mrf.mxu0
  %1071 = vmatprep.mubr.bf16.mxu0 %v528
  %1072 = vmatmul.mubr.bf16.gmra.mxu0 %v527
  %v1073 = vpop.f32.mrf.mxu0
  %v1074 = vadd.f32 %v266, %v1073
  %v1075 = vpop.f32.mrf.mxu0
  %v1076 = vpop.f32.mrf.mxu0
  %v1077 = vadd.f32 %v271, %v1076
  %v1078 = vpop.f32.mrf.mxu0
  %1079 = vmatprep.mubr.bf16.mxu0 %v536
  %1080 = vmatmul.mubr.bf16.gmra.mxu0 %v535
  %v1081 = vpop.f32.mrf.mxu0
  %v1082 = vadd.f32 %v276, %v1081
  %v1083 = vpop.f32.mrf.mxu0
  %v1084 = vpop.f32.mrf.mxu0
  %v1085 = vadd.f32 %v281, %v1084
  %v1086 = vpop.f32.mrf.mxu0
  %1087 = vmatprep.mubr.bf16.mxu0 %v544
  %1088 = vmatmul.mubr.bf16.gmra.mxu0 %v543
  %v1089 = vpop.f32.mrf.mxu0
  %v1090 = vadd.f32 %v286, %v1089
  %v1091 = vpop.f32.mrf.mxu0
  %v1092 = vpop.f32.mrf.mxu0
  %v1093 = vadd.f32 %v291, %v1092
  %v1094 = vpop.f32.mrf.mxu0
  %1095 = vmatprep.mubr.bf16.mxu0 %v552
  %1096 = vmatmul.mubr.bf16.gmra.mxu0 %v551
  %v1097 = vpop.f32.mrf.mxu0
  %v1098 = vadd.f32 %v296, %v1097
  %v1099 = vpop.f32.mrf.mxu0
  %v1100 = vpop.f32.mrf.mxu0
  %v1101 = vadd.f32 %v301, %v1100
  %v1102 = vpop.f32.mrf.mxu0
  %1103 = vdwg.mxu0
  %1104 = vmatprep.subr.bf16.mxu0 0
  %1105 = vmatpush1.bf16.msra.mxu0 %v902
  %1106 = vmatprep.subr.bf16.mxu0 0
  %1107 = vmatpush1.bf16.msra.mxu0 %v901
  %1108 = vmatprep.subr.bf16.mxu0 0
  %1109 = vmatpush1.bf16.msra.mxu0 %v900
  %1110 = vmatprep.subr.bf16.mxu0 0
  %1111 = vmatpush1.bf16.msra.mxu0 %v899
  %1112 = vmatprep.subr.bf16.mxu0 0
  %1113 = vmatpush1.bf16.msra.mxu0 %v898
  %1114 = vmatprep.subr.bf16.mxu0 0
  %1115 = vmatpush1.bf16.msra.mxu0 %v897
  %1116 = vmatprep.subr.bf16.mxu0 0
  %1117 = vmatpush1.bf16.msra.mxu0 %v896
  %1118 = vmatprep.subr.bf16.mxu0 0
  %1119 = vmatpush1.bf16.msra.mxu0 %v895
  %1120 = vmatprep.subr.bf16.mxu0 0
  %1121 = vmatpush2.bf16.msra.mxu0 %v910
  %1122 = vmatprep.subr.bf16.mxu0 0
  %1123 = vmatpush2.bf16.msra.mxu0 %v909
  %1124 = vmatprep.subr.bf16.mxu0 0
  %1125 = vmatpush2.bf16.msra.mxu0 %v908
  %1126 = vmatprep.subr.bf16.mxu0 0
  %1127 = vmatpush2.bf16.msra.mxu0 %v907
  %1128 = vmatprep.subr.bf16.mxu0 0
  %1129 = vmatpush2.bf16.msra.mxu0 %v906
  %1130 = vmatprep.subr.bf16.mxu0 0
  %1131 = vmatpush2.bf16.msra.mxu0 %v905
  %1132 = vmatprep.subr.bf16.mxu0 0
  %1133 = vmatpush2.bf16.msra.mxu0 %v904
  %1134 = vmatprep.subr.bf16.mxu0 0
  %1135 = vmatpush2.bf16.msra.mxu0 %v903
  %1136 = vmatprep.mubr.bf16.mxu0 %v498
  %1137 = vmatmul.mubr.bf16.gmra.mxu0 %v497
  %v1138 = vpop.f32.mrf.mxu0
  %v1139 = vadd.f32 %v1042, %v1138
  %v1140 = vpop.f32.mrf.mxu0
  %v1141 = vpop.f32.mrf.mxu0
  %v1142 = vadd.f32 %v1045, %v1141
  %v1143 = vpop.f32.mrf.mxu0
  %1144 = vmatprep.mubr.bf16.mxu0 %v506
  %1145 = vmatmul.mubr.bf16.gmra.mxu0 %v505
  %v1146 = vpop.f32.mrf.mxu0
  %v1147 = vadd.f32 %v1050, %v1146
  %v1148 = vpop.f32.mrf.mxu0
  %v1149 = vpop.f32.mrf.mxu0
  %v1150 = vadd.f32 %v1053, %v1149
  %v1151 = vpop.f32.mrf.mxu0
  %1152 = vmatprep.mubr.bf16.mxu0 %v514
  %1153 = vmatmul.mubr.bf16.gmra.mxu0 %v513
  %v1154 = vpop.f32.mrf.mxu0
  %v1155 = vadd.f32 %v1058, %v1154
  %v1156 = vpop.f32.mrf.mxu0
  %v1157 = vpop.f32.mrf.mxu0
  %v1158 = vadd.f32 %v1061, %v1157
  %v1159 = vpop.f32.mrf.mxu0
  %1160 = vmatprep.mubr.bf16.mxu0 %v522
  %1161 = vmatmul.mubr.bf16.gmra.mxu0 %v521
  %v1162 = vpop.f32.mrf.mxu0
  %v1163 = vadd.f32 %v1066, %v1162
  %v1164 = vpop.f32.mrf.mxu0
  %v1165 = vpop.f32.mrf.mxu0
  %v1166 = vadd.f32 %v1069, %v1165
  %v1167 = vpop.f32.mrf.mxu0
  %1168 = vmatprep.mubr.bf16.mxu0 %v530
  %1169 = vmatmul.mubr.bf16.gmra.mxu0 %v529
  %v1170 = vpop.f32.mrf.mxu0
  %v1171 = vadd.f32 %v1074, %v1170
  %v1172 = vpop.f32.mrf.mxu0
  %v1173 = vpop.f32.mrf.mxu0
  %v1174 = vadd.f32 %v1077, %v1173
  %v1175 = vpop.f32.mrf.mxu0
  %1176 = vmatprep.mubr.bf16.mxu0 %v538
  %1177 = vmatmul.mubr.bf16.gmra.mxu0 %v537
  %v1178 = vpop.f32.mrf.mxu0
  %v1179 = vadd.f32 %v1082, %v1178
  %v1180 = vpop.f32.mrf.mxu0
  %v1181 = vpop.f32.mrf.mxu0
  %v1182 = vadd.f32 %v1085, %v1181
  %v1183 = vpop.f32.mrf.mxu0
  %1184 = vmatprep.mubr.bf16.mxu0 %v546
  %1185 = vmatmul.mubr.bf16.gmra.mxu0 %v545
  %v1186 = vpop.f32.mrf.mxu0
  %v1187 = vadd.f32 %v1090, %v1186
  %v1188 = vpop.f32.mrf.mxu0
  %v1189 = vpop.f32.mrf.mxu0
  %v1190 = vadd.f32 %v1093, %v1189
  %v1191 = vpop.f32.mrf.mxu0
  %1192 = vmatprep.mubr.bf16.mxu0 %v554
  %1193 = vmatmul.mubr.bf16.gmra.mxu0 %v553
  %v1194 = vpop.f32.mrf.mxu0
  %v1195 = vadd.f32 %v1098, %v1194
  %v1196 = vpop.f32.mrf.mxu0
  %v1197 = vpop.f32.mrf.mxu0
  %v1198 = vadd.f32 %v1101, %v1197
  %v1199 = vpop.f32.mrf.mxu0
  %1200 = vdwg.mxu0
  %1201 = vmatprep.subr.bf16.mxu0 0
  %1202 = vmatpush1.bf16.msra.mxu0 %v918
  %1203 = vmatprep.subr.bf16.mxu0 0
  %1204 = vmatpush1.bf16.msra.mxu0 %v917
  %1205 = vmatprep.subr.bf16.mxu0 0
  %1206 = vmatpush1.bf16.msra.mxu0 %v916
  %1207 = vmatprep.subr.bf16.mxu0 0
  %1208 = vmatpush1.bf16.msra.mxu0 %v915
  %1209 = vmatprep.subr.bf16.mxu0 0
  %1210 = vmatpush1.bf16.msra.mxu0 %v914
  %1211 = vmatprep.subr.bf16.mxu0 0
  %1212 = vmatpush1.bf16.msra.mxu0 %v913
  %1213 = vmatprep.subr.bf16.mxu0 0
  %1214 = vmatpush1.bf16.msra.mxu0 %v912
  %1215 = vmatprep.subr.bf16.mxu0 0
  %1216 = vmatpush1.bf16.msra.mxu0 %v911
  %1217 = vmatprep.subr.bf16.mxu0 0
  %1218 = vmatpush2.bf16.msra.mxu0 %v926
  %1219 = vmatprep.subr.bf16.mxu0 0
  %1220 = vmatpush2.bf16.msra.mxu0 %v925
  %1221 = vmatprep.subr.bf16.mxu0 0
  %1222 = vmatpush2.bf16.msra.mxu0 %v924
  %1223 = vmatprep.subr.bf16.mxu0 0
  %1224 = vmatpush2.bf16.msra.mxu0 %v923
  %1225 = vmatprep.subr.bf16.mxu0 0
  %1226 = vmatpush2.bf16.msra.mxu0 %v922
  %1227 = vmatprep.subr.bf16.mxu0 0
  %1228 = vmatpush2.bf16.msra.mxu0 %v921
  %1229 = vmatprep.subr.bf16.mxu0 0
  %1230 = vmatpush2.bf16.msra.mxu0 %v920
  %1231 = vmatprep.subr.bf16.mxu0 0
  %1232 = vmatpush2.bf16.msra.mxu0 %v919
  %1233 = vmatprep.mubr.bf16.mxu0 %v500
  %1234 = vmatmul.mubr.bf16.gmra.mxu0 %v499
  %v1235 = vpop.f32.mrf.mxu0
  %v1236 = vadd.f32 %v1139, %v1235
  %v1237 = vpop.f32.mrf.mxu0
  %v1238 = vpop.f32.mrf.mxu0
  %v1239 = vadd.f32 %v1142, %v1238
  %v1240 = vpop.f32.mrf.mxu0
  %1241 = vmatprep.mubr.bf16.mxu0 %v508
  %1242 = vmatmul.mubr.bf16.gmra.mxu0 %v507
  %v1243 = vpop.f32.mrf.mxu0
  %v1244 = vadd.f32 %v1147, %v1243
  %v1245 = vpop.f32.mrf.mxu0
  %v1246 = vpop.f32.mrf.mxu0
  %v1247 = vadd.f32 %v1150, %v1246
  %v1248 = vpop.f32.mrf.mxu0
  %1249 = vmatprep.mubr.bf16.mxu0 %v516
  %1250 = vmatmul.mubr.bf16.gmra.mxu0 %v515
  %v1251 = vpop.f32.mrf.mxu0
  %v1252 = vadd.f32 %v1155, %v1251
  %v1253 = vpop.f32.mrf.mxu0
  %v1254 = vpop.f32.mrf.mxu0
  %v1255 = vadd.f32 %v1158, %v1254
  %v1256 = vpop.f32.mrf.mxu0
  %1257 = vmatprep.mubr.bf16.mxu0 %v524
  %1258 = vmatmul.mubr.bf16.gmra.mxu0 %v523
  %v1259 = vpop.f32.mrf.mxu0
  %v1260 = vadd.f32 %v1163, %v1259
  %v1261 = vpop.f32.mrf.mxu0
  %v1262 = vpop.f32.mrf.mxu0
  %v1263 = vadd.f32 %v1166, %v1262
  %v1264 = vpop.f32.mrf.mxu0
  %1265 = vmatprep.mubr.bf16.mxu0 %v532
  %1266 = vmatmul.mubr.bf16.gmra.mxu0 %v531
  %v1267 = vpop.f32.mrf.mxu0
  %v1268 = vadd.f32 %v1171, %v1267
  %v1269 = vpop.f32.mrf.mxu0
  %v1270 = vpop.f32.mrf.mxu0
  %v1271 = vadd.f32 %v1174, %v1270
  %v1272 = vpop.f32.mrf.mxu0
  %1273 = vmatprep.mubr.bf16.mxu0 %v540
  %1274 = vmatmul.mubr.bf16.gmra.mxu0 %v539
  %v1275 = vpop.f32.mrf.mxu0
  %v1276 = vadd.f32 %v1179, %v1275
  %v1277 = vpop.f32.mrf.mxu0
  %v1278 = vpop.f32.mrf.mxu0
  %v1279 = vadd.f32 %v1182, %v1278
  %v1280 = vpop.f32.mrf.mxu0
  %1281 = vmatprep.mubr.bf16.mxu0 %v548
  %1282 = vmatmul.mubr.bf16.gmra.mxu0 %v547
  %v1283 = vpop.f32.mrf.mxu0
  %v1284 = vadd.f32 %v1187, %v1283
  %v1285 = vpop.f32.mrf.mxu0
  %v1286 = vpop.f32.mrf.mxu0
  %v1287 = vadd.f32 %v1190, %v1286
  %v1288 = vpop.f32.mrf.mxu0
  %1289 = vmatprep.mubr.bf16.mxu0 %v556
  %1290 = vmatmul.mubr.bf16.gmra.mxu0 %v555
  %v1291 = vpop.f32.mrf.mxu0
  %v1292 = vadd.f32 %v1195, %v1291
  %v1293 = vpop.f32.mrf.mxu0
  %v1294 = vpop.f32.mrf.mxu0
  %v1295 = vadd.f32 %v1198, %v1294
  %v1296 = vpop.f32.mrf.mxu0
  %1297 = vdwg.mxu0
  %1298 = vmatprep.subr.bf16.mxu0 0
  %1299 = vmatpush1.bf16.msra.mxu0 %v934
  %1300 = vmatprep.subr.bf16.mxu0 0
  %1301 = vmatpush1.bf16.msra.mxu0 %v933
  %1302 = vmatprep.subr.bf16.mxu0 0
  %1303 = vmatpush1.bf16.msra.mxu0 %v932
  %1304 = vmatprep.subr.bf16.mxu0 0
  %1305 = vmatpush1.bf16.msra.mxu0 %v931
  %1306 = vmatprep.subr.bf16.mxu0 0
  %1307 = vmatpush1.bf16.msra.mxu0 %v930
  %1308 = vmatprep.subr.bf16.mxu0 0
  %1309 = vmatpush1.bf16.msra.mxu0 %v929
  %1310 = vmatprep.subr.bf16.mxu0 0
  %1311 = vmatpush1.bf16.msra.mxu0 %v928
  %1312 = vmatprep.subr.bf16.mxu0 0
  %1313 = vmatpush1.bf16.msra.mxu0 %v927
  %1314 = vmatprep.subr.bf16.mxu0 0
  %1315 = vmatpush2.bf16.msra.mxu0 %v942
  %1316 = vmatprep.subr.bf16.mxu0 0
  %1317 = vmatpush2.bf16.msra.mxu0 %v941
  %1318 = vmatprep.subr.bf16.mxu0 0
  %1319 = vmatpush2.bf16.msra.mxu0 %v940
  %1320 = vmatprep.subr.bf16.mxu0 0
  %1321 = vmatpush2.bf16.msra.mxu0 %v939
  %1322 = vmatprep.subr.bf16.mxu0 0
  %1323 = vmatpush2.bf16.msra.mxu0 %v938
  %1324 = vmatprep.subr.bf16.mxu0 0
  %1325 = vmatpush2.bf16.msra.mxu0 %v937
  %1326 = vmatprep.subr.bf16.mxu0 0
  %1327 = vmatpush2.bf16.msra.mxu0 %v936
  %1328 = vmatprep.subr.bf16.mxu0 0
  %1329 = vmatpush2.bf16.msra.mxu0 %v935
  %1330 = vmatprep.mubr.bf16.mxu0 %v502
  %1331 = vmatmul.mubr.bf16.gmra.mxu0 %v501
  %v1332 = vpop.f32.mrf.mxu0
  %v1333 = vadd.f32 %v1236, %v1332
  %v1334 = vpop.f32.mrf.mxu0
  %v1335 = vpop.f32.mrf.mxu0
  %v1336 = vadd.f32 %v1239, %v1335
  %v1337 = vpop.f32.mrf.mxu0
  %1338 = vmatprep.mubr.bf16.mxu0 %v510
  %1339 = vmatmul.mubr.bf16.gmra.mxu0 %v509
  %v1340 = vpop.f32.mrf.mxu0
  %v1341 = vadd.f32 %v1244, %v1340
  %v1342 = vpop.f32.mrf.mxu0
  %v1343 = vpop.f32.mrf.mxu0
  %v1344 = vadd.f32 %v1247, %v1343
  %v1345 = vpop.f32.mrf.mxu0
  %1346 = vmatprep.mubr.bf16.mxu0 %v518
  %1347 = vmatmul.mubr.bf16.gmra.mxu0 %v517
  %v1348 = vpop.f32.mrf.mxu0
  %v1349 = vadd.f32 %v1252, %v1348
  %v1350 = vpop.f32.mrf.mxu0
  %v1351 = vpop.f32.mrf.mxu0
  %v1352 = vadd.f32 %v1255, %v1351
  %v1353 = vpop.f32.mrf.mxu0
  %1354 = vmatprep.mubr.bf16.mxu0 %v526
  %1355 = vmatmul.mubr.bf16.gmra.mxu0 %v525
  %v1356 = vpop.f32.mrf.mxu0
  %v1357 = vadd.f32 %v1260, %v1356
  %v1358 = vpop.f32.mrf.mxu0
  %v1359 = vpop.f32.mrf.mxu0
  %v1360 = vadd.f32 %v1263, %v1359
  %v1361 = vpop.f32.mrf.mxu0
  %1362 = vmatprep.mubr.bf16.mxu0 %v534
  %1363 = vmatmul.mubr.bf16.gmra.mxu0 %v533
  %v1364 = vpop.f32.mrf.mxu0
  %v1365 = vadd.f32 %v1268, %v1364
  %v1366 = vpop.f32.mrf.mxu0
  %v1367 = vpop.f32.mrf.mxu0
  %v1368 = vadd.f32 %v1271, %v1367
  %v1369 = vpop.f32.mrf.mxu0
  %1370 = vmatprep.mubr.bf16.mxu0 %v542
  %1371 = vmatmul.mubr.bf16.gmra.mxu0 %v541
  %v1372 = vpop.f32.mrf.mxu0
  %v1373 = vadd.f32 %v1276, %v1372
  %v1374 = vpop.f32.mrf.mxu0
  %v1375 = vpop.f32.mrf.mxu0
  %v1376 = vadd.f32 %v1279, %v1375
  %v1377 = vpop.f32.mrf.mxu0
  %1378 = vmatprep.mubr.bf16.mxu0 %v550
  %1379 = vmatmul.mubr.bf16.gmra.mxu0 %v549
  %v1380 = vpop.f32.mrf.mxu0
  %v1381 = vadd.f32 %v1284, %v1380
  %v1382 = vpop.f32.mrf.mxu0
  %v1383 = vpop.f32.mrf.mxu0
  %v1384 = vadd.f32 %v1287, %v1383
  %v1385 = vpop.f32.mrf.mxu0
  %1386 = vmatprep.mubr.bf16.mxu0 %v558
  %1387 = vmatmul.mubr.bf16.gmra.mxu0 %v557
  %v1388 = vpop.f32.mrf.mxu0
  %v1389 = vadd.f32 %v1292, %v1388
  %v1390 = vpop.f32.mrf.mxu0
  %v1391 = vpop.f32.mrf.mxu0
  %v1392 = vadd.f32 %v1295, %v1391
  %v1393 = vpop.f32.mrf.mxu0
  %1394 = vdwg.mxu0
  %vm1395 = vcmp.gt.f32.partialorder %v1333, 0.0
  %vm1396 = vcmp.gt.f32.partialorder %v1336, 0.0
  %vm1397 = vcmp.gt.f32.partialorder %v1341, 0.0
  %vm1398 = vcmp.gt.f32.partialorder %v1344, 0.0
  %vm1399 = vcmp.gt.f32.partialorder %v1349, 0.0
  %vm1400 = vcmp.gt.f32.partialorder %v1352, 0.0
  %vm1401 = vcmp.gt.f32.partialorder %v1357, 0.0
  %vm1402 = vcmp.gt.f32.partialorder %v1360, 0.0
  %vm1403 = vcmp.gt.f32.partialorder %v1365, 0.0
  %vm1404 = vcmp.gt.f32.partialorder %v1368, 0.0
  %vm1405 = vcmp.gt.f32.partialorder %v1373, 0.0
  %vm1406 = vcmp.gt.f32.partialorder %v1376, 0.0
  %vm1407 = vcmp.gt.f32.partialorder %v1381, 0.0
  %vm1408 = vcmp.gt.f32.partialorder %v1384, 0.0
  %vm1409 = vcmp.gt.f32.partialorder %v1389, 0.0
  %vm1410 = vcmp.gt.f32.partialorder %v1392, 0.0
  %v1411 = vmul.f32 %v1333, 0.2
  %v1412 = vmul.f32 %v1336, 0.2
  %v1413 = vmul.f32 %v1341, 0.2
  %v1414 = vmul.f32 %v1344, 0.2
  %v1415 = vmul.f32 %v1349, 0.2
  %v1416 = vmul.f32 %v1352, 0.2
  %v1417 = vmul.f32 %v1357, 0.2
  %v1418 = vmul.f32 %v1360, 0.2
  %v1419 = vmul.f32 %v1365, 0.2
  %v1420 = vmul.f32 %v1368, 0.2
  %v1421 = vmul.f32 %v1373, 0.2
  %v1422 = vmul.f32 %v1376, 0.2
  %v1423 = vmul.f32 %v1381, 0.2
  %v1424 = vmul.f32 %v1384, 0.2
  %v1425 = vmul.f32 %v1389, 0.2
  %v1426 = vmul.f32 %v1392, 0.2
  %v1427 = vsel %vm1395, %v1333, %v1411
  %v1428 = vsel %vm1396, %v1336, %v1412
  %v1429 = vsel %vm1397, %v1341, %v1413
  %v1430 = vsel %vm1398, %v1344, %v1414
  %v1431 = vsel %vm1399, %v1349, %v1415
  %v1432 = vsel %vm1400, %v1352, %v1416
  %v1433 = vsel %vm1401, %v1357, %v1417
  %v1434 = vsel %vm1402, %v1360, %v1418
  %v1435 = vsel %vm1403, %v1365, %v1419
  %v1436 = vsel %vm1404, %v1368, %v1420
  %v1437 = vsel %vm1405, %v1373, %v1421
  %v1438 = vsel %vm1406, %v1376, %v1422
  %v1439 = vsel %vm1407, %v1381, %v1423
  %v1440 = vsel %vm1408, %v1384, %v1424
  %v1441 = vsel %vm1409, %v1389, %v1425
  %v1442 = vsel %vm1410, %v1392, %v1426
  %v1443 = vpack.c.bf16 %v1428, %v1427
  %v1444 = vpack.c.bf16 %v1430, %v1429
  %v1445 = vpack.c.bf16 %v1432, %v1431
  %v1446 = vpack.c.bf16 %v1434, %v1433
  %v1447 = vpack.c.bf16 %v1436, %v1435
  %v1448 = vpack.c.bf16 %v1438, %v1437
  %v1449 = vpack.c.bf16 %v1440, %v1439
  %v1450 = vpack.c.bf16 %v1442, %v1441
  %v1459 = vunpack.c.l.b16 %v1443
  %v1460 = vunpack.c.h.b16 %v1443
  %v1461 = vunpack.c.l.b16 %v1444
  %v1462 = vunpack.c.h.b16 %v1444
  %v1463 = vunpack.c.l.b16 %v1445
  %v1464 = vunpack.c.h.b16 %v1445
  %v1465 = vunpack.c.l.b16 %v1446
  %v1466 = vunpack.c.h.b16 %v1446
  %v1467 = vunpack.c.l.b16 %v1447
  %v1468 = vunpack.c.h.b16 %v1447
  %v1469 = vunpack.c.l.b16 %v1448
  %v1470 = vunpack.c.h.b16 %v1448
  %v1471 = vunpack.c.l.b16 %v1449
  %v1472 = vunpack.c.h.b16 %v1449
  %v1473 = vunpack.c.l.b16 %v1450
  %v1474 = vunpack.c.h.b16 %v1450
  %v1475 = vpack.c.b16 %v1459, %v1459
  %v1476 = vpack.c.b16 %v1460, %v1460
  %v1477 = vpack.c.b16 %v1461, %v1461
  %v1478 = vpack.c.b16 %v1462, %v1462
  %v1479 = vpack.c.b16 %v1463, %v1463
  %v1480 = vpack.c.b16 %v1464, %v1464
  %v1481 = vpack.c.b16 %v1465, %v1465
  %v1482 = vpack.c.b16 %v1466, %v1466
  %v1483 = vpack.c.b16 %v1467, %v1467
  %v1484 = vpack.c.b16 %v1468, %v1468
  %v1485 = vpack.c.b16 %v1469, %v1469
  %v1486 = vpack.c.b16 %v1470, %v1470
  %v1487 = vpack.c.b16 %v1471, %v1471
  %v1488 = vpack.c.b16 %v1472, %v1472
  %v1489 = vpack.c.b16 %v1473, %v1473
  %v1490 = vpack.c.b16 %v1474, %v1474
  %vm1507 = vcmask 257024
  %1508 = vst.msk [vmem:[%s3] sm:$0xf] %vm1507, %v1475
  %1509 = vst.msk [vmem:[%s3 + $0x4] sm:$0xf] %vm1507, %v1476
  %1510 = vst.msk [vmem:[%s3 + $0x8] sm:$0xf] %vm1507, %v1477
  %1511 = vst.msk [vmem:[%s3 + $0xc] sm:$0xf] %vm1507, %v1478
  %1512 = vst.msk [vmem:[%s3 + $0x10] sm:$0xf] %vm1507, %v1479
  %1513 = vst.msk [vmem:[%s3 + $0x14] sm:$0xf] %vm1507, %v1480
  %1514 = vst.msk [vmem:[%s3 + $0x18] sm:$0xf] %vm1507, %v1481
  %1515 = vst.msk [vmem:[%s3 + $0x1c] sm:$0xf] %vm1507, %v1482
  %1516 = vst.msk [vmem:[%s3 + $0x20] sm:$0xf] %vm1507, %v1483
  %1517 = vst.msk [vmem:[%s3 + $0x24] sm:$0xf] %vm1507, %v1484
  %1518 = vst.msk [vmem:[%s3 + $0x28] sm:$0xf] %vm1507, %v1485
  %1519 = vst.msk [vmem:[%s3 + $0x2c] sm:$0xf] %vm1507, %v1486
  %1520 = vst.msk [vmem:[%s3 + $0x30] sm:$0xf] %vm1507, %v1487
  %1521 = vst.msk [vmem:[%s3 + $0x34] sm:$0xf] %vm1507, %v1488
  %1522 = vst.msk [vmem:[%s3 + $0x38] sm:$0xf] %vm1507, %v1489
  %1523 = vst.msk [vmem:[%s3 + $0x3c] sm:$0xf] %vm1507, %v1490
  // Predicated region
  $region14: #{discriminator_forward.11} parent=0 // pred_check
    _
  $region15: #{discriminator_forward.11} parent=0 // pred_check_branch
    %1525 = sbr.rel (0) target = $region17
  $region16: #{discriminator_forward.11} parent=0 // pred_region
    _
  $region17: #{discriminator_forward.11} parent=0 // pred_fallthru
    _
  // Predicated region
  $region18: #{discriminator_forward.11} parent=0 // pred_check
    _
  $region19: #{discriminator_forward.11} parent=0 // pred_check_branch
    %1527 = sbr.rel (0) target = $region21
  $region20: #{discriminator_forward.11} parent=0 // pred_region
    _
  $region21: #{discriminator_forward.11} parent=0 // pred_fallthru
    _

</llo_original>
